<compile_context>
chip_gen: v7x
topology: tpu7x:2x2x1
jax: 0.10.0
libtpu: 0.0.40
codegen_flags: <defaults>
</compile_context>

<pallas_src>
import functools

import jax
import jax.numpy as jnp
from jax.experimental import pallas as pl
from jax.experimental.pallas import tpu as pltpu

GROUPS = 32
EPS = 1e-5


# ---------------------------------------------------------------------------
# Kernel 1: fused GroupNorm affine + one wide (C, 3*Cp) QKV projection.
#   x block:    (C, tm)     -- native (B, C, HW) layout, NO wrapper transpose
#   qkv block:  (tm, 3*Cp)  -- single fused lane-dense bf16 output
# ---------------------------------------------------------------------------
def qkv_proj_kernel(x_ref, scale_ref, shift_ref, wqkv_ref, bqkv_ref, qkv_ref):
    # GroupNorm affine folded to per-channel scale/shift (stats from wrapper):
    # xn = x * (rstd*gamma) + (beta - mean*rstd*gamma)
    xn = x_ref[...].astype(jnp.float32) * scale_ref[...] + shift_ref[...]    # (C, tm)
    # Transposed contraction over the channel axis: (tm, 3Cp) = xn^T @ Wqkv.
    qkv = jax.lax.dot_general(
        xn.astype(jnp.bfloat16), wqkv_ref[...],
        (((0,), (0,)), ((), ())),
        preferred_element_type=jnp.float32)                                  # (tm, 3Cp)
    qkv_ref[...] = (qkv + bqkv_ref[...]).astype(qkv_ref.dtype)


# ---------------------------------------------------------------------------
# Kernel 2: flash attention with whole-sequence K/V resident in VMEM +
# output projection + residual, written directly in lane-dense (B, C, HW)
# layout (no output-side transpose).
#   grid = (B, HW // tq); the k loop is an in-kernel fori_loop over the
#   resident K/V, so no (HW, HW) intermediate and no K/V re-streaming.
# ---------------------------------------------------------------------------
def flash_attn_kernel(q_ref, k_ref, v_ref, res_ref, wot_ref, bo_ref, o_ref,
                      *, tk, n_k, unroll):
    tq, cp = q_ref.shape
    q = q_ref[...]                                                           # (tq, Cp) bf16

    def body(ki, carry):
        m_prev, l_prev, acc_prev = carry
        start = pl.multiple_of(ki * tk, tk)
        k_blk = k_ref[pl.ds(start, tk), :]                                   # (tk, Cp)
        v_blk = v_ref[pl.ds(start, tk), :]
        # s = q @ k^T via a (1,1) contraction; 1/sqrt(C) already folded into q.
        s = jax.lax.dot_general(q, k_blk, (((1,), (1,)), ((), ())),
                                preferred_element_type=jnp.float32)          # (tq, tk)
        m_new = jnp.maximum(m_prev, jnp.max(s, axis=-1, keepdims=True))
        alpha = jnp.exp(m_prev - m_new)
        p = jnp.exp(s - m_new)                                               # unnormalized
        l_new = alpha * l_prev + jnp.sum(p, axis=-1, keepdims=True)
        acc_new = alpha * acc_prev + jnp.dot(
            p.astype(jnp.bfloat16), v_blk, preferred_element_type=jnp.float32)
        return m_new, l_new, acc_new

    init = (jnp.full((tq, 1), -jnp.inf, jnp.float32),
            jnp.zeros((tq, 1), jnp.float32),
            jnp.zeros((tq, cp), jnp.float32))
    _, l_fin, acc_fin = jax.lax.fori_loop(0, n_k, body, init, unroll=unroll)

    # Single normalization of the (tq, Cp) accumulator (EUP reciprocal).
    # NOTE: approx reciprocal + bf16 p@V are deliberate precision trades
    # (pass at atol/rtol 2e-2); tighten if needed.
    att = acc_fin * pl.reciprocal(l_fin, approx=True)                        # (tq, Cp)
    # out[c, i] = sum_d Wo[d, c] * att[i, d];  wot[c, d] = Wo[d, c] (zero-padded cols)
    out_ct = jax.lax.dot_general(wot_ref[...], att.astype(jnp.bfloat16),
                                 (((1,), (1,)), ((), ())),
                                 preferred_element_type=jnp.float32)         # (C, tq)
    o_ref[...] = (out_ct + bo_ref[...]
                  + res_ref[...].astype(jnp.float32)).astype(o_ref.dtype)


# ---------------------------------------------------------------------------
# Helpers: tiling / VMEM budget / one-time parameter prep
# ---------------------------------------------------------------------------
def _round_up(x, m):
    return (x + m - 1) // m * m


def _pick_tile(hw, cap):
    """Largest tile <= cap dividing hw; never < 128 unless it equals hw."""
    if hw <= cap:
        return hw
    for t in (1024, 512, 256, 128):
        if t <= cap and hw % t == 0:
            return t
    return hw                      # awkward hw: single full-extent tile (always legal)


def _vmem_budget():
    """(vmem_limit_bytes, tile_cap) derived from the chip's VMEM capacity."""
    cap_bytes = 64 * 1024 * 1024   # conservative default (v7x per-TC)
    try:
        info = pltpu.get_tpu_info()
        cap_bytes = int(getattr(info, "vmem_capacity_bytes", cap_bytes))
    except Exception:
        pass
    vmem_limit = min(cap_bytes * 3 // 4, 112 * 1024 * 1024)   # ~48 MiB v7x, ~96 MiB v5e/v6e
    tile_cap = 1024 if cap_bytes >= 96 * 1024 * 1024 else 512
    return vmem_limit, tile_cap


def prepare_params(params):
    """One-time parameter prep (hoisted out of the per-call forward):
    fold 1/sqrt(C) into the q columns, concatenate QKV, zero-pad the head
    width to a multiple of 128 lanes (Cp), transpose Wo, cast MXU inputs to
    bf16."""
    c = params["wq"].shape[0]
    cp = _round_up(max(c, 128), 128)

    def pad_cols(w):
        return w if w.shape[-1] == cp else jnp.pad(w, ((0, 0), (0, cp - w.shape[-1])))

    inv_sqrt_c = 1.0 / jnp.sqrt(jnp.float32(c))
    wqkv = jnp.concatenate(
        [pad_cols(params["wq"] * inv_sqrt_c), pad_cols(params["wk"]),
         pad_cols(params["wv"])], axis=1).astype(jnp.bfloat16)               # (C, 3Cp)
    bqkv = jnp.concatenate(
        [pad_cols(params["bq"] * inv_sqrt_c), pad_cols(params["bk"]),
         pad_cols(params["bv"])], axis=1).astype(jnp.float32)                # (1, 3Cp)
    wot = pad_cols(params["wo"].T).astype(jnp.bfloat16)                      # (C, Cp)
    bo = params["bo"].reshape(c, 1).astype(jnp.float32)                      # (C, 1)
    return {
        "gamma": params["gamma"].reshape(1, c).astype(jnp.float32),
        "beta": params["beta"].reshape(1, c).astype(jnp.float32),
        "wqkv": wqkv, "bqkv": bqkv, "wot": wot, "bo": bo,
    }


# ---------------------------------------------------------------------------
# Forward wrapper
# ---------------------------------------------------------------------------
def vae_attention(x_nchw, prepped):
    b, c, h, w = x_nchw.shape
    hw = h * w
    orig_dtype = x_nchw.dtype
    cp = prepped["wot"].shape[1]
    cpg = c // GROUPS

    x_ncl = x_nchw.reshape(b, c, hw)                 # free (no transpose anywhere)

    # ---- GroupNorm stats: single fused read of x (sum + sum of squares) ----
    # f32 accumulation, clamped variance.
    # TODO(synk): switch to a compensated / two-level reduction if inputs with
    # very large means ever need tighter accuracy than E[x^2]-E[x]^2 in f32.
    xg = x_ncl.astype(jnp.float32).reshape(b, GROUPS, cpg * hw)
    mean_g = jnp.mean(xg, axis=-1)                                           # (B, G)
    mean_sq_g = jnp.mean(jnp.square(xg), axis=-1)                            # (B, G)
    var_g = jnp.maximum(mean_sq_g - jnp.square(mean_g), 0.0)
    rstd_g = jax.lax.rsqrt(var_g + EPS)
    mean_c = jnp.repeat(mean_g, cpg, axis=1)                                 # (B, C)
    rstd_c = jnp.repeat(rstd_g, cpg, axis=1)                                 # (B, C)
    scale_bc = rstd_c * prepped["gamma"]                                     # (B, C)
    shift_bc = prepped["beta"] - mean_c * scale_bc                           # (B, C)
    scale = scale_bc[:, :, None]                                             # (B, C, 1)
    shift = shift_bc[:, :, None]                                             # (B, C, 1)

    vmem_limit, tile_cap = _vmem_budget()
    tm = _pick_tile(hw, tile_cap)
    tq = _pick_tile(hw, tile_cap)
    tk = tq
    n_m, n_q, n_k = hw // tm, hw // tq, hw // tk

    # ---------------- pass 1: GroupNorm affine + fused QKV projection ----------------
    qkv_cost = pl.CostEstimate(
        flops=int(2 * b * hw * c * 3 * cp),
        transcendentals=0,
        bytes_accessed=int(b * c * hw * 4 + b * hw * 3 * cp * 2
                           + c * 3 * cp * 2 + 3 * cp * 4 + 2 * b * c * 4))

    qkv = pl.pallas_call(
        qkv_proj_kernel,
        out_shape=jax.ShapeDtypeStruct((b, hw, 3 * cp), jnp.bfloat16),
        grid=(b, n_m),
        in_specs=[
            pl.BlockSpec((None, c, tm), lambda bi, mi: (bi, 0, mi)),     # x  (B, C, HW)
            pl.BlockSpec((None, c, 1), lambda bi, mi: (bi, 0, 0)),       # GN scale
            pl.BlockSpec((None, c, 1), lambda bi, mi: (bi, 0, 0)),       # GN shift
            pl.BlockSpec((c, 3 * cp), lambda bi, mi: (0, 0)),            # Wqkv
            pl.BlockSpec((1, 3 * cp), lambda bi, mi: (0, 0)),            # bqkv
        ],
        out_specs=pl.BlockSpec((None, tm, 3 * cp), lambda bi, mi: (bi, mi, 0)),
        compiler_params=pltpu.CompilerParams(
            dimension_semantics=("parallel", "parallel"),
            vmem_limit_bytes=vmem_limit),
        cost_estimate=qkv_cost,
    )(x_ncl, scale, shift, prepped["wqkv"], prepped["bqkv"])

    # -------- pass 2: flash attention (resident K/V) + out-proj + residual --------
    out_bytes = jnp.dtype(orig_dtype).itemsize
    attn_cost = pl.CostEstimate(
        flops=int(b * (4 * hw * hw * cp + 2 * hw * c * cp)),
        transcendentals=int(b * hw * hw),
        bytes_accessed=int(b * (3 * hw * cp * 2 + hw * c * 4 + hw * c * out_bytes)
                           + c * cp * 2 + c * 4))

    kernel = functools.partial(flash_attn_kernel, tk=tk, n_k=n_k,
                               unroll=(n_k <= 8))

    out_ncl = pl.pallas_call(
        kernel,
        out_shape=jax.ShapeDtypeStruct((b, c, hw), orig_dtype),
        grid=(b, n_q),
        in_specs=[
            pl.BlockSpec((None, tq, cp), lambda bi, qi: (bi, qi, 0)),    # q tile
            pl.BlockSpec((None, hw, cp), lambda bi, qi: (bi, 0, 1)),     # K (resident, whole seq)
            pl.BlockSpec((None, hw, cp), lambda bi, qi: (bi, 0, 2)),     # V (resident, whole seq)
            pl.BlockSpec((None, c, tq), lambda bi, qi: (bi, 0, qi)),     # residual x (B, C, HW)
            pl.BlockSpec((c, cp), lambda bi, qi: (0, 0)),                # Wo^T (zero-padded)
            pl.BlockSpec((c, 1), lambda bi, qi: (0, 0)),                 # bo
        ],
        out_specs=pl.BlockSpec((None, c, tq), lambda bi, qi: (bi, 0, qi)),
        compiler_params=pltpu.CompilerParams(
            dimension_semantics=("parallel", "parallel"),
            vmem_limit_bytes=vmem_limit),
        cost_estimate=attn_cost,
    )(qkv, qkv, qkv, x_ncl, prepped["wot"], prepped["bo"])

    return out_ncl.reshape(b, c, h, w)               # free (no transpose)


# ---------------------------------------------------------------------------
# Pure-JAX reference mirroring the PyTorch module (f32 throughout).
# ---------------------------------------------------------------------------
def reference(x_nchw, params):
    b, c, h, w = x_nchw.shape
    xg = x_nchw.reshape(b, GROUPS, c // GROUPS, h, w)
    mean = jnp.mean(xg, axis=(2, 3, 4), keepdims=True)
    var = jnp.var(xg, axis=(2, 3, 4), keepdims=True)
    xn = ((xg - mean) / jnp.sqrt(var + EPS)).reshape(b, c, h, w)
    xn = xn * params["gamma"].reshape(1, c, 1, 1) + params["beta"].reshape(1, c, 1, 1)
    xl = jnp.transpose(xn.reshape(b, c, h * w), (0, 2, 1))           # (B, HW, C)
    q = xl @ params["wq"] + params["bq"]
    k = xl @ params["wk"] + params["bk"]
    v = xl @ params["wv"] + params["bv"]
    s = jnp.einsum("bqd,bkd->bqk", q, k) / jnp.sqrt(jnp.float32(c))
    p = jax.nn.softmax(s, axis=-1)
    att = jnp.einsum("bqk,bkd->bqd", p, v)
    out = att @ params["wo"] + params["bo"]
    out = jnp.transpose(out, (0, 2, 1)).reshape(b, c, h, w)
    return out + x_nchw


def init_params(key, c):
    ks = jax.random.split(key, 10)
    scale = 0.1
    return {
        "gamma": jax.random.normal(ks[0], (1, c), jnp.float32) * 0.1 + 1.0,
        "beta": jax.random.normal(ks[1], (1, c), jnp.float32) * 0.1,
        "wq": jax.random.normal(ks[2], (c, c), jnp.float32) * scale,
        "wk": jax.random.normal(ks[3], (c, c), jnp.float32) * scale,
        "wv": jax.random.normal(ks[4], (c, c), jnp.float32) * scale,
        "wo": jax.random.normal(ks[5], (c, c), jnp.float32) * scale,
        "bq": jax.random.normal(ks[6], (1, c), jnp.float32) * scale,
        "bk": jax.random.normal(ks[7], (1, c), jnp.float32) * scale,
        "bv": jax.random.normal(ks[8], (1, c), jnp.float32) * scale,
        "bo": jax.random.normal(ks[9], (1, c), jnp.float32) * scale,
    }


if __name__ == "__main__":
    B, C, H, W = 2, 64, 16, 16        # units = 64 (divisible by 32 groups); HW = 256
    key = jax.random.PRNGKey(0)
    kx, kp = jax.random.split(key)
    x = jax.random.normal(kx, (B, C, H, W), jnp.float32)
    params = init_params(kp, C)

    prepped = prepare_params(params)          # one-time weight prep (hoisted)
    fwd = jax.jit(vae_attention)
    y = jax.block_until_ready(fwd(x, prepped))
    y_ref = jax.block_until_ready(reference(x, params))

    assert y.shape == (B, C, H, W)
    max_err = float(jnp.max(jnp.abs(y - y_ref)))
    # bf16 MXU inputs with f32 accumulation -> compare at a relaxed tolerance.
    assert jnp.allclose(y, y_ref, atol=2e-2, rtol=2e-2), max_err
    print("KERNEL_OK")
</pallas_src>

<mosaic_0001>
module attributes {stable_mosaic.version = 11 : i64} {
  func.func @qkv_proj_kernel(%arg0: i32, %arg1: i32, %arg2: memref<1x64x256xf32, #tpu.memory_space<vmem>>, %arg3: memref<1x64x1xf32, #tpu.memory_space<vmem>>, %arg4: memref<1x64x1xf32, #tpu.memory_space<vmem>>, %arg5: memref<64x384xbf16, #tpu.memory_space<vmem>>, %arg6: memref<1x384xf32, #tpu.memory_space<vmem>>, %arg7: memref<1x256x384xbf16, #tpu.memory_space<vmem>>) attributes {dimension_semantics = [#tpu.dimension_semantics<parallel>, #tpu.dimension_semantics<parallel>], iteration_bounds = array<i64: 2, 1>, scalar_prefetch = 0 : i64, scratch_operands = 0 : i64, tpu.core_type = #tpu.core_type<tc>, window_params = [{transform_indices = @transform_0, window_bounds = array<i64: 1, 64, 256>}, {transform_indices = @transform_1, window_bounds = array<i64: 1, 64, 1>}, {transform_indices = @transform_2, window_bounds = array<i64: 1, 64, 1>}, {pipeline_mode = #tpu.pipeline_mode<synchronous>, transform_indices = @transform_3, window_bounds = array<i64: 64, 384>}, {pipeline_mode = #tpu.pipeline_mode<synchronous>, transform_indices = @transform_4, window_bounds = array<i64: 1, 384>}, {transform_indices = @transform_5, window_bounds = array<i64: 1, 256, 384>}]} {
    %c0 = arith.constant 0 : index
    %c0_0 = arith.constant 0 : index
    %c0_1 = arith.constant 0 : index
    %0 = vector.load %arg2[%c0, %c0_0, %c0_1] : memref<1x64x256xf32, #tpu.memory_space<vmem>>, vector<1x64x256xf32>
    %1 = vector.shape_cast %0 : vector<1x64x256xf32> to vector<64x256xf32>
    %c0_2 = arith.constant 0 : index
    %c0_3 = arith.constant 0 : index
    %c0_4 = arith.constant 0 : index
    %2 = vector.load %arg3[%c0_2, %c0_3, %c0_4] : memref<1x64x1xf32, #tpu.memory_space<vmem>>, vector<1x64x1xf32>
    %3 = vector.shape_cast %2 : vector<1x64x1xf32> to vector<64x1xf32>
    %4 = vector.broadcast %3 : vector<64x1xf32> to vector<64x256xf32>
    %5 = arith.mulf %1, %4 : vector<64x256xf32>
    %c0_5 = arith.constant 0 : index
    %c0_6 = arith.constant 0 : index
    %c0_7 = arith.constant 0 : index
    %6 = vector.load %arg4[%c0_5, %c0_6, %c0_7] : memref<1x64x1xf32, #tpu.memory_space<vmem>>, vector<1x64x1xf32>
    %7 = vector.shape_cast %6 : vector<1x64x1xf32> to vector<64x1xf32>
    %8 = vector.broadcast %7 : vector<64x1xf32> to vector<64x256xf32>
    %9 = arith.addf %5, %8 : vector<64x256xf32>
    %10 = arith.truncf %9 : vector<64x256xf32> to vector<64x256xbf16>
    %c0_8 = arith.constant 0 : index
    %c0_9 = arith.constant 0 : index
    %11 = vector.load %arg5[%c0_8, %c0_9] : memref<64x384xbf16, #tpu.memory_space<vmem>>, vector<64x384xbf16>
    %cst = arith.constant dense<0.000000e+00> : vector<256x384xf32>
    %12 = tpu.matmul %10, %11, %cst {dimension_numbers = #tpu.dot_dimension_numbers<[0], [0], [1], [1], [0, 1, 1, 1], [], []>} : vector<64x256xbf16>, vector<64x384xbf16>, vector<256x384xf32> -> vector<256x384xf32>
    %c0_10 = arith.constant 0 : index
    %c0_11 = arith.constant 0 : index
    %13 = vector.load %arg6[%c0_10, %c0_11] : memref<1x384xf32, #tpu.memory_space<vmem>>, vector<1x384xf32>
    %14 = vector.broadcast %13 : vector<1x384xf32> to vector<256x384xf32>
    %15 = arith.addf %12, %14 : vector<256x384xf32>
    %16 = arith.truncf %15 : vector<256x384xf32> to vector<256x384xbf16>
    %c0_12 = arith.constant 0 : index
    %c0_13 = arith.constant 0 : index
    %c0_14 = arith.constant 0 : index
    %17 = vector.load %arg7[%c0_12, %c0_13, %c0_14] : memref<1x256x384xbf16, #tpu.memory_space<vmem>>, vector<1x256x384xbf16>
    %18 = vector.shape_cast %17 : vector<1x256x384xbf16> to vector<256x384xbf16>
    %19 = vector.shape_cast %16 : vector<256x384xbf16> to vector<1x256x384xbf16>
    tpu.vector_store %arg7[%c0_12, %c0_13, %c0_14], %19 {strides = array<i32>} : memref<1x256x384xbf16, #tpu.memory_space<vmem>>, vector<1x256x384xbf16>,
    return
  }
  func.func @transform_0(%arg0: i32, %arg1: i32) -> (i32, i32, i32) {
    %c0_i32 = arith.constant 0 : i32
    %c0_i32_0 = arith.constant 0 : i32
    return %arg0, %c0_i32, %arg1 : i32, i32, i32
  }
  func.func @transform_1(%arg0: i32, %arg1: i32) -> (i32, i32, i32) {
    %c0_i32 = arith.constant 0 : i32
    %c0_i32_0 = arith.constant 0 : i32
    %c0_i32_1 = arith.constant 0 : i32
    return %arg0, %c0_i32, %c0_i32_0 : i32, i32, i32
  }
  func.func @transform_2(%arg0: i32, %arg1: i32) -> (i32, i32, i32) {
    %c0_i32 = arith.constant 0 : i32
    %c0_i32_0 = arith.constant 0 : i32
    %c0_i32_1 = arith.constant 0 : i32
    return %arg0, %c0_i32, %c0_i32_0 : i32, i32, i32
  }
  func.func @transform_3(%arg0: i32, %arg1: i32) -> (i32, i32) {
    %c0_i32 = arith.constant 0 : i32
    %c0_i32_0 = arith.constant 0 : i32
    %c0_i32_1 = arith.constant 0 : i32
    return %c0_i32, %c0_i32_0 : i32, i32
  }
  func.func @transform_4(%arg0: i32, %arg1: i32) -> (i32, i32) {
    %c0_i32 = arith.constant 0 : i32
    %c0_i32_0 = arith.constant 0 : i32
    %c0_i32_1 = arith.constant 0 : i32
    return %c0_i32, %c0_i32_0 : i32, i32
  }
  func.func @transform_5(%arg0: i32, %arg1: i32) -> (i32, i32, i32) {
    %c0_i32 = arith.constant 0 : i32
    %c0_i32_0 = arith.constant 0 : i32
    return %arg0, %arg1, %c0_i32 : i32, i32, i32
  }
}

module attributes {stable_mosaic.version = 11 : i64} {
  func.func @flash_attn_kernel(%arg0: i32, %arg1: i32, %arg2: memref<1x256x128xbf16, #tpu.memory_space<vmem>>, %arg3: memref<1x256x128xbf16, #tpu.memory_space<vmem>>, %arg4: memref<1x256x128xbf16, #tpu.memory_space<vmem>>, %arg5: memref<1x64x256xf32, #tpu.memory_space<vmem>>, %arg6: memref<64x128xbf16, #tpu.memory_space<vmem>>, %arg7: memref<64x1xf32, #tpu.memory_space<vmem>>, %arg8: memref<1x64x256xf32, #tpu.memory_space<vmem>>) attributes {dimension_semantics = [#tpu.dimension_semantics<parallel>, #tpu.dimension_semantics<parallel>], iteration_bounds = array<i64: 2, 1>, scalar_prefetch = 0 : i64, scratch_operands = 0 : i64, tpu.core_type = #tpu.core_type<tc>, window_params = [{transform_indices = @transform_0, window_bounds = array<i64: 1, 256, 128>}, {transform_indices = @transform_1, window_bounds = array<i64: 1, 256, 128>}, {transform_indices = @transform_2, window_bounds = array<i64: 1, 256, 128>}, {transform_indices = @transform_3, window_bounds = array<i64: 1, 64, 256>}, {pipeline_mode = #tpu.pipeline_mode<synchronous>, transform_indices = @transform_4, window_bounds = array<i64: 64, 128>}, {pipeline_mode = #tpu.pipeline_mode<synchronous>, transform_indices = @transform_5, window_bounds = array<i64: 64, 1>}, {transform_indices = @transform_6, window_bounds = array<i64: 1, 64, 256>}]} {
    %c0 = arith.constant 0 : index
    %c0_0 = arith.constant 0 : index
    %c0_1 = arith.constant 0 : index
    %0 = vector.load %arg2[%c0, %c0_0, %c0_1] : memref<1x256x128xbf16, #tpu.memory_space<vmem>>, vector<1x256x128xbf16>
    %1 = vector.shape_cast %0 : vector<1x256x128xbf16> to vector<256x128xbf16>
    %cst = arith.constant 0xFF800000 : f32
    %2 = vector.broadcast %cst : f32 to vector<256x1xf32>
    %cst_2 = arith.constant 0.000000e+00 : f32
    %3 = vector.broadcast %cst_2 : f32 to vector<256x1xf32>
    %cst_3 = arith.constant 0.000000e+00 : f32
    %4 = vector.broadcast %cst_3 : f32 to vector<256x128xf32>
    %c0_i32 = arith.constant 0 : i32
    %c256_i32 = arith.constant 256 : i32
    %5 = arith.muli %c0_i32, %c256_i32 : i32
    %6 = tpu.assume_multiple %5, 256 : i32
    %c0_4 = arith.constant 0 : index
    %7 = arith.index_cast %6 : i32 to index
    %c0_5 = arith.constant 0 : index
    %8 = vector.load %arg3[%c0_4, %7, %c0_5] : memref<1x256x128xbf16, #tpu.memory_space<vmem>>, vector<1x256x128xbf16>
    %9 = vector.shape_cast %8 : vector<1x256x128xbf16> to vector<256x128xbf16>
    %c0_6 = arith.constant 0 : index
    %10 = arith.index_cast %6 : i32 to index
    %c0_7 = arith.constant 0 : index
    %11 = vector.load %arg4[%c0_6, %10, %c0_7] : memref<1x256x128xbf16, #tpu.memory_space<vmem>>, vector<1x256x128xbf16>
    %12 = vector.shape_cast %11 : vector<1x256x128xbf16> to vector<256x128xbf16>
    %cst_8 = arith.constant dense<0.000000e+00> : vector<256x256xf32>
    %13 = tpu.matmul %1, %9, %cst_8 {dimension_numbers = #tpu.dot_dimension_numbers<[1], [1], [0], [0], [0, 0, 1, 0], [], []>} : vector<256x128xbf16>, vector<256x128xbf16>, vector<256x256xf32> -> vector<256x256xf32>
    %cst_9 = arith.constant dense<0xFF800000> : vector<256xf32>
    %14 = vector.multi_reduction <maximumf>, %13, %cst_9 [1] : vector<256x256xf32> to vector<256xf32>
    %15 = vector.shape_cast %14 : vector<256xf32> to vector<256x1xf32>
    %16 = arith.maximumf %2, %15 : vector<256x1xf32>
    %17 = arith.subf %2, %16 : vector<256x1xf32>
    %18 = math.exp %17 : vector<256x1xf32>
    %19 = vector.broadcast %16 : vector<256x1xf32> to vector<256x256xf32>
    %20 = arith.subf %13, %19 : vector<256x256xf32>
    %21 = math.exp %20 : vector<256x256xf32>
    %22 = arith.mulf %18, %3 : vector<256x1xf32>
    %cst_10 = arith.constant dense<0.000000e+00> : vector<256xf32>
    %23 = vector.multi_reduction <add>, %21, %cst_10 [1] : vector<256x256xf32> to vector<256xf32>
    %24 = vector.shape_cast %23 : vector<256xf32> to vector<256x1xf32>
    %25 = arith.addf %22, %24 : vector<256x1xf32>
    %26 = vector.broadcast %18 : vector<256x1xf32> to vector<256x128xf32>
    %27 = arith.mulf %26, %4 : vector<256x128xf32>
    %28 = arith.truncf %21 : vector<256x256xf32> to vector<256x256xbf16>
    %cst_11 = arith.constant dense<0.000000e+00> : vector<256x128xf32>
    %29 = tpu.matmul %28, %12, %cst_11 {dimension_numbers = #tpu.dot_dimension_numbers<[1], [0], [0], [1], [0, 0, 1, 1], [], []>} : vector<256x256xbf16>, vector<256x128xbf16>, vector<256x128xf32> -> vector<256x128xf32>
    %30 = arith.addf %27, %29 : vector<256x128xf32>
    %c1_i32 = arith.constant 1 : i32
    %31 = tpu.reciprocal %25 {approx = true} : vector<256x1xf32> -> vector<256x1xf32>
    %32 = vector.broadcast %31 : vector<256x1xf32> to vector<256x128xf32>
    %33 = arith.mulf %30, %32 : vector<256x128xf32>
    %c0_12 = arith.constant 0 : index
    %c0_13 = arith.constant 0 : index
    %34 = vector.load %arg6[%c0_12, %c0_13] : memref<64x128xbf16, #tpu.memory_space<vmem>>, vector<64x128xbf16>
    %35 = arith.truncf %33 : vector<256x128xf32> to vector<256x128xbf16>
    %cst_14 = arith.constant dense<0.000000e+00> : vector<64x256xf32>
    %36 = tpu.matmul %34, %35, %cst_14 {dimension_numbers = #tpu.dot_dimension_numbers<[1], [1], [0], [0], [0, 0, 1, 0], [], []>} : vector<64x128xbf16>, vector<256x128xbf16>, vector<64x256xf32> -> vector<64x256xf32>
    %c0_15 = arith.constant 0 : index
    %c0_16 = arith.constant 0 : index
    %37 = vector.load %arg7[%c0_15, %c0_16] : memref<64x1xf32, #tpu.memory_space<vmem>>, vector<64x1xf32>
    %38 = vector.broadcast %37 : vector<64x1xf32> to vector<64x256xf32>
    %39 = arith.addf %36, %38 : vector<64x256xf32>
    %c0_17 = arith.constant 0 : index
    %c0_18 = arith.constant 0 : index
    %c0_19 = arith.constant 0 : index
    %40 = vector.load %arg5[%c0_17, %c0_18, %c0_19] : memref<1x64x256xf32, #tpu.memory_space<vmem>>, vector<1x64x256xf32>
    %41 = vector.shape_cast %40 : vector<1x64x256xf32> to vector<64x256xf32>
    %42 = arith.addf %39, %41 : vector<64x256xf32>
    %c0_20 = arith.constant 0 : index
    %c0_21 = arith.constant 0 : index
    %c0_22 = arith.constant 0 : index
    %43 = vector.load %arg8[%c0_20, %c0_21, %c0_22] : memref<1x64x256xf32, #tpu.memory_space<vmem>>, vector<1x64x256xf32>
    %44 = vector.shape_cast %43 : vector<1x64x256xf32> to vector<64x256xf32>
    %45 = vector.shape_cast %42 : vector<64x256xf32> to vector<1x64x256xf32>
    tpu.vector_store %arg8[%c0_20, %c0_21, %c0_22], %45 {strides = array<i32>} : memref<1x64x256xf32, #tpu.memory_space<vmem>>, vector<1x64x256xf32>,
    return
  }
  func.func @transform_0(%arg0: i32, %arg1: i32) -> (i32, i32, i32) {
    %c0_i32 = arith.constant 0 : i32
    %c0_i32_0 = arith.constant 0 : i32
    return %arg0, %arg1, %c0_i32 : i32, i32, i32
  }
  func.func @transform_1(%arg0: i32, %arg1: i32) -> (i32, i32, i32) {
    %c0_i32 = arith.constant 0 : i32
    %c1_i32 = arith.constant 1 : i32
    %c0_i32_0 = arith.constant 0 : i32
    return %arg0, %c0_i32, %c1_i32 : i32, i32, i32
  }
  func.func @transform_2(%arg0: i32, %arg1: i32) -> (i32, i32, i32) {
    %c0_i32 = arith.constant 0 : i32
    %c2_i32 = arith.constant 2 : i32
    %c0_i32_0 = arith.constant 0 : i32
    return %arg0, %c0_i32, %c2_i32 : i32, i32, i32
  }
  func.func @transform_3(%arg0: i32, %arg1: i32) -> (i32, i32, i32) {
    %c0_i32 = arith.constant 0 : i32
    %c0_i32_0 = arith.constant 0 : i32
    return %arg0, %c0_i32, %arg1 : i32, i32, i32
  }
  func.func @transform_4(%arg0: i32, %arg1: i32) -> (i32, i32) {
    %c0_i32 = arith.constant 0 : i32
    %c0_i32_0 = arith.constant 0 : i32
    %c0_i32_1 = arith.constant 0 : i32
    return %c0_i32, %c0_i32_0 : i32, i32
  }
  func.func @transform_5(%arg0: i32, %arg1: i32) -> (i32, i32) {
    %c0_i32 = arith.constant 0 : i32
    %c0_i32_0 = arith.constant 0 : i32
    %c0_i32_1 = arith.constant 0 : i32
    return %c0_i32, %c0_i32_0 : i32, i32
  }
  func.func @transform_6(%arg0: i32, %arg1: i32) -> (i32, i32, i32) {
    %c0_i32 = arith.constant 0 : i32
    %c0_i32_0 = arith.constant 0 : i32
    return %arg0, %c0_i32, %arg1 : i32, i32, i32
  }
}

</mosaic_0001>

<llo_original>
// kernel: vae_attention.3
$region0: #{vae_attention.3}
  #allocation0 [shape = 'u32[]', space=smem, size = 0x4, offset = 0x4, fixed_abs, tag = 'smem constant byte address 0x4 - core index']
  #allocation1 [shape = 'u32[144,128]{1,0:T(1,128)}', space=vmem, size = 0x12000, scoped, tag = 'internal scratch']
  %s0 = inlined_call_operand.vmem [shape: bf16[2,256,384], index: 0, kind: input, shape index: {}, may-alias: {0,1,2}]
  %s1 = inlined_call_operand.vmem [shape: bf16[2,256,384], index: 1, kind: input, shape index: {}, may-alias: {0,1,2}]
  %s2 = inlined_call_operand.vmem [shape: bf16[2,256,384], index: 2, kind: input, shape index: {}, may-alias: {0,1,2}]
  %s3 = inlined_call_operand.vmem [shape: f32[2,64,256], index: 3, kind: input, shape index: {}]
  %s4 = inlined_call_operand.vmem [shape: bf16[64,128], index: 4, kind: input, shape index: {}]
  %s5 = inlined_call_operand.vmem [shape: f32[64,1], index: 5, kind: input, shape index: {}]
  %s6 = inlined_call_operand.vmem [shape: f32[2,64,256], index: 6, kind: output, shape index: {}]
  %s7 = sld [smem:[#allocation0]]
  $region180: #{vae_attention.3} parent=0
    _
  %s9 = ssub.s32 1, %s7
  %s10 = scalar_select 0, %s9, %s7
  $region1: #{vae_attention.3} parent=0
    #allocation2 [shape = 'u8[131072]{0}', space=vmem, size = 0x20000, scoped, tag = 'input window, operand 0']
    #allocation3 [shape = 'u8[131072]{0}', space=vmem, size = 0x20000, scoped, tag = 'input window, operand 1']
    #allocation4 [shape = 'u8[131072]{0}', space=vmem, size = 0x20000, scoped, tag = 'input window, operand 2']
    loop: start=0, step=1, limit=4
    $region2: #{vae_attention.3} parent=1 // loop_pre_header
      _
    $region3: #{vae_attention.3} parent=1 // loop_header
      %s12 = sphi 0, %s16
      %p13 = scmp.ge.s32.totalorder %s12, 4
      %s19 = sphi 0, %s31
      %s20 = sphi 0, %s27
      %s21 = sphi 0, %s19
      %s22 = sphi 0, %s20
      %s23 = sphi 0, %s21
      %s24 = sphi 0, %s22
      %s36 = sphi 0, %s38
      %s39 = sphi 0, %s36
      %s40 = sphi 0, %s39
      %s56 = sphi 0, %s40
      %s62 = sphi 0, %s64
      %s65 = sphi 0, %s62
      %s66 = sphi 0, %s65
      %s82 = sphi 0, %s66
      %s88 = sphi 0, %s90
      %s91 = sphi 0, %s88
      %s92 = sphi 0, %s91
      %s108 = sphi 0, %s92
      %s116 = sphi 0, %s118
      %s119 = sphi 0, %s116
      %s120 = sphi 0, %s119
      %s136 = sphi 0, %s120
      %s140 = sphi 0, %s140
      %s142 = sphi 0, %s140
      %s143 = sphi 0, %s142
      %s157 = sphi 0, %s143
      %s161 = sphi 0, %s161
      %s163 = sphi 0, %s161
      %s164 = sphi 0, %s163
      %s178 = sphi 0, %s164
      %s186 = sphi 0, %s188
      %s189 = sphi 0, %s186
      %s190 = sphi 0, %s189
      %s206 = sphi 0, %s190
    $region4: #{vae_attention.3} parent=1 // loop_header_branch
      %15 = sbr.rel (%p13) target = $region8
    $region5: #{vae_attention.3} parent=1 // loop_body
      %s17 = ssub.s32 %s12, 1
      %s18 = ssub.s32 %s12, 2
      %s25 = sadd.s32 1, %s20
      %p26 = scmp.ge.s32.totalorder %s25, 1
      %s27 = scalar_select %p26, 0, %s25
      %s28 = sadd.s32 1, %s19
      %s29 = scalar_select %p26, %s28, %s19
      %p30 = scmp.ge.s32.totalorder %s29, 2
      %s31 = scalar_select %p30, 0, %s29
      %s32 = ssub.s32 %s19, %s31
      %s33 = ssub.s32 %s20, %s27
      %s34 = sor.u32 %s32, %s33
      %p35 = scmp.eq.s32.totalorder %s34, 0
      %s37 = sadd.s32 %s36, 1
      %s38 = scalar_select %p35, %s36, %s37
      %p41 = pneg %p35
      %p42 = scmp.eq.s32.totalorder %s12, 1
      %p43 = por %p41, %p42
      %p44 = scmp.ne.s32.totalorder %s36, %s39
      %p45 = scmp.eq.s32.totalorder %s12, 0
      %p46 = por %p44, %p45
      %p47 = scmp.ne.s32.totalorder %s36, %s39
      %p48 = scmp.eq.s32.totalorder %s17, 1
      %p49 = por %p47, %p48
      %p50 = scmp.ne.s32.totalorder %s39, %s40
      %p51 = scmp.eq.s32.totalorder %s17, 0
      %p52 = por %p50, %p51
      %p53 = scmp.ne.s32.totalorder %s39, %s40
      %p54 = scmp.eq.s32.totalorder %s18, 1
      %p55 = por %p53, %p54
      %p57 = scmp.ne.s32.totalorder %s40, %s56
      %p58 = scmp.eq.s32.totalorder %s18, 0
      %p59 = por %p57, %p58
      %s60 = ssub.s32 %s19, %s31
      %p61 = scmp.eq.s32.totalorder %s60, 0
      %s63 = sadd.s32 %s62, 1
      %s64 = scalar_select %p61, %s62, %s63
      %p67 = pneg %p61
      %p68 = scmp.eq.s32.totalorder %s12, 1
      %p69 = por %p67, %p68
      %p70 = scmp.ne.s32.totalorder %s62, %s65
      %p71 = scmp.eq.s32.totalorder %s12, 0
      %p72 = por %p70, %p71
      %p73 = scmp.ne.s32.totalorder %s62, %s65
      %p74 = scmp.eq.s32.totalorder %s17, 1
      %p75 = por %p73, %p74
      %p76 = scmp.ne.s32.totalorder %s65, %s66
      %p77 = scmp.eq.s32.totalorder %s17, 0
      %p78 = por %p76, %p77
      %p79 = scmp.ne.s32.totalorder %s65, %s66
      %p80 = scmp.eq.s32.totalorder %s18, 1
      %p81 = por %p79, %p80
      %p83 = scmp.ne.s32.totalorder %s66, %s82
      %p84 = scmp.eq.s32.totalorder %s18, 0
      %p85 = por %p83, %p84
      %s86 = ssub.s32 %s19, %s31
      %p87 = scmp.eq.s32.totalorder %s86, 0
      %s89 = sadd.s32 %s88, 1
      %s90 = scalar_select %p87, %s88, %s89
      %p93 = pneg %p87
      %p94 = scmp.eq.s32.totalorder %s12, 1
      %p95 = por %p93, %p94
      %p96 = scmp.ne.s32.totalorder %s88, %s91
      %p97 = scmp.eq.s32.totalorder %s12, 0
      %p98 = por %p96, %p97
      %p99 = scmp.ne.s32.totalorder %s88, %s91
      %p100 = scmp.eq.s32.totalorder %s17, 1
      %p101 = por %p99, %p100
      %p102 = scmp.ne.s32.totalorder %s91, %s92
      %p103 = scmp.eq.s32.totalorder %s17, 0
      %p104 = por %p102, %p103
      %p105 = scmp.ne.s32.totalorder %s91, %s92
      %p106 = scmp.eq.s32.totalorder %s18, 1
      %p107 = por %p105, %p106
      %p109 = scmp.ne.s32.totalorder %s92, %s108
      %p110 = scmp.eq.s32.totalorder %s18, 0
      %p111 = por %p109, %p110
      %s112 = ssub.s32 %s19, %s31
      %s113 = ssub.s32 %s20, %s27
      %s114 = sor.u32 %s112, %s113
      %p115 = scmp.eq.s32.totalorder %s114, 0
      %s117 = sadd.s32 %s116, 1
      %s118 = scalar_select %p115, %s116, %s117
      %p121 = pneg %p115
      %p122 = scmp.eq.s32.totalorder %s12, 1
      %p123 = por %p121, %p122
      %p124 = scmp.ne.s32.totalorder %s116, %s119
      %p125 = scmp.eq.s32.totalorder %s12, 0
      %p126 = por %p124, %p125
      %p127 = scmp.ne.s32.totalorder %s116, %s119
      %p128 = scmp.eq.s32.totalorder %s17, 1
      %p129 = por %p127, %p128
      %p130 = scmp.ne.s32.totalorder %s119, %s120
      %p131 = scmp.eq.s32.totalorder %s17, 0
      %p132 = por %p130, %p131
      %p133 = scmp.ne.s32.totalorder %s119, %s120
      %p134 = scmp.eq.s32.totalorder %s18, 1
      %p135 = por %p133, %p134
      %p137 = scmp.ne.s32.totalorder %s120, %s136
      %p138 = scmp.eq.s32.totalorder %s18, 0
      %p139 = por %p137, %p138
      %s141 = sadd.s32 %s140, 1
      %p144 = scmp.eq.s32.totalorder %s12, 1
      %p145 = scmp.ne.s32.totalorder %s140, %s142
      %p146 = scmp.eq.s32.totalorder %s12, 0
      %p147 = por %p145, %p146
      %p148 = scmp.ne.s32.totalorder %s140, %s142
      %p149 = scmp.eq.s32.totalorder %s17, 1
      %p150 = por %p148, %p149
      %p151 = scmp.ne.s32.totalorder %s142, %s143
      %p152 = scmp.eq.s32.totalorder %s17, 0
      %p153 = por %p151, %p152
      %p154 = scmp.ne.s32.totalorder %s142, %s143
      %p155 = scmp.eq.s32.totalorder %s18, 1
      %p156 = por %p154, %p155
      %p158 = scmp.ne.s32.totalorder %s143, %s157
      %p159 = scmp.eq.s32.totalorder %s18, 0
      %p160 = por %p158, %p159
      %s162 = sadd.s32 %s161, 1
      %p165 = scmp.eq.s32.totalorder %s12, 1
      %p166 = scmp.ne.s32.totalorder %s161, %s163
      %p167 = scmp.eq.s32.totalorder %s12, 0
      %p168 = por %p166, %p167
      %p169 = scmp.ne.s32.totalorder %s161, %s163
      %p170 = scmp.eq.s32.totalorder %s17, 1
      %p171 = por %p169, %p170
      %p172 = scmp.ne.s32.totalorder %s163, %s164
      %p173 = scmp.eq.s32.totalorder %s17, 0
      %p174 = por %p172, %p173
      %p175 = scmp.ne.s32.totalorder %s163, %s164
      %p176 = scmp.eq.s32.totalorder %s18, 1
      %p177 = por %p175, %p176
      %p179 = scmp.ne.s32.totalorder %s164, %s178
      %p180 = scmp.eq.s32.totalorder %s18, 0
      %p181 = por %p179, %p180
      %s182 = ssub.s32 %s19, %s31
      %s183 = ssub.s32 %s20, %s27
      %s184 = sor.u32 %s182, %s183
      %p185 = scmp.eq.s32.totalorder %s184, 0
      %s187 = sadd.s32 %s186, 1
      %s188 = scalar_select %p185, %s186, %s187
      %p191 = pneg %p185
      %p192 = scmp.eq.s32.totalorder %s12, 1
      %p193 = por %p191, %p192
      %p194 = scmp.ne.s32.totalorder %s186, %s189
      %p195 = scmp.eq.s32.totalorder %s12, 0
      %p196 = por %p194, %p195
      %p197 = scmp.ne.s32.totalorder %s186, %s189
      %p198 = scmp.eq.s32.totalorder %s17, 1
      %p199 = por %p197, %p198
      %p200 = scmp.ne.s32.totalorder %s189, %s190
      %p201 = scmp.eq.s32.totalorder %s17, 0
      %p202 = por %p200, %p201
      %p203 = scmp.ne.s32.totalorder %s189, %s190
      %p204 = scmp.eq.s32.totalorder %s18, 1
      %p205 = por %p203, %p204
      %p207 = scmp.ne.s32.totalorder %s190, %s206
      %p208 = scmp.eq.s32.totalorder %s18, 0
      %p209 = por %p207, %p208
      %p210 = scmp.le.s32.totalorder 1, %s12
      %p211 = scmp.lt.s32.totalorder %s12, 3
      %p212 = pnand %p210, %p211
      %p213 = pneg %p212
      // Predicated region
      $region9: #{vae_attention.3} parent=5 // pred_check
        _
      $region10: #{vae_attention.3} parent=5 // pred_check_branch
        %215 = sbr.rel (%p212) target = $region12
      $region11: #{vae_attention.3} parent=5 // pred_region
        %s216 = ssub.s32 %s12, 1
        // Predicated region
        $region13: #{vae_attention.3} parent=11 // pred_check
          %p217 = pneg %p153
        $region14: #{vae_attention.3} parent=11 // pred_check_branch
          %219 = sbr.rel (%p217) target = $region16
        $region15: #{vae_attention.3} parent=11 // pred_region
          _
        $region16: #{vae_attention.3} parent=11 // pred_fallthru
          _
        // Predicated region
        $region17: #{vae_attention.3} parent=11 // pred_check
          %p220 = pneg %p174
        $region18: #{vae_attention.3} parent=11 // pred_check_branch
          %222 = sbr.rel (%p220) target = $region20
        $region19: #{vae_attention.3} parent=11 // pred_region
          _
        $region20: #{vae_attention.3} parent=11 // pred_fallthru
          _
      $region12: #{vae_attention.3} parent=5 // pred_fallthru
        _
      %p223 = scmp.lt.s32.totalorder %s12, 2
      // Predicated region
      $region21: #{vae_attention.3} parent=5 // pred_check
        %p224 = pneg %p223
      $region22: #{vae_attention.3} parent=5 // pred_check_branch
        %226 = sbr.rel (%p224) target = $region24
      $region23: #{vae_attention.3} parent=5 // pred_region
        // Predicated region
        $region25: #{vae_attention.3} parent=23 // pred_check
          %p227 = pneg %p46
        $region26: #{vae_attention.3} parent=23 // pred_check_branch
          %229 = sbr.rel (%p227) target = $region28
        $region27: #{vae_attention.3} parent=23 // pred_region
          %s230 = sand.u32 %s36, 1
          %s231 = sand.u32 %s36, 1
          %s232 = smul.addr %s231, 128
          %s233 = scalar_lea.vmem [#allocation2], %s232
          %s234 = smul.u32 32, %s20
          %s235 = smul.addr %s234, 3
          %s236 = smul.addr %s19, 96
          %s237 = sadd.s32 %s235, %s236
          %s238 = smul.addr %s237, 4
          %s239 = scalar_lea.vmem %s0, %s238
          // Predicated region
          $region29: #{vae_attention.3} parent=27 // pred_check
            _
          $region30: #{vae_attention.3} parent=27 // pred_check_branch
            %241 = sbr.rel (0) target = $region32
          $region31: #{vae_attention.3} parent=27 // pred_region
            // Predicated region
            $region33: #{vae_attention.3} parent=31 // pred_check
              _
            $region34: #{vae_attention.3} parent=31 // pred_check_branch
              %243 = sbr.rel target = $region36
            $region35: #{vae_attention.3} parent=31 // pred_region
              // Predicated region
              $region48: #{vae_attention.3} parent=35 // pred_check
                _
              $region49: #{vae_attention.3} parent=35 // pred_check_branch
                %320 = sbr.rel (0) target = $region51
              $region50: #{vae_attention.3} parent=35 // pred_region
                loop: start=0, step=1, limit=1
                $region52: #{vae_attention.3} parent=50 // loop_pre_header
                  _
                $region53: #{vae_attention.3} parent=50 // loop_header
                  %s322 = sphi 0, %s326
                  %p323 = scmp.ge.s32.totalorder %s322, 1
                  %s327 = sphi %s239, %s239
                  %s328 = sphi %s233, %s233
                $region54: #{vae_attention.3} parent=50 // loop_header_branch
                  %325 = sbr.rel (%p323) target = $region58
                $region55: #{vae_attention.3} parent=50 // loop_body
                  _
                $region56: #{vae_attention.3} parent=50 // loop_footer
                  %s326 = sadd.s32 1, %s322
                $region57: #{vae_attention.3} parent=50 // loop_footer_branch
                  %321 = sbr.rel target = $region53
                $region58: #{vae_attention.3} parent=50 // loop_exit
                  _
                loop: start=0, step=1, limit=1
                $region59: #{vae_attention.3} parent=50 // loop_pre_header
                  _
                $region60: #{vae_attention.3} parent=50 // loop_header
                  %s331 = sphi 0, %s335
                  %p332 = scmp.ge.s32.totalorder %s331, 1
                  %s336 = sphi %s239, %s239
                  %s337 = sphi %s233, %s233
                $region61: #{vae_attention.3} parent=50 // loop_header_branch
                  %334 = sbr.rel (%p332) target = $region65
                $region62: #{vae_attention.3} parent=50 // loop_body
                  %v338 = vld [vmem:[%s336] sm:$0xf]
                  %339 = vst [vmem:[%s337] sm:$0xf] %v338
                  %v340 = vld [vmem:[%s336 + $0xc] sm:$0xf]
                  %341 = vst [vmem:[%s337 + $0x4] sm:$0xf] %v340
                  %v342 = vld [vmem:[%s336 + $0x18] sm:$0xf]
                  %343 = vst [vmem:[%s337 + $0x8] sm:$0xf] %v342
                  %v344 = vld [vmem:[%s336 + $0x24] sm:$0xf]
                  %345 = vst [vmem:[%s337 + $0xc] sm:$0xf] %v344
                  %v346 = vld [vmem:[%s336 + $0x30] sm:$0xf]
                  %347 = vst [vmem:[%s337 + $0x10] sm:$0xf] %v346
                  %v348 = vld [vmem:[%s336 + $0x3c] sm:$0xf]
                  %349 = vst [vmem:[%s337 + $0x14] sm:$0xf] %v348
                  %v350 = vld [vmem:[%s336 + $0x48] sm:$0xf]
                  %351 = vst [vmem:[%s337 + $0x18] sm:$0xf] %v350
                  %v352 = vld [vmem:[%s336 + $0x54] sm:$0xf]
                  %353 = vst [vmem:[%s337 + $0x1c] sm:$0xf] %v352
                  %v354 = vld [vmem:[%s336 + $0x60] sm:$0xf]
                  %355 = vst [vmem:[%s337 + $0x20] sm:$0xf] %v354
                  %v356 = vld [vmem:[%s336 + $0x6c] sm:$0xf]
                  %357 = vst [vmem:[%s337 + $0x24] sm:$0xf] %v356
                  %v358 = vld [vmem:[%s336 + $0x78] sm:$0xf]
                  %359 = vst [vmem:[%s337 + $0x28] sm:$0xf] %v358
                  %v360 = vld [vmem:[%s336 + $0x84] sm:$0xf]
                  %361 = vst [vmem:[%s337 + $0x2c] sm:$0xf] %v360
                  %v362 = vld [vmem:[%s336 + $0x90] sm:$0xf]
                  %363 = vst [vmem:[%s337 + $0x30] sm:$0xf] %v362
                  %v364 = vld [vmem:[%s336 + $0x9c] sm:$0xf]
                  %365 = vst [vmem:[%s337 + $0x34] sm:$0xf] %v364
                  %v366 = vld [vmem:[%s336 + $0xa8] sm:$0xf]
                  %367 = vst [vmem:[%s337 + $0x38] sm:$0xf] %v366
                  %v368 = vld [vmem:[%s336 + $0xb4] sm:$0xf]
                  %369 = vst [vmem:[%s337 + $0x3c] sm:$0xf] %v368
                  %v370 = vld [vmem:[%s336 + $0xc0] sm:$0xf]
                  %371 = vst [vmem:[%s337 + $0x40] sm:$0xf] %v370
                  %v372 = vld [vmem:[%s336 + $0xcc] sm:$0xf]
                  %373 = vst [vmem:[%s337 + $0x44] sm:$0xf] %v372
                  %v374 = vld [vmem:[%s336 + $0xd8] sm:$0xf]
                  %375 = vst [vmem:[%s337 + $0x48] sm:$0xf] %v374
                  %v376 = vld [vmem:[%s336 + $0xe4] sm:$0xf]
                  %377 = vst [vmem:[%s337 + $0x4c] sm:$0xf] %v376
                  %v378 = vld [vmem:[%s336 + $0xf0] sm:$0xf]
                  %379 = vst [vmem:[%s337 + $0x50] sm:$0xf] %v378
                  %v380 = vld [vmem:[%s336 + $0xfc] sm:$0xf]
                  %381 = vst [vmem:[%s337 + $0x54] sm:$0xf] %v380
                  %v382 = vld [vmem:[%s336 + $0x108] sm:$0xf]
                  %383 = vst [vmem:[%s337 + $0x58] sm:$0xf] %v382
                  %v384 = vld [vmem:[%s336 + $0x114] sm:$0xf]
                  %385 = vst [vmem:[%s337 + $0x5c] sm:$0xf] %v384
                  %v386 = vld [vmem:[%s336 + $0x120] sm:$0xf]
                  %387 = vst [vmem:[%s337 + $0x60] sm:$0xf] %v386
                  %v388 = vld [vmem:[%s336 + $0x12c] sm:$0xf]
                  %389 = vst [vmem:[%s337 + $0x64] sm:$0xf] %v388
                  %v390 = vld [vmem:[%s336 + $0x138] sm:$0xf]
                  %391 = vst [vmem:[%s337 + $0x68] sm:$0xf] %v390
                  %v392 = vld [vmem:[%s336 + $0x144] sm:$0xf]
                  %393 = vst [vmem:[%s337 + $0x6c] sm:$0xf] %v392
                  %v394 = vld [vmem:[%s336 + $0x150] sm:$0xf]
                  %395 = vst [vmem:[%s337 + $0x70] sm:$0xf] %v394
                  %v396 = vld [vmem:[%s336 + $0x15c] sm:$0xf]
                  %397 = vst [vmem:[%s337 + $0x74] sm:$0xf] %v396
                  %v398 = vld [vmem:[%s336 + $0x168] sm:$0xf]
                  %399 = vst [vmem:[%s337 + $0x78] sm:$0xf] %v398
                  %v400 = vld [vmem:[%s336 + $0x174] sm:$0xf]
                  %401 = vst [vmem:[%s337 + $0x7c] sm:$0xf] %v400
                $region63: #{vae_attention.3} parent=50 // loop_footer
                  %s335 = sadd.s32 1, %s331
                $region64: #{vae_attention.3} parent=50 // loop_footer_branch
                  %330 = sbr.rel target = $region60
                $region65: #{vae_attention.3} parent=50 // loop_exit
                  _
              $region51: #{vae_attention.3} parent=35 // pred_fallthru
                _
            $region36: #{vae_attention.3} parent=31 // pred_fallthru
              _
            // Predicated region
            $region37: #{vae_attention.3} parent=31 // pred_check
              _
            $region38: #{vae_attention.3} parent=31 // pred_check_branch
              %245 = sbr.rel (0) target = $region40
            $region39: #{vae_attention.3} parent=31 // pred_region
              loop: start=0, step=1, limit=1
              $region41: #{vae_attention.3} parent=39 // loop_pre_header
                _
              $region42: #{vae_attention.3} parent=39 // loop_header
                %s248 = sphi 0, %s252
                %p249 = scmp.ge.s32.totalorder %s248, 1
                %s253 = sphi %s239, %s239
                %s254 = sphi %s233, %s233
              $region43: #{vae_attention.3} parent=39 // loop_header_branch
                %251 = sbr.rel (%p249) target = $region47
              $region44: #{vae_attention.3} parent=39 // loop_body
                %v255 = vld [vmem:[%s253] sm:$0xf]
                %256 = vst [vmem:[%s254] sm:$0xf] %v255
                %v257 = vld [vmem:[%s253 + $0xc] sm:$0xf]
                %258 = vst [vmem:[%s254 + $0x4] sm:$0xf] %v257
                %v259 = vld [vmem:[%s253 + $0x18] sm:$0xf]
                %260 = vst [vmem:[%s254 + $0x8] sm:$0xf] %v259
                %v261 = vld [vmem:[%s253 + $0x24] sm:$0xf]
                %262 = vst [vmem:[%s254 + $0xc] sm:$0xf] %v261
                %v263 = vld [vmem:[%s253 + $0x30] sm:$0xf]
                %264 = vst [vmem:[%s254 + $0x10] sm:$0xf] %v263
                %v265 = vld [vmem:[%s253 + $0x3c] sm:$0xf]
                %266 = vst [vmem:[%s254 + $0x14] sm:$0xf] %v265
                %v267 = vld [vmem:[%s253 + $0x48] sm:$0xf]
                %268 = vst [vmem:[%s254 + $0x18] sm:$0xf] %v267
                %v269 = vld [vmem:[%s253 + $0x54] sm:$0xf]
                %270 = vst [vmem:[%s254 + $0x1c] sm:$0xf] %v269
                %v271 = vld [vmem:[%s253 + $0x60] sm:$0xf]
                %272 = vst [vmem:[%s254 + $0x20] sm:$0xf] %v271
                %v273 = vld [vmem:[%s253 + $0x6c] sm:$0xf]
                %274 = vst [vmem:[%s254 + $0x24] sm:$0xf] %v273
                %v275 = vld [vmem:[%s253 + $0x78] sm:$0xf]
                %276 = vst [vmem:[%s254 + $0x28] sm:$0xf] %v275
                %v277 = vld [vmem:[%s253 + $0x84] sm:$0xf]
                %278 = vst [vmem:[%s254 + $0x2c] sm:$0xf] %v277
                %v279 = vld [vmem:[%s253 + $0x90] sm:$0xf]
                %280 = vst [vmem:[%s254 + $0x30] sm:$0xf] %v279
                %v281 = vld [vmem:[%s253 + $0x9c] sm:$0xf]
                %282 = vst [vmem:[%s254 + $0x34] sm:$0xf] %v281
                %v283 = vld [vmem:[%s253 + $0xa8] sm:$0xf]
                %284 = vst [vmem:[%s254 + $0x38] sm:$0xf] %v283
                %v285 = vld [vmem:[%s253 + $0xb4] sm:$0xf]
                %286 = vst [vmem:[%s254 + $0x3c] sm:$0xf] %v285
                %v287 = vld [vmem:[%s253 + $0xc0] sm:$0xf]
                %288 = vst [vmem:[%s254 + $0x40] sm:$0xf] %v287
                %v289 = vld [vmem:[%s253 + $0xcc] sm:$0xf]
                %290 = vst [vmem:[%s254 + $0x44] sm:$0xf] %v289
                %v291 = vld [vmem:[%s253 + $0xd8] sm:$0xf]
                %292 = vst [vmem:[%s254 + $0x48] sm:$0xf] %v291
                %v293 = vld [vmem:[%s253 + $0xe4] sm:$0xf]
                %294 = vst [vmem:[%s254 + $0x4c] sm:$0xf] %v293
                %v295 = vld [vmem:[%s253 + $0xf0] sm:$0xf]
                %296 = vst [vmem:[%s254 + $0x50] sm:$0xf] %v295
                %v297 = vld [vmem:[%s253 + $0xfc] sm:$0xf]
                %298 = vst [vmem:[%s254 + $0x54] sm:$0xf] %v297
                %v299 = vld [vmem:[%s253 + $0x108] sm:$0xf]
                %300 = vst [vmem:[%s254 + $0x58] sm:$0xf] %v299
                %v301 = vld [vmem:[%s253 + $0x114] sm:$0xf]
                %302 = vst [vmem:[%s254 + $0x5c] sm:$0xf] %v301
                %v303 = vld [vmem:[%s253 + $0x120] sm:$0xf]
                %304 = vst [vmem:[%s254 + $0x60] sm:$0xf] %v303
                %v305 = vld [vmem:[%s253 + $0x12c] sm:$0xf]
                %306 = vst [vmem:[%s254 + $0x64] sm:$0xf] %v305
                %v307 = vld [vmem:[%s253 + $0x138] sm:$0xf]
                %308 = vst [vmem:[%s254 + $0x68] sm:$0xf] %v307
                %v309 = vld [vmem:[%s253 + $0x144] sm:$0xf]
                %310 = vst [vmem:[%s254 + $0x6c] sm:$0xf] %v309
                %v311 = vld [vmem:[%s253 + $0x150] sm:$0xf]
                %312 = vst [vmem:[%s254 + $0x70] sm:$0xf] %v311
                %v313 = vld [vmem:[%s253 + $0x15c] sm:$0xf]
                %314 = vst [vmem:[%s254 + $0x74] sm:$0xf] %v313
                %v315 = vld [vmem:[%s253 + $0x168] sm:$0xf]
                %316 = vst [vmem:[%s254 + $0x78] sm:$0xf] %v315
                %v317 = vld [vmem:[%s253 + $0x174] sm:$0xf]
                %318 = vst [vmem:[%s254 + $0x7c] sm:$0xf] %v317
              $region45: #{vae_attention.3} parent=39 // loop_footer
                %s252 = sadd.s32 1, %s248
              $region46: #{vae_attention.3} parent=39 // loop_footer_branch
                %247 = sbr.rel target = $region42
              $region47: #{vae_attention.3} parent=39 // loop_exit
                _
            $region40: #{vae_attention.3} parent=31 // pred_fallthru
              _
          $region32: #{vae_attention.3} parent=27 // pred_fallthru
            _
          %402 = vnop
        $region28: #{vae_attention.3} parent=23 // pred_fallthru
          _
        // Predicated region
        $region66: #{vae_attention.3} parent=23 // pred_check
          %p403 = pneg %p72
        $region67: #{vae_attention.3} parent=23 // pred_check_branch
          %405 = sbr.rel (%p403) target = $region69
        $region68: #{vae_attention.3} parent=23 // pred_region
          %s406 = sand.u32 %s62, 1
          %s407 = sand.u32 %s62, 1
          %s408 = smul.addr %s407, 128
          %s409 = scalar_lea.vmem [#allocation3], %s408
          %s410 = smul.addr %s19, 96
          %s411 = sadd.s32 1, %s410
          %s412 = smul.addr %s411, 4
          %s413 = scalar_lea.vmem %s1, %s412
          // Predicated region
          $region70: #{vae_attention.3} parent=68 // pred_check
            _
          $region71: #{vae_attention.3} parent=68 // pred_check_branch
            %415 = sbr.rel (0) target = $region73
          $region72: #{vae_attention.3} parent=68 // pred_region
            // Predicated region
            $region74: #{vae_attention.3} parent=72 // pred_check
              _
            $region75: #{vae_attention.3} parent=72 // pred_check_branch
              %417 = sbr.rel target = $region77
            $region76: #{vae_attention.3} parent=72 // pred_region
              // Predicated region
              $region89: #{vae_attention.3} parent=76 // pred_check
                _
              $region90: #{vae_attention.3} parent=76 // pred_check_branch
                %494 = sbr.rel (0) target = $region92
              $region91: #{vae_attention.3} parent=76 // pred_region
                loop: start=0, step=1, limit=1
                $region93: #{vae_attention.3} parent=91 // loop_pre_header
                  _
                $region94: #{vae_attention.3} parent=91 // loop_header
                  %s496 = sphi 0, %s500
                  %p497 = scmp.ge.s32.totalorder %s496, 1
                  %s501 = sphi %s413, %s413
                  %s502 = sphi %s409, %s409
                $region95: #{vae_attention.3} parent=91 // loop_header_branch
                  %499 = sbr.rel (%p497) target = $region99
                $region96: #{vae_attention.3} parent=91 // loop_body
                  _
                $region97: #{vae_attention.3} parent=91 // loop_footer
                  %s500 = sadd.s32 1, %s496
                $region98: #{vae_attention.3} parent=91 // loop_footer_branch
                  %495 = sbr.rel target = $region94
                $region99: #{vae_attention.3} parent=91 // loop_exit
                  _
                loop: start=0, step=1, limit=1
                $region100: #{vae_attention.3} parent=91 // loop_pre_header
                  _
                $region101: #{vae_attention.3} parent=91 // loop_header
                  %s505 = sphi 0, %s509
                  %p506 = scmp.ge.s32.totalorder %s505, 1
                  %s510 = sphi %s413, %s413
                  %s511 = sphi %s409, %s409
                $region102: #{vae_attention.3} parent=91 // loop_header_branch
                  %508 = sbr.rel (%p506) target = $region106
                $region103: #{vae_attention.3} parent=91 // loop_body
                  %v512 = vld [vmem:[%s510] sm:$0xf]
                  %513 = vst [vmem:[%s511] sm:$0xf] %v512
                  %v514 = vld [vmem:[%s510 + $0xc] sm:$0xf]
                  %515 = vst [vmem:[%s511 + $0x4] sm:$0xf] %v514
                  %v516 = vld [vmem:[%s510 + $0x18] sm:$0xf]
                  %517 = vst [vmem:[%s511 + $0x8] sm:$0xf] %v516
                  %v518 = vld [vmem:[%s510 + $0x24] sm:$0xf]
                  %519 = vst [vmem:[%s511 + $0xc] sm:$0xf] %v518
                  %v520 = vld [vmem:[%s510 + $0x30] sm:$0xf]
                  %521 = vst [vmem:[%s511 + $0x10] sm:$0xf] %v520
                  %v522 = vld [vmem:[%s510 + $0x3c] sm:$0xf]
                  %523 = vst [vmem:[%s511 + $0x14] sm:$0xf] %v522
                  %v524 = vld [vmem:[%s510 + $0x48] sm:$0xf]
                  %525 = vst [vmem:[%s511 + $0x18] sm:$0xf] %v524
                  %v526 = vld [vmem:[%s510 + $0x54] sm:$0xf]
                  %527 = vst [vmem:[%s511 + $0x1c] sm:$0xf] %v526
                  %v528 = vld [vmem:[%s510 + $0x60] sm:$0xf]
                  %529 = vst [vmem:[%s511 + $0x20] sm:$0xf] %v528
                  %v530 = vld [vmem:[%s510 + $0x6c] sm:$0xf]
                  %531 = vst [vmem:[%s511 + $0x24] sm:$0xf] %v530
                  %v532 = vld [vmem:[%s510 + $0x78] sm:$0xf]
                  %533 = vst [vmem:[%s511 + $0x28] sm:$0xf] %v532
                  %v534 = vld [vmem:[%s510 + $0x84] sm:$0xf]
                  %535 = vst [vmem:[%s511 + $0x2c] sm:$0xf] %v534
                  %v536 = vld [vmem:[%s510 + $0x90] sm:$0xf]
                  %537 = vst [vmem:[%s511 + $0x30] sm:$0xf] %v536
                  %v538 = vld [vmem:[%s510 + $0x9c] sm:$0xf]
                  %539 = vst [vmem:[%s511 + $0x34] sm:$0xf] %v538
                  %v540 = vld [vmem:[%s510 + $0xa8] sm:$0xf]
                  %541 = vst [vmem:[%s511 + $0x38] sm:$0xf] %v540
                  %v542 = vld [vmem:[%s510 + $0xb4] sm:$0xf]
                  %543 = vst [vmem:[%s511 + $0x3c] sm:$0xf] %v542
                  %v544 = vld [vmem:[%s510 + $0xc0] sm:$0xf]
                  %545 = vst [vmem:[%s511 + $0x40] sm:$0xf] %v544
                  %v546 = vld [vmem:[%s510 + $0xcc] sm:$0xf]
                  %547 = vst [vmem:[%s511 + $0x44] sm:$0xf] %v546
                  %v548 = vld [vmem:[%s510 + $0xd8] sm:$0xf]
                  %549 = vst [vmem:[%s511 + $0x48] sm:$0xf] %v548
                  %v550 = vld [vmem:[%s510 + $0xe4] sm:$0xf]
                  %551 = vst [vmem:[%s511 + $0x4c] sm:$0xf] %v550
                  %v552 = vld [vmem:[%s510 + $0xf0] sm:$0xf]
                  %553 = vst [vmem:[%s511 + $0x50] sm:$0xf] %v552
                  %v554 = vld [vmem:[%s510 + $0xfc] sm:$0xf]
                  %555 = vst [vmem:[%s511 + $0x54] sm:$0xf] %v554
                  %v556 = vld [vmem:[%s510 + $0x108] sm:$0xf]
                  %557 = vst [vmem:[%s511 + $0x58] sm:$0xf] %v556
                  %v558 = vld [vmem:[%s510 + $0x114] sm:$0xf]
                  %559 = vst [vmem:[%s511 + $0x5c] sm:$0xf] %v558
                  %v560 = vld [vmem:[%s510 + $0x120] sm:$0xf]
                  %561 = vst [vmem:[%s511 + $0x60] sm:$0xf] %v560
                  %v562 = vld [vmem:[%s510 + $0x12c] sm:$0xf]
                  %563 = vst [vmem:[%s511 + $0x64] sm:$0xf] %v562
                  %v564 = vld [vmem:[%s510 + $0x138] sm:$0xf]
                  %565 = vst [vmem:[%s511 + $0x68] sm:$0xf] %v564
                  %v566 = vld [vmem:[%s510 + $0x144] sm:$0xf]
                  %567 = vst [vmem:[%s511 + $0x6c] sm:$0xf] %v566
                  %v568 = vld [vmem:[%s510 + $0x150] sm:$0xf]
                  %569 = vst [vmem:[%s511 + $0x70] sm:$0xf] %v568
                  %v570 = vld [vmem:[%s510 + $0x15c] sm:$0xf]
                  %571 = vst [vmem:[%s511 + $0x74] sm:$0xf] %v570
                  %v572 = vld [vmem:[%s510 + $0x168] sm:$0xf]
                  %573 = vst [vmem:[%s511 + $0x78] sm:$0xf] %v572
                  %v574 = vld [vmem:[%s510 + $0x174] sm:$0xf]
                  %575 = vst [vmem:[%s511 + $0x7c] sm:$0xf] %v574
                $region104: #{vae_attention.3} parent=91 // loop_footer
                  %s509 = sadd.s32 1, %s505
                $region105: #{vae_attention.3} parent=91 // loop_footer_branch
                  %504 = sbr.rel target = $region101
                $region106: #{vae_attention.3} parent=91 // loop_exit
                  _
              $region92: #{vae_attention.3} parent=76 // pred_fallthru
                _
            $region77: #{vae_attention.3} parent=72 // pred_fallthru
              _
            // Predicated region
            $region78: #{vae_attention.3} parent=72 // pred_check
              _
            $region79: #{vae_attention.3} parent=72 // pred_check_branch
              %419 = sbr.rel (0) target = $region81
            $region80: #{vae_attention.3} parent=72 // pred_region
              loop: start=0, step=1, limit=1
              $region82: #{vae_attention.3} parent=80 // loop_pre_header
                _
              $region83: #{vae_attention.3} parent=80 // loop_header
                %s422 = sphi 0, %s426
                %p423 = scmp.ge.s32.totalorder %s422, 1
                %s427 = sphi %s413, %s413
                %s428 = sphi %s409, %s409
              $region84: #{vae_attention.3} parent=80 // loop_header_branch
                %425 = sbr.rel (%p423) target = $region88
              $region85: #{vae_attention.3} parent=80 // loop_body
                %v429 = vld [vmem:[%s427] sm:$0xf]
                %430 = vst [vmem:[%s428] sm:$0xf] %v429
                %v431 = vld [vmem:[%s427 + $0xc] sm:$0xf]
                %432 = vst [vmem:[%s428 + $0x4] sm:$0xf] %v431
                %v433 = vld [vmem:[%s427 + $0x18] sm:$0xf]
                %434 = vst [vmem:[%s428 + $0x8] sm:$0xf] %v433
                %v435 = vld [vmem:[%s427 + $0x24] sm:$0xf]
                %436 = vst [vmem:[%s428 + $0xc] sm:$0xf] %v435
                %v437 = vld [vmem:[%s427 + $0x30] sm:$0xf]
                %438 = vst [vmem:[%s428 + $0x10] sm:$0xf] %v437
                %v439 = vld [vmem:[%s427 + $0x3c] sm:$0xf]
                %440 = vst [vmem:[%s428 + $0x14] sm:$0xf] %v439
                %v441 = vld [vmem:[%s427 + $0x48] sm:$0xf]
                %442 = vst [vmem:[%s428 + $0x18] sm:$0xf] %v441
                %v443 = vld [vmem:[%s427 + $0x54] sm:$0xf]
                %444 = vst [vmem:[%s428 + $0x1c] sm:$0xf] %v443
                %v445 = vld [vmem:[%s427 + $0x60] sm:$0xf]
                %446 = vst [vmem:[%s428 + $0x20] sm:$0xf] %v445
                %v447 = vld [vmem:[%s427 + $0x6c] sm:$0xf]
                %448 = vst [vmem:[%s428 + $0x24] sm:$0xf] %v447
                %v449 = vld [vmem:[%s427 + $0x78] sm:$0xf]
                %450 = vst [vmem:[%s428 + $0x28] sm:$0xf] %v449
                %v451 = vld [vmem:[%s427 + $0x84] sm:$0xf]
                %452 = vst [vmem:[%s428 + $0x2c] sm:$0xf] %v451
                %v453 = vld [vmem:[%s427 + $0x90] sm:$0xf]
                %454 = vst [vmem:[%s428 + $0x30] sm:$0xf] %v453
                %v455 = vld [vmem:[%s427 + $0x9c] sm:$0xf]
                %456 = vst [vmem:[%s428 + $0x34] sm:$0xf] %v455
                %v457 = vld [vmem:[%s427 + $0xa8] sm:$0xf]
                %458 = vst [vmem:[%s428 + $0x38] sm:$0xf] %v457
                %v459 = vld [vmem:[%s427 + $0xb4] sm:$0xf]
                %460 = vst [vmem:[%s428 + $0x3c] sm:$0xf] %v459
                %v461 = vld [vmem:[%s427 + $0xc0] sm:$0xf]
                %462 = vst [vmem:[%s428 + $0x40] sm:$0xf] %v461
                %v463 = vld [vmem:[%s427 + $0xcc] sm:$0xf]
                %464 = vst [vmem:[%s428 + $0x44] sm:$0xf] %v463
                %v465 = vld [vmem:[%s427 + $0xd8] sm:$0xf]
                %466 = vst [vmem:[%s428 + $0x48] sm:$0xf] %v465
                %v467 = vld [vmem:[%s427 + $0xe4] sm:$0xf]
                %468 = vst [vmem:[%s428 + $0x4c] sm:$0xf] %v467
                %v469 = vld [vmem:[%s427 + $0xf0] sm:$0xf]
                %470 = vst [vmem:[%s428 + $0x50] sm:$0xf] %v469
                %v471 = vld [vmem:[%s427 + $0xfc] sm:$0xf]
                %472 = vst [vmem:[%s428 + $0x54] sm:$0xf] %v471
                %v473 = vld [vmem:[%s427 + $0x108] sm:$0xf]
                %474 = vst [vmem:[%s428 + $0x58] sm:$0xf] %v473
                %v475 = vld [vmem:[%s427 + $0x114] sm:$0xf]
                %476 = vst [vmem:[%s428 + $0x5c] sm:$0xf] %v475
                %v477 = vld [vmem:[%s427 + $0x120] sm:$0xf]
                %478 = vst [vmem:[%s428 + $0x60] sm:$0xf] %v477
                %v479 = vld [vmem:[%s427 + $0x12c] sm:$0xf]
                %480 = vst [vmem:[%s428 + $0x64] sm:$0xf] %v479
                %v481 = vld [vmem:[%s427 + $0x138] sm:$0xf]
                %482 = vst [vmem:[%s428 + $0x68] sm:$0xf] %v481
                %v483 = vld [vmem:[%s427 + $0x144] sm:$0xf]
                %484 = vst [vmem:[%s428 + $0x6c] sm:$0xf] %v483
                %v485 = vld [vmem:[%s427 + $0x150] sm:$0xf]
                %486 = vst [vmem:[%s428 + $0x70] sm:$0xf] %v485
                %v487 = vld [vmem:[%s427 + $0x15c] sm:$0xf]
                %488 = vst [vmem:[%s428 + $0x74] sm:$0xf] %v487
                %v489 = vld [vmem:[%s427 + $0x168] sm:$0xf]
                %490 = vst [vmem:[%s428 + $0x78] sm:$0xf] %v489
                %v491 = vld [vmem:[%s427 + $0x174] sm:$0xf]
                %492 = vst [vmem:[%s428 + $0x7c] sm:$0xf] %v491
              $region86: #{vae_attention.3} parent=80 // loop_footer
                %s426 = sadd.s32 1, %s422
              $region87: #{vae_attention.3} parent=80 // loop_footer_branch
                %421 = sbr.rel target = $region83
              $region88: #{vae_attention.3} parent=80 // loop_exit
                _
            $region81: #{vae_attention.3} parent=72 // pred_fallthru
              _
          $region73: #{vae_attention.3} parent=68 // pred_fallthru
            _
          %576 = vnop
        $region69: #{vae_attention.3} parent=23 // pred_fallthru
          _
        // Predicated region
        $region107: #{vae_attention.3} parent=23 // pred_check
          %p577 = pneg %p98
        $region108: #{vae_attention.3} parent=23 // pred_check_branch
          %579 = sbr.rel (%p577) target = $region110
        $region109: #{vae_attention.3} parent=23 // pred_region
          %s580 = sand.u32 %s88, 1
          %s581 = sand.u32 %s88, 1
          %s582 = smul.addr %s581, 128
          %s583 = scalar_lea.vmem [#allocation4], %s582
          %s584 = smul.addr %s19, 96
          %s585 = sadd.s32 2, %s584
          %s586 = smul.addr %s585, 4
          %s587 = scalar_lea.vmem %s2, %s586
          // Predicated region
          $region111: #{vae_attention.3} parent=109 // pred_check
            _
          $region112: #{vae_attention.3} parent=109 // pred_check_branch
            %589 = sbr.rel (0) target = $region114
          $region113: #{vae_attention.3} parent=109 // pred_region
            // Predicated region
            $region115: #{vae_attention.3} parent=113 // pred_check
              _
            $region116: #{vae_attention.3} parent=113 // pred_check_branch
              %591 = sbr.rel target = $region118
            $region117: #{vae_attention.3} parent=113 // pred_region
              // Predicated region
              $region130: #{vae_attention.3} parent=117 // pred_check
                _
              $region131: #{vae_attention.3} parent=117 // pred_check_branch
                %668 = sbr.rel (0) target = $region133
              $region132: #{vae_attention.3} parent=117 // pred_region
                loop: start=0, step=1, limit=1
                $region134: #{vae_attention.3} parent=132 // loop_pre_header
                  _
                $region135: #{vae_attention.3} parent=132 // loop_header
                  %s670 = sphi 0, %s674
                  %p671 = scmp.ge.s32.totalorder %s670, 1
                  %s675 = sphi %s587, %s587
                  %s676 = sphi %s583, %s583
                $region136: #{vae_attention.3} parent=132 // loop_header_branch
                  %673 = sbr.rel (%p671) target = $region140
                $region137: #{vae_attention.3} parent=132 // loop_body
                  _
                $region138: #{vae_attention.3} parent=132 // loop_footer
                  %s674 = sadd.s32 1, %s670
                $region139: #{vae_attention.3} parent=132 // loop_footer_branch
                  %669 = sbr.rel target = $region135
                $region140: #{vae_attention.3} parent=132 // loop_exit
                  _
                loop: start=0, step=1, limit=1
                $region141: #{vae_attention.3} parent=132 // loop_pre_header
                  _
                $region142: #{vae_attention.3} parent=132 // loop_header
                  %s679 = sphi 0, %s683
                  %p680 = scmp.ge.s32.totalorder %s679, 1
                  %s684 = sphi %s587, %s587
                  %s685 = sphi %s583, %s583
                $region143: #{vae_attention.3} parent=132 // loop_header_branch
                  %682 = sbr.rel (%p680) target = $region147
                $region144: #{vae_attention.3} parent=132 // loop_body
                  %v686 = vld [vmem:[%s684] sm:$0xf]
                  %687 = vst [vmem:[%s685] sm:$0xf] %v686
                  %v688 = vld [vmem:[%s684 + $0xc] sm:$0xf]
                  %689 = vst [vmem:[%s685 + $0x4] sm:$0xf] %v688
                  %v690 = vld [vmem:[%s684 + $0x18] sm:$0xf]
                  %691 = vst [vmem:[%s685 + $0x8] sm:$0xf] %v690
                  %v692 = vld [vmem:[%s684 + $0x24] sm:$0xf]
                  %693 = vst [vmem:[%s685 + $0xc] sm:$0xf] %v692
                  %v694 = vld [vmem:[%s684 + $0x30] sm:$0xf]
                  %695 = vst [vmem:[%s685 + $0x10] sm:$0xf] %v694
                  %v696 = vld [vmem:[%s684 + $0x3c] sm:$0xf]
                  %697 = vst [vmem:[%s685 + $0x14] sm:$0xf] %v696
                  %v698 = vld [vmem:[%s684 + $0x48] sm:$0xf]
                  %699 = vst [vmem:[%s685 + $0x18] sm:$0xf] %v698
                  %v700 = vld [vmem:[%s684 + $0x54] sm:$0xf]
                  %701 = vst [vmem:[%s685 + $0x1c] sm:$0xf] %v700
                  %v702 = vld [vmem:[%s684 + $0x60] sm:$0xf]
                  %703 = vst [vmem:[%s685 + $0x20] sm:$0xf] %v702
                  %v704 = vld [vmem:[%s684 + $0x6c] sm:$0xf]
                  %705 = vst [vmem:[%s685 + $0x24] sm:$0xf] %v704
                  %v706 = vld [vmem:[%s684 + $0x78] sm:$0xf]
                  %707 = vst [vmem:[%s685 + $0x28] sm:$0xf] %v706
                  %v708 = vld [vmem:[%s684 + $0x84] sm:$0xf]
                  %709 = vst [vmem:[%s685 + $0x2c] sm:$0xf] %v708
                  %v710 = vld [vmem:[%s684 + $0x90] sm:$0xf]
                  %711 = vst [vmem:[%s685 + $0x30] sm:$0xf] %v710
                  %v712 = vld [vmem:[%s684 + $0x9c] sm:$0xf]
                  %713 = vst [vmem:[%s685 + $0x34] sm:$0xf] %v712
                  %v714 = vld [vmem:[%s684 + $0xa8] sm:$0xf]
                  %715 = vst [vmem:[%s685 + $0x38] sm:$0xf] %v714
                  %v716 = vld [vmem:[%s684 + $0xb4] sm:$0xf]
                  %717 = vst [vmem:[%s685 + $0x3c] sm:$0xf] %v716
                  %v718 = vld [vmem:[%s684 + $0xc0] sm:$0xf]
                  %719 = vst [vmem:[%s685 + $0x40] sm:$0xf] %v718
                  %v720 = vld [vmem:[%s684 + $0xcc] sm:$0xf]
                  %721 = vst [vmem:[%s685 + $0x44] sm:$0xf] %v720
                  %v722 = vld [vmem:[%s684 + $0xd8] sm:$0xf]
                  %723 = vst [vmem:[%s685 + $0x48] sm:$0xf] %v722
                  %v724 = vld [vmem:[%s684 + $0xe4] sm:$0xf]
                  %725 = vst [vmem:[%s685 + $0x4c] sm:$0xf] %v724
                  %v726 = vld [vmem:[%s684 + $0xf0] sm:$0xf]
                  %727 = vst [vmem:[%s685 + $0x50] sm:$0xf] %v726
                  %v728 = vld [vmem:[%s684 + $0xfc] sm:$0xf]
                  %729 = vst [vmem:[%s685 + $0x54] sm:$0xf] %v728
                  %v730 = vld [vmem:[%s684 + $0x108] sm:$0xf]
                  %731 = vst [vmem:[%s685 + $0x58] sm:$0xf] %v730
                  %v732 = vld [vmem:[%s684 + $0x114] sm:$0xf]
                  %733 = vst [vmem:[%s685 + $0x5c] sm:$0xf] %v732
                  %v734 = vld [vmem:[%s684 + $0x120] sm:$0xf]
                  %735 = vst [vmem:[%s685 + $0x60] sm:$0xf] %v734
                  %v736 = vld [vmem:[%s684 + $0x12c] sm:$0xf]
                  %737 = vst [vmem:[%s685 + $0x64] sm:$0xf] %v736
                  %v738 = vld [vmem:[%s684 + $0x138] sm:$0xf]
                  %739 = vst [vmem:[%s685 + $0x68] sm:$0xf] %v738
                  %v740 = vld [vmem:[%s684 + $0x144] sm:$0xf]
                  %741 = vst [vmem:[%s685 + $0x6c] sm:$0xf] %v740
                  %v742 = vld [vmem:[%s684 + $0x150] sm:$0xf]
                  %743 = vst [vmem:[%s685 + $0x70] sm:$0xf] %v742
                  %v744 = vld [vmem:[%s684 + $0x15c] sm:$0xf]
                  %745 = vst [vmem:[%s685 + $0x74] sm:$0xf] %v744
                  %v746 = vld [vmem:[%s684 + $0x168] sm:$0xf]
                  %747 = vst [vmem:[%s685 + $0x78] sm:$0xf] %v746
                  %v748 = vld [vmem:[%s684 + $0x174] sm:$0xf]
                  %749 = vst [vmem:[%s685 + $0x7c] sm:$0xf] %v748
                $region145: #{vae_attention.3} parent=132 // loop_footer
                  %s683 = sadd.s32 1, %s679
                $region146: #{vae_attention.3} parent=132 // loop_footer_branch
                  %678 = sbr.rel target = $region142
                $region147: #{vae_attention.3} parent=132 // loop_exit
                  _
              $region133: #{vae_attention.3} parent=117 // pred_fallthru
                _
            $region118: #{vae_attention.3} parent=113 // pred_fallthru
              _
            // Predicated region
            $region119: #{vae_attention.3} parent=113 // pred_check
              _
            $region120: #{vae_attention.3} parent=113 // pred_check_branch
              %593 = sbr.rel (0) target = $region122
            $region121: #{vae_attention.3} parent=113 // pred_region
              loop: start=0, step=1, limit=1
              $region123: #{vae_attention.3} parent=121 // loop_pre_header
                _
              $region124: #{vae_attention.3} parent=121 // loop_header
                %s596 = sphi 0, %s600
                %p597 = scmp.ge.s32.totalorder %s596, 1
                %s601 = sphi %s587, %s587
                %s602 = sphi %s583, %s583
              $region125: #{vae_attention.3} parent=121 // loop_header_branch
                %599 = sbr.rel (%p597) target = $region129
              $region126: #{vae_attention.3} parent=121 // loop_body
                %v603 = vld [vmem:[%s601] sm:$0xf]
                %604 = vst [vmem:[%s602] sm:$0xf] %v603
                %v605 = vld [vmem:[%s601 + $0xc] sm:$0xf]
                %606 = vst [vmem:[%s602 + $0x4] sm:$0xf] %v605
                %v607 = vld [vmem:[%s601 + $0x18] sm:$0xf]
                %608 = vst [vmem:[%s602 + $0x8] sm:$0xf] %v607
                %v609 = vld [vmem:[%s601 + $0x24] sm:$0xf]
                %610 = vst [vmem:[%s602 + $0xc] sm:$0xf] %v609
                %v611 = vld [vmem:[%s601 + $0x30] sm:$0xf]
                %612 = vst [vmem:[%s602 + $0x10] sm:$0xf] %v611
                %v613 = vld [vmem:[%s601 + $0x3c] sm:$0xf]
                %614 = vst [vmem:[%s602 + $0x14] sm:$0xf] %v613
                %v615 = vld [vmem:[%s601 + $0x48] sm:$0xf]
                %616 = vst [vmem:[%s602 + $0x18] sm:$0xf] %v615
                %v617 = vld [vmem:[%s601 + $0x54] sm:$0xf]
                %618 = vst [vmem:[%s602 + $0x1c] sm:$0xf] %v617
                %v619 = vld [vmem:[%s601 + $0x60] sm:$0xf]
                %620 = vst [vmem:[%s602 + $0x20] sm:$0xf] %v619
                %v621 = vld [vmem:[%s601 + $0x6c] sm:$0xf]
                %622 = vst [vmem:[%s602 + $0x24] sm:$0xf] %v621
                %v623 = vld [vmem:[%s601 + $0x78] sm:$0xf]
                %624 = vst [vmem:[%s602 + $0x28] sm:$0xf] %v623
                %v625 = vld [vmem:[%s601 + $0x84] sm:$0xf]
                %626 = vst [vmem:[%s602 + $0x2c] sm:$0xf] %v625
                %v627 = vld [vmem:[%s601 + $0x90] sm:$0xf]
                %628 = vst [vmem:[%s602 + $0x30] sm:$0xf] %v627
                %v629 = vld [vmem:[%s601 + $0x9c] sm:$0xf]
                %630 = vst [vmem:[%s602 + $0x34] sm:$0xf] %v629
                %v631 = vld [vmem:[%s601 + $0xa8] sm:$0xf]
                %632 = vst [vmem:[%s602 + $0x38] sm:$0xf] %v631
                %v633 = vld [vmem:[%s601 + $0xb4] sm:$0xf]
                %634 = vst [vmem:[%s602 + $0x3c] sm:$0xf] %v633
                %v635 = vld [vmem:[%s601 + $0xc0] sm:$0xf]
                %636 = vst [vmem:[%s602 + $0x40] sm:$0xf] %v635
                %v637 = vld [vmem:[%s601 + $0xcc] sm:$0xf]
                %638 = vst [vmem:[%s602 + $0x44] sm:$0xf] %v637
                %v639 = vld [vmem:[%s601 + $0xd8] sm:$0xf]
                %640 = vst [vmem:[%s602 + $0x48] sm:$0xf] %v639
                %v641 = vld [vmem:[%s601 + $0xe4] sm:$0xf]
                %642 = vst [vmem:[%s602 + $0x4c] sm:$0xf] %v641
                %v643 = vld [vmem:[%s601 + $0xf0] sm:$0xf]
                %644 = vst [vmem:[%s602 + $0x50] sm:$0xf] %v643
                %v645 = vld [vmem:[%s601 + $0xfc] sm:$0xf]
                %646 = vst [vmem:[%s602 + $0x54] sm:$0xf] %v645
                %v647 = vld [vmem:[%s601 + $0x108] sm:$0xf]
                %648 = vst [vmem:[%s602 + $0x58] sm:$0xf] %v647
                %v649 = vld [vmem:[%s601 + $0x114] sm:$0xf]
                %650 = vst [vmem:[%s602 + $0x5c] sm:$0xf] %v649
                %v651 = vld [vmem:[%s601 + $0x120] sm:$0xf]
                %652 = vst [vmem:[%s602 + $0x60] sm:$0xf] %v651
                %v653 = vld [vmem:[%s601 + $0x12c] sm:$0xf]
                %654 = vst [vmem:[%s602 + $0x64] sm:$0xf] %v653
                %v655 = vld [vmem:[%s601 + $0x138] sm:$0xf]
                %656 = vst [vmem:[%s602 + $0x68] sm:$0xf] %v655
                %v657 = vld [vmem:[%s601 + $0x144] sm:$0xf]
                %658 = vst [vmem:[%s602 + $0x6c] sm:$0xf] %v657
                %v659 = vld [vmem:[%s601 + $0x150] sm:$0xf]
                %660 = vst [vmem:[%s602 + $0x70] sm:$0xf] %v659
                %v661 = vld [vmem:[%s601 + $0x15c] sm:$0xf]
                %662 = vst [vmem:[%s602 + $0x74] sm:$0xf] %v661
                %v663 = vld [vmem:[%s601 + $0x168] sm:$0xf]
                %664 = vst [vmem:[%s602 + $0x78] sm:$0xf] %v663
                %v665 = vld [vmem:[%s601 + $0x174] sm:$0xf]
                %666 = vst [vmem:[%s602 + $0x7c] sm:$0xf] %v665
              $region127: #{vae_attention.3} parent=121 // loop_footer
                %s600 = sadd.s32 1, %s596
              $region128: #{vae_attention.3} parent=121 // loop_footer_branch
                %595 = sbr.rel target = $region124
              $region129: #{vae_attention.3} parent=121 // loop_exit
                _
            $region122: #{vae_attention.3} parent=113 // pred_fallthru
              _
          $region114: #{vae_attention.3} parent=109 // pred_fallthru
            _
          %750 = vnop
        $region110: #{vae_attention.3} parent=23 // pred_fallthru
          _
        // Predicated region
        $region148: #{vae_attention.3} parent=23 // pred_check
          %p751 = pneg %p126
        $region149: #{vae_attention.3} parent=23 // pred_check_branch
          %753 = sbr.rel (%p751) target = $region151
        $region150: #{vae_attention.3} parent=23 // pred_region
          %s754 = smul.u32 2, %s20
          %p755 = scmp.lt.s32.totalorder %s19, 1
          %s756 = scalar_select %p755, %s19, 1
          %p757 = scmp.lt.s32.totalorder %s754, 1
          %s758 = scalar_select %p757, %s754, 1
          %s759 = smul.addr %s756, 16
          %s760 = sadd.s32 %s758, %s759
          %s761 = smul.addr %s760, 8
          %s762 = scalar_lea.vmem %s3, %s761
          %s763 = smul.u32 2, %s20
        $region151: #{vae_attention.3} parent=23 // pred_fallthru
          _
      $region24: #{vae_attention.3} parent=5 // pred_fallthru
        _
      %p764 = scmp.le.s32.totalorder 1, %s12
      %p765 = scmp.lt.s32.totalorder %s12, 3
      %p766 = pnand %p764, %p765
      %p767 = pneg %p766
      // Predicated region
      $region152: #{vae_attention.3} parent=5 // pred_check
        _
      $region153: #{vae_attention.3} parent=5 // pred_check_branch
        %769 = sbr.rel (%p766) target = $region155
      $region154: #{vae_attention.3} parent=5 // pred_region
        %s770 = ssub.s32 %s12, 1
        %s771 = sand.u32 %s39, 1
        %s772 = sand.u32 %s39, 1
        %s773 = smul.addr %s772, 128
        %s774 = scalar_lea.vmem [#allocation2], %s773
        // Predicated region
        $region156: #{vae_attention.3} parent=154 // pred_check
          %p775 = pneg %p52
        $region157: #{vae_attention.3} parent=154 // pred_check_branch
          %777 = sbr.rel (%p775) target = $region159
        $region158: #{vae_attention.3} parent=154 // pred_region
          _
        $region159: #{vae_attention.3} parent=154 // pred_fallthru
          _
        %s778 = sand.u32 %s65, 1
        %s779 = sand.u32 %s65, 1
        %s780 = smul.addr %s779, 128
        %s781 = scalar_lea.vmem [#allocation3], %s780
        // Predicated region
        $region160: #{vae_attention.3} parent=154 // pred_check
          %p782 = pneg %p78
        $region161: #{vae_attention.3} parent=154 // pred_check_branch
          %784 = sbr.rel (%p782) target = $region163
        $region162: #{vae_attention.3} parent=154 // pred_region
          _
        $region163: #{vae_attention.3} parent=154 // pred_fallthru
          _
        %s785 = sand.u32 %s91, 1
        %s786 = sand.u32 %s91, 1
        %s787 = smul.addr %s786, 128
        %s788 = scalar_lea.vmem [#allocation4], %s787
        // Predicated region
        $region164: #{vae_attention.3} parent=154 // pred_check
          %p789 = pneg %p104
        $region165: #{vae_attention.3} parent=154 // pred_check_branch
          %791 = sbr.rel (%p789) target = $region167
        $region166: #{vae_attention.3} parent=154 // pred_region
          _
        $region167: #{vae_attention.3} parent=154 // pred_fallthru
          _
        %s792 = sand.u32 %s39, 1
        %s793 = sand.u32 %s39, 1
        %s794 = smul.addr %s793, 128
        %s795 = scalar_lea.vmem [#allocation2], %s794
        %p796 = pneg %p52
        %p797 = pneg %p49
        %s798 = sand.u32 %s65, 1
        %s799 = sand.u32 %s65, 1
        %s800 = smul.addr %s799, 128
        %s801 = scalar_lea.vmem [#allocation3], %s800
        %p802 = pneg %p78
        %p803 = pneg %p75
        %s804 = sand.u32 %s91, 1
        %s805 = sand.u32 %s91, 1
        %s806 = smul.addr %s805, 128
        %s807 = scalar_lea.vmem [#allocation4], %s806
        %p808 = pneg %p104
        %p809 = pneg %p101
        %s810 = smul.u32 2, %s22
        %p811 = scmp.lt.s32.totalorder %s21, 1
        %s812 = scalar_select %p811, %s21, 1
        %p813 = scmp.lt.s32.totalorder %s810, 1
        %s814 = scalar_select %p813, %s810, 1
        %s815 = smul.addr %s812, 16
        %s816 = sadd.s32 %s814, %s815
        %s817 = smul.addr %s816, 8
        %s818 = scalar_lea.vmem %s3, %s817
        %p819 = pneg %p132
        %p820 = pneg %p129
        %p821 = pneg %p153
        %p822 = pneg %p150
        %p823 = pneg %p174
        %p824 = pneg %p171
        %p825 = pneg %p202
        %p826 = pneg %p199
        %s827 = smul.u32 2, %s22
        %p828 = scmp.lt.s32.totalorder %s21, 1
        %s829 = scalar_select %p828, %s21, 1
        %p830 = scmp.lt.s32.totalorder %s827, 1
        %s831 = scalar_select %p830, %s827, 1
        %s832 = smul.addr %s829, 16
        %s833 = sadd.s32 %s831, %s832
        %s834 = smul.addr %s833, 8
        %s835 = scalar_lea.vmem %s6, %s834
        %s836 = smul.u32 32, %s22
        %s837 = smul.u32 2, %s22
        %p838 = scmp.lt.s32.totalorder %s21, 1
        %s839 = scalar_select %p838, %s21, 1
        %p840 = scmp.lt.s32.totalorder %s837, 1
        %s841 = scalar_select %p840, %s837, 1
        %s842 = smul.addr %s839, 16
        %s843 = sadd.s32 %s841, %s842
        %s844 = smul.addr %s843, 8
        %s845 = scalar_lea.vmem %s3, %s844
        %s846 = smul.u32 2, %s22
        %s847 = smul.u32 2, %s22
        %p848 = scmp.lt.s32.totalorder %s21, 1
        %s849 = scalar_select %p848, %s21, 1
        %p850 = scmp.lt.s32.totalorder %s847, 1
        %s851 = scalar_select %p850, %s847, 1
        %s852 = smul.addr %s849, 16
        %s853 = sadd.s32 %s851, %s852
        %s854 = smul.addr %s853, 8
        %s855 = scalar_lea.vmem %s6, %s854
        %s856 = smul.u32 2, %s22
        %v858 = vld [vmem:[%s774] sm:$0xf]
        %v859 = vld [vmem:[%s774 + $0x4] sm:$0xf]
        %v860 = vld [vmem:[%s774 + $0x8] sm:$0xf]
        %v861 = vld [vmem:[%s774 + $0xc] sm:$0xf]
        %v862 = vld [vmem:[%s774 + $0x10] sm:$0xf]
        %v863 = vld [vmem:[%s774 + $0x14] sm:$0xf]
        %v864 = vld [vmem:[%s774 + $0x18] sm:$0xf]
        %v865 = vld [vmem:[%s774 + $0x1c] sm:$0xf]
        %v866 = vld [vmem:[%s774 + $0x20] sm:$0xf]
        %v867 = vld [vmem:[%s774 + $0x24] sm:$0xf]
        %v868 = vld [vmem:[%s774 + $0x28] sm:$0xf]
        %v869 = vld [vmem:[%s774 + $0x2c] sm:$0xf]
        %v870 = vld [vmem:[%s774 + $0x30] sm:$0xf]
        %v871 = vld [vmem:[%s774 + $0x34] sm:$0xf]
        %v872 = vld [vmem:[%s774 + $0x38] sm:$0xf]
        %v873 = vld [vmem:[%s774 + $0x3c] sm:$0xf]
        %v874 = vld [vmem:[%s774 + $0x40] sm:$0xf]
        %v875 = vld [vmem:[%s774 + $0x44] sm:$0xf]
        %v876 = vld [vmem:[%s774 + $0x48] sm:$0xf]
        %v877 = vld [vmem:[%s774 + $0x4c] sm:$0xf]
        %v878 = vld [vmem:[%s774 + $0x50] sm:$0xf]
        %v879 = vld [vmem:[%s774 + $0x54] sm:$0xf]
        %v880 = vld [vmem:[%s774 + $0x58] sm:$0xf]
        %v881 = vld [vmem:[%s774 + $0x5c] sm:$0xf]
        %v882 = vld [vmem:[%s774 + $0x60] sm:$0xf]
        %v883 = vld [vmem:[%s774 + $0x64] sm:$0xf]
        %v884 = vld [vmem:[%s774 + $0x68] sm:$0xf]
        %v885 = vld [vmem:[%s774 + $0x6c] sm:$0xf]
        %v886 = vld [vmem:[%s774 + $0x70] sm:$0xf]
        %v887 = vld [vmem:[%s774 + $0x74] sm:$0xf]
        %v888 = vld [vmem:[%s774 + $0x78] sm:$0xf]
        %v889 = vld [vmem:[%s774 + $0x7c] sm:$0xf]
        %v890 = vld [vmem:[%s781] sm:$0xf]
        %v891 = vld [vmem:[%s781 + $0x4] sm:$0xf]
        %v892 = vld [vmem:[%s781 + $0x8] sm:$0xf]
        %v893 = vld [vmem:[%s781 + $0xc] sm:$0xf]
        %v894 = vld [vmem:[%s781 + $0x10] sm:$0xf]
        %v895 = vld [vmem:[%s781 + $0x14] sm:$0xf]
        %v896 = vld [vmem:[%s781 + $0x18] sm:$0xf]
        %v897 = vld [vmem:[%s781 + $0x1c] sm:$0xf]
        %v898 = vld [vmem:[%s781 + $0x20] sm:$0xf]
        %v899 = vld [vmem:[%s781 + $0x24] sm:$0xf]
        %v900 = vld [vmem:[%s781 + $0x28] sm:$0xf]
        %v901 = vld [vmem:[%s781 + $0x2c] sm:$0xf]
        %v902 = vld [vmem:[%s781 + $0x30] sm:$0xf]
        %v903 = vld [vmem:[%s781 + $0x34] sm:$0xf]
        %v904 = vld [vmem:[%s781 + $0x38] sm:$0xf]
        %v905 = vld [vmem:[%s781 + $0x3c] sm:$0xf]
        %v906 = vld [vmem:[%s781 + $0x40] sm:$0xf]
        %v907 = vld [vmem:[%s781 + $0x44] sm:$0xf]
        %v908 = vld [vmem:[%s781 + $0x48] sm:$0xf]
        %v909 = vld [vmem:[%s781 + $0x4c] sm:$0xf]
        %v910 = vld [vmem:[%s781 + $0x50] sm:$0xf]
        %v911 = vld [vmem:[%s781 + $0x54] sm:$0xf]
        %v912 = vld [vmem:[%s781 + $0x58] sm:$0xf]
        %v913 = vld [vmem:[%s781 + $0x5c] sm:$0xf]
        %v914 = vld [vmem:[%s781 + $0x60] sm:$0xf]
        %v915 = vld [vmem:[%s781 + $0x64] sm:$0xf]
        %v916 = vld [vmem:[%s781 + $0x68] sm:$0xf]
        %v917 = vld [vmem:[%s781 + $0x6c] sm:$0xf]
        %v918 = vld [vmem:[%s781 + $0x70] sm:$0xf]
        %v919 = vld [vmem:[%s781 + $0x74] sm:$0xf]
        %v920 = vld [vmem:[%s781 + $0x78] sm:$0xf]
        %v921 = vld [vmem:[%s781 + $0x7c] sm:$0xf]
        %v922 = vld [vmem:[%s788] sm:$0xf]
        %v923 = vld [vmem:[%s788 + $0x4] sm:$0xf]
        %v924 = vld [vmem:[%s788 + $0x8] sm:$0xf]
        %v925 = vld [vmem:[%s788 + $0xc] sm:$0xf]
        %v926 = vld [vmem:[%s788 + $0x10] sm:$0xf]
        %v927 = vld [vmem:[%s788 + $0x14] sm:$0xf]
        %v928 = vld [vmem:[%s788 + $0x18] sm:$0xf]
        %v929 = vld [vmem:[%s788 + $0x1c] sm:$0xf]
        %v930 = vld [vmem:[%s788 + $0x20] sm:$0xf]
        %v931 = vld [vmem:[%s788 + $0x24] sm:$0xf]
        %v932 = vld [vmem:[%s788 + $0x28] sm:$0xf]
        %v933 = vld [vmem:[%s788 + $0x2c] sm:$0xf]
        %v934 = vld [vmem:[%s788 + $0x30] sm:$0xf]
        %v935 = vld [vmem:[%s788 + $0x34] sm:$0xf]
        %v936 = vld [vmem:[%s788 + $0x38] sm:$0xf]
        %v937 = vld [vmem:[%s788 + $0x3c] sm:$0xf]
        %v938 = vld [vmem:[%s788 + $0x40] sm:$0xf]
        %v939 = vld [vmem:[%s788 + $0x44] sm:$0xf]
        %v940 = vld [vmem:[%s788 + $0x48] sm:$0xf]
        %v941 = vld [vmem:[%s788 + $0x4c] sm:$0xf]
        %v942 = vld [vmem:[%s788 + $0x50] sm:$0xf]
        %v943 = vld [vmem:[%s788 + $0x54] sm:$0xf]
        %v944 = vld [vmem:[%s788 + $0x58] sm:$0xf]
        %v945 = vld [vmem:[%s788 + $0x5c] sm:$0xf]
        %v946 = vld [vmem:[%s788 + $0x60] sm:$0xf]
        %v947 = vld [vmem:[%s788 + $0x64] sm:$0xf]
        %v948 = vld [vmem:[%s788 + $0x68] sm:$0xf]
        %v949 = vld [vmem:[%s788 + $0x6c] sm:$0xf]
        %v950 = vld [vmem:[%s788 + $0x70] sm:$0xf]
        %v951 = vld [vmem:[%s788 + $0x74] sm:$0xf]
        %v952 = vld [vmem:[%s788 + $0x78] sm:$0xf]
        %v953 = vld [vmem:[%s788 + $0x7c] sm:$0xf]
        %v986 = vunpack.c.l.b16 %v858
        %v987 = vunpack.c.l.b16 %v859
        %v988 = vunpack.c.l.b16 %v860
        %v989 = vunpack.c.l.b16 %v861
        %v990 = vunpack.c.l.b16 %v862
        %v991 = vunpack.c.l.b16 %v863
        %v992 = vunpack.c.l.b16 %v864
        %v993 = vunpack.c.l.b16 %v865
        %v994 = vunpack.c.l.b16 %v866
        %v995 = vunpack.c.l.b16 %v867
        %v996 = vunpack.c.l.b16 %v868
        %v997 = vunpack.c.l.b16 %v869
        %v998 = vunpack.c.l.b16 %v870
        %v999 = vunpack.c.l.b16 %v871
        %v1000 = vunpack.c.l.b16 %v872
        %v1001 = vunpack.c.l.b16 %v873
        %v1002 = vunpack.c.l.b16 %v874
        %v1003 = vunpack.c.l.b16 %v875
        %v1004 = vunpack.c.l.b16 %v876
        %v1005 = vunpack.c.l.b16 %v877
        %v1006 = vunpack.c.l.b16 %v878
        %v1007 = vunpack.c.l.b16 %v879
        %v1008 = vunpack.c.l.b16 %v880
        %v1009 = vunpack.c.l.b16 %v881
        %v1010 = vunpack.c.l.b16 %v882
        %v1011 = vunpack.c.l.b16 %v883
        %v1012 = vunpack.c.l.b16 %v884
        %v1013 = vunpack.c.l.b16 %v885
        %v1014 = vunpack.c.l.b16 %v886
        %v1015 = vunpack.c.l.b16 %v887
        %v1016 = vunpack.c.l.b16 %v888
        %v1017 = vunpack.c.l.b16 %v889
        %v1018 = vpack.c.b16 %v987, %v986
        %v1019 = vpack.c.b16 %v989, %v988
        %v1020 = vpack.c.b16 %v991, %v990
        %v1021 = vpack.c.b16 %v993, %v992
        %v1022 = vpack.c.b16 %v995, %v994
        %v1023 = vpack.c.b16 %v997, %v996
        %v1024 = vpack.c.b16 %v999, %v998
        %v1025 = vpack.c.b16 %v1001, %v1000
        %v1026 = vpack.c.b16 %v1003, %v1002
        %v1027 = vpack.c.b16 %v1005, %v1004
        %v1028 = vpack.c.b16 %v1007, %v1006
        %v1029 = vpack.c.b16 %v1009, %v1008
        %v1030 = vpack.c.b16 %v1011, %v1010
        %v1031 = vpack.c.b16 %v1013, %v1012
        %v1032 = vpack.c.b16 %v1015, %v1014
        %v1033 = vpack.c.b16 %v1017, %v1016
        %v1082 = vunpack.c.l.b16 %v890
        %v1083 = vunpack.c.l.b16 %v891
        %v1084 = vunpack.c.l.b16 %v892
        %v1085 = vunpack.c.l.b16 %v893
        %v1086 = vunpack.c.l.b16 %v894
        %v1087 = vunpack.c.l.b16 %v895
        %v1088 = vunpack.c.l.b16 %v896
        %v1089 = vunpack.c.l.b16 %v897
        %v1090 = vunpack.c.l.b16 %v898
        %v1091 = vunpack.c.l.b16 %v899
        %v1092 = vunpack.c.l.b16 %v900
        %v1093 = vunpack.c.l.b16 %v901
        %v1094 = vunpack.c.l.b16 %v902
        %v1095 = vunpack.c.l.b16 %v903
        %v1096 = vunpack.c.l.b16 %v904
        %v1097 = vunpack.c.l.b16 %v905
        %v1098 = vunpack.c.l.b16 %v906
        %v1099 = vunpack.c.l.b16 %v907
        %v1100 = vunpack.c.l.b16 %v908
        %v1101 = vunpack.c.l.b16 %v909
        %v1102 = vunpack.c.l.b16 %v910
        %v1103 = vunpack.c.l.b16 %v911
        %v1104 = vunpack.c.l.b16 %v912
        %v1105 = vunpack.c.l.b16 %v913
        %v1106 = vunpack.c.l.b16 %v914
        %v1107 = vunpack.c.l.b16 %v915
        %v1108 = vunpack.c.l.b16 %v916
        %v1109 = vunpack.c.l.b16 %v917
        %v1110 = vunpack.c.l.b16 %v918
        %v1111 = vunpack.c.l.b16 %v919
        %v1112 = vunpack.c.l.b16 %v920
        %v1113 = vunpack.c.l.b16 %v921
        %v1114 = vpack.c.b16 %v1083, %v1082
        %v1115 = vpack.c.b16 %v1085, %v1084
        %v1116 = vpack.c.b16 %v1087, %v1086
        %v1117 = vpack.c.b16 %v1089, %v1088
        %v1118 = vpack.c.b16 %v1091, %v1090
        %v1119 = vpack.c.b16 %v1093, %v1092
        %v1120 = vpack.c.b16 %v1095, %v1094
        %v1121 = vpack.c.b16 %v1097, %v1096
        %v1122 = vpack.c.b16 %v1099, %v1098
        %v1123 = vpack.c.b16 %v1101, %v1100
        %v1124 = vpack.c.b16 %v1103, %v1102
        %v1125 = vpack.c.b16 %v1105, %v1104
        %v1126 = vpack.c.b16 %v1107, %v1106
        %v1127 = vpack.c.b16 %v1109, %v1108
        %v1128 = vpack.c.b16 %v1111, %v1110
        %v1129 = vpack.c.b16 %v1113, %v1112
        %1146 = vmatprep.subr.bf16.mxu0 0
        %1147 = vmatpush1.bf16.xpose.msra.mxu0 %v1114
        %1148 = vmatprep.subr.bf16.mxu0 0
        %1149 = vmatpush1.bf16.xpose.msra.mxu0 %v1115
        %1150 = vmatprep.subr.bf16.mxu0 0
        %1151 = vmatpush1.bf16.xpose.msra.mxu0 %v1116
        %1152 = vmatprep.subr.bf16.mxu0 0
        %1153 = vmatpush1.bf16.xpose.msra.mxu0 %v1117
        %1154 = vmatprep.subr.bf16.mxu0 0
        %1155 = vmatpush1.bf16.xpose.msra.mxu0 %v1118
        %1156 = vmatprep.subr.bf16.mxu0 0
        %1157 = vmatpush1.bf16.xpose.msra.mxu0 %v1119
        %1158 = vmatprep.subr.bf16.mxu0 0
        %1159 = vmatpush1.bf16.xpose.msra.mxu0 %v1120
        %1160 = vmatprep.subr.bf16.mxu0 0
        %1161 = vmatpush1.bf16.xpose.msra.mxu0 %v1121
        %1162 = vmatprep.subr.bf16.mxu0 0
        %1163 = vmatpush1.bf16.xpose.msra.mxu0 %v1122
        %1164 = vmatprep.subr.bf16.mxu0 0
        %1165 = vmatpush1.bf16.xpose.msra.mxu0 %v1123
        %1166 = vmatprep.subr.bf16.mxu0 0
        %1167 = vmatpush1.bf16.xpose.msra.mxu0 %v1124
        %1168 = vmatprep.subr.bf16.mxu0 0
        %1169 = vmatpush1.bf16.xpose.msra.mxu0 %v1125
        %1170 = vmatprep.subr.bf16.mxu0 0
        %1171 = vmatpush1.bf16.xpose.msra.mxu0 %v1126
        %1172 = vmatprep.subr.bf16.mxu0 0
        %1173 = vmatpush1.bf16.xpose.msra.mxu0 %v1127
        %1174 = vmatprep.subr.bf16.mxu0 0
        %1175 = vmatpush1.bf16.xpose.msra.mxu0 %v1128
        %1176 = vmatprep.subr.bf16.mxu0 0
        %1177 = vmatpush1.bf16.xpose.msra.mxu0 %v1129
        %1178 = vmatprep.mubr.bf16.mxu0 0
        %1179 = vmatmul.mubr.bf16.gmra.mrb[0].mxu0 %v1018
        %v1180 = vpop.f32.mrb[0].mxu0
        %v1181 = vadd.f32 0.0, %v1180
        %v1182 = vpop.f32.mrb[0].mxu0
        %v1183 = vadd.f32 0.0, %v1182
        %v1184 = vpop.f32.mrb[0].mxu0
        %v1185 = vadd.f32 0.0, %v1184
        %v1186 = vpop.f32.mrb[0].mxu0
        %v1187 = vadd.f32 0.0, %v1186
        %1188 = vmatprep.mubr.bf16.mxu0 0
        %1189 = vmatmul.mubr.bf16.gmra.mrb[0].mxu0 %v1019
        %v1190 = vpop.f32.mrb[0].mxu0
        %v1191 = vadd.f32 0.0, %v1190
        %v1192 = vpop.f32.mrb[0].mxu0
        %v1193 = vadd.f32 0.0, %v1192
        %v1194 = vpop.f32.mrb[0].mxu0
        %v1195 = vadd.f32 0.0, %v1194
        %v1196 = vpop.f32.mrb[0].mxu0
        %v1197 = vadd.f32 0.0, %v1196
        %1198 = vmatprep.mubr.bf16.mxu0 0
        %1199 = vmatmul.mubr.bf16.gmra.mrb[0].mxu0 %v1020
        %v1200 = vpop.f32.mrb[0].mxu0
        %v1201 = vadd.f32 0.0, %v1200
        %v1202 = vpop.f32.mrb[0].mxu0
        %v1203 = vadd.f32 0.0, %v1202
        %v1204 = vpop.f32.mrb[0].mxu0
        %v1205 = vadd.f32 0.0, %v1204
        %v1206 = vpop.f32.mrb[0].mxu0
        %v1207 = vadd.f32 0.0, %v1206
        %1208 = vmatprep.mubr.bf16.mxu0 0
        %1209 = vmatmul.mubr.bf16.gmra.mrb[0].mxu0 %v1021
        %v1210 = vpop.f32.mrb[0].mxu0
        %v1211 = vadd.f32 0.0, %v1210
        %v1212 = vpop.f32.mrb[0].mxu0
        %v1213 = vadd.f32 0.0, %v1212
        %v1214 = vpop.f32.mrb[0].mxu0
        %v1215 = vadd.f32 0.0, %v1214
        %v1216 = vpop.f32.mrb[0].mxu0
        %v1217 = vadd.f32 0.0, %v1216
        %1218 = vmatprep.mubr.bf16.mxu0 0
        %1219 = vmatmul.mubr.bf16.gmra.mrb[0].mxu0 %v1022
        %v1220 = vpop.f32.mrb[0].mxu0
        %v1221 = vadd.f32 0.0, %v1220
        %v1222 = vpop.f32.mrb[0].mxu0
        %v1223 = vadd.f32 0.0, %v1222
        %v1224 = vpop.f32.mrb[0].mxu0
        %v1225 = vadd.f32 0.0, %v1224
        %v1226 = vpop.f32.mrb[0].mxu0
        %v1227 = vadd.f32 0.0, %v1226
        %1228 = vmatprep.mubr.bf16.mxu0 0
        %1229 = vmatmul.mubr.bf16.gmra.mrb[0].mxu0 %v1023
        %v1230 = vpop.f32.mrb[0].mxu0
        %v1231 = vadd.f32 0.0, %v1230
        %v1232 = vpop.f32.mrb[0].mxu0
        %v1233 = vadd.f32 0.0, %v1232
        %v1234 = vpop.f32.mrb[0].mxu0
        %v1235 = vadd.f32 0.0, %v1234
        %v1236 = vpop.f32.mrb[0].mxu0
        %v1237 = vadd.f32 0.0, %v1236
        %1238 = vmatprep.mubr.bf16.mxu0 0
        %1239 = vmatmul.mubr.bf16.gmra.mrb[0].mxu0 %v1024
        %v1240 = vpop.f32.mrb[0].mxu0
        %v1241 = vadd.f32 0.0, %v1240
        %v1242 = vpop.f32.mrb[0].mxu0
        %v1243 = vadd.f32 0.0, %v1242
        %v1244 = vpop.f32.mrb[0].mxu0
        %v1245 = vadd.f32 0.0, %v1244
        %v1246 = vpop.f32.mrb[0].mxu0
        %v1247 = vadd.f32 0.0, %v1246
        %1248 = vmatprep.mubr.bf16.mxu0 0
        %1249 = vmatmul.mubr.bf16.gmra.mrb[0].mxu0 %v1025
        %v1250 = vpop.f32.mrb[0].mxu0
        %v1251 = vadd.f32 0.0, %v1250
        %v1252 = vpop.f32.mrb[0].mxu0
        %v1253 = vadd.f32 0.0, %v1252
        %v1254 = vpop.f32.mrb[0].mxu0
        %v1255 = vadd.f32 0.0, %v1254
        %v1256 = vpop.f32.mrb[0].mxu0
        %v1257 = vadd.f32 0.0, %v1256
        %1258 = vmatprep.mubr.bf16.mxu0 0
        %1259 = vmatmul.mubr.bf16.gmra.mrb[0].mxu0 %v1026
        %v1260 = vpop.f32.mrb[0].mxu0
        %v1261 = vadd.f32 0.0, %v1260
        %v1262 = vpop.f32.mrb[0].mxu0
        %v1263 = vadd.f32 0.0, %v1262
        %v1264 = vpop.f32.mrb[0].mxu0
        %v1265 = vadd.f32 0.0, %v1264
        %v1266 = vpop.f32.mrb[0].mxu0
        %v1267 = vadd.f32 0.0, %v1266
        %1268 = vmatprep.mubr.bf16.mxu0 0
        %1269 = vmatmul.mubr.bf16.gmra.mrb[0].mxu0 %v1027
        %v1270 = vpop.f32.mrb[0].mxu0
        %v1271 = vadd.f32 0.0, %v1270
        %v1272 = vpop.f32.mrb[0].mxu0
        %v1273 = vadd.f32 0.0, %v1272
        %v1274 = vpop.f32.mrb[0].mxu0
        %v1275 = vadd.f32 0.0, %v1274
        %v1276 = vpop.f32.mrb[0].mxu0
        %v1277 = vadd.f32 0.0, %v1276
        %1278 = vmatprep.mubr.bf16.mxu0 0
        %1279 = vmatmul.mubr.bf16.gmra.mrb[0].mxu0 %v1028
        %v1280 = vpop.f32.mrb[0].mxu0
        %v1281 = vadd.f32 0.0, %v1280
        %v1282 = vpop.f32.mrb[0].mxu0
        %v1283 = vadd.f32 0.0, %v1282
        %v1284 = vpop.f32.mrb[0].mxu0
        %v1285 = vadd.f32 0.0, %v1284
        %v1286 = vpop.f32.mrb[0].mxu0
        %v1287 = vadd.f32 0.0, %v1286
        %1288 = vmatprep.mubr.bf16.mxu0 0
        %1289 = vmatmul.mubr.bf16.gmra.mrb[0].mxu0 %v1029
        %v1290 = vpop.f32.mrb[0].mxu0
        %v1291 = vadd.f32 0.0, %v1290
        %v1292 = vpop.f32.mrb[0].mxu0
        %v1293 = vadd.f32 0.0, %v1292
        %v1294 = vpop.f32.mrb[0].mxu0
        %v1295 = vadd.f32 0.0, %v1294
        %v1296 = vpop.f32.mrb[0].mxu0
        %v1297 = vadd.f32 0.0, %v1296
        %1298 = vmatprep.mubr.bf16.mxu0 0
        %1299 = vmatmul.mubr.bf16.gmra.mrb[0].mxu0 %v1030
        %v1300 = vpop.f32.mrb[0].mxu0
        %v1301 = vadd.f32 0.0, %v1300
        %v1302 = vpop.f32.mrb[0].mxu0
        %v1303 = vadd.f32 0.0, %v1302
        %v1304 = vpop.f32.mrb[0].mxu0
        %v1305 = vadd.f32 0.0, %v1304
        %v1306 = vpop.f32.mrb[0].mxu0
        %v1307 = vadd.f32 0.0, %v1306
        %1308 = vmatprep.mubr.bf16.mxu0 0
        %1309 = vmatmul.mubr.bf16.gmra.mrb[0].mxu0 %v1031
        %v1310 = vpop.f32.mrb[0].mxu0
        %v1311 = vadd.f32 0.0, %v1310
        %v1312 = vpop.f32.mrb[0].mxu0
        %v1313 = vadd.f32 0.0, %v1312
        %v1314 = vpop.f32.mrb[0].mxu0
        %v1315 = vadd.f32 0.0, %v1314
        %v1316 = vpop.f32.mrb[0].mxu0
        %v1317 = vadd.f32 0.0, %v1316
        %1318 = vmatprep.mubr.bf16.mxu0 0
        %1319 = vmatmul.mubr.bf16.gmra.mrb[0].mxu0 %v1032
        %v1320 = vpop.f32.mrb[0].mxu0
        %v1321 = vadd.f32 0.0, %v1320
        %v1322 = vpop.f32.mrb[0].mxu0
        %v1323 = vadd.f32 0.0, %v1322
        %v1324 = vpop.f32.mrb[0].mxu0
        %v1325 = vadd.f32 0.0, %v1324
        %v1326 = vpop.f32.mrb[0].mxu0
        %v1327 = vadd.f32 0.0, %v1326
        %1328 = vmatprep.mubr.bf16.mxu0 0
        %1329 = vmatmul.mubr.bf16.gmra.mrb[0].mxu0 %v1033
        %v1330 = vpop.f32.mrb[0].mxu0
        %v1331 = vadd.f32 0.0, %v1330
        %v1332 = vpop.f32.mrb[0].mxu0
        %v1333 = vadd.f32 0.0, %v1332
        %v1334 = vpop.f32.mrb[0].mxu0
        %v1335 = vadd.f32 0.0, %v1334
        %v1336 = vpop.f32.mrb[0].mxu0
        %v1337 = vadd.f32 0.0, %v1336
        %1338 = vdwg.mxu0
        %v1339 = vmax.f32 %v1181, %v1183
        %1340 = vmax.xlane.f32.xlu0 %v1339
        %v1341 = vpop.xlane.xlu0 %1340
        %v1342 = vmax.f32 %v1185, %v1187
        %1343 = vmax.xlane.f32.xlu0 %v1342
        %v1344 = vpop.xlane.xlu0 %1343
        %v1345 = vmax.f32 %v1191, %v1193
        %1346 = vmax.xlane.f32.xlu0 %v1345
        %v1347 = vpop.xlane.xlu0 %1346
        %v1348 = vmax.f32 %v1195, %v1197
        %1349 = vmax.xlane.f32.xlu0 %v1348
        %v1350 = vpop.xlane.xlu0 %1349
        %v1351 = vmax.f32 %v1201, %v1203
        %1352 = vmax.xlane.f32.xlu0 %v1351
        %v1353 = vpop.xlane.xlu0 %1352
        %v1354 = vmax.f32 %v1205, %v1207
        %1355 = vmax.xlane.f32.xlu0 %v1354
        %v1356 = vpop.xlane.xlu0 %1355
        %v1357 = vmax.f32 %v1211, %v1213
        %1358 = vmax.xlane.f32.xlu0 %v1357
        %v1359 = vpop.xlane.xlu0 %1358
        %v1360 = vmax.f32 %v1215, %v1217
        %1361 = vmax.xlane.f32.xlu0 %v1360
        %v1362 = vpop.xlane.xlu0 %1361
        %v1363 = vmax.f32 %v1221, %v1223
        %1364 = vmax.xlane.f32.xlu0 %v1363
        %v1365 = vpop.xlane.xlu0 %1364
        %v1366 = vmax.f32 %v1225, %v1227
        %1367 = vmax.xlane.f32.xlu0 %v1366
        %v1368 = vpop.xlane.xlu0 %1367
        %v1369 = vmax.f32 %v1231, %v1233
        %1370 = vmax.xlane.f32.xlu0 %v1369
        %v1371 = vpop.xlane.xlu0 %1370
        %v1372 = vmax.f32 %v1235, %v1237
        %1373 = vmax.xlane.f32.xlu0 %v1372
        %v1374 = vpop.xlane.xlu0 %1373
        %v1375 = vmax.f32 %v1241, %v1243
        %1376 = vmax.xlane.f32.xlu0 %v1375
        %v1377 = vpop.xlane.xlu0 %1376
        %v1378 = vmax.f32 %v1245, %v1247
        %1379 = vmax.xlane.f32.xlu0 %v1378
        %v1380 = vpop.xlane.xlu0 %1379
        %v1381 = vmax.f32 %v1251, %v1253
        %1382 = vmax.xlane.f32.xlu0 %v1381
        %v1383 = vpop.xlane.xlu0 %1382
        %v1384 = vmax.f32 %v1255, %v1257
        %1385 = vmax.xlane.f32.xlu0 %v1384
        %v1386 = vpop.xlane.xlu0 %1385
        %v1387 = vmax.f32 %v1261, %v1263
        %1388 = vmax.xlane.f32.xlu0 %v1387
        %v1389 = vpop.xlane.xlu0 %1388
        %v1390 = vmax.f32 %v1265, %v1267
        %1391 = vmax.xlane.f32.xlu0 %v1390
        %v1392 = vpop.xlane.xlu0 %1391
        %v1393 = vmax.f32 %v1271, %v1273
        %1394 = vmax.xlane.f32.xlu0 %v1393
        %v1395 = vpop.xlane.xlu0 %1394
        %v1396 = vmax.f32 %v1275, %v1277
        %1397 = vmax.xlane.f32.xlu0 %v1396
        %v1398 = vpop.xlane.xlu0 %1397
        %v1399 = vmax.f32 %v1281, %v1283
        %1400 = vmax.xlane.f32.xlu0 %v1399
        %v1401 = vpop.xlane.xlu0 %1400
        %v1402 = vmax.f32 %v1285, %v1287
        %1403 = vmax.xlane.f32.xlu0 %v1402
        %v1404 = vpop.xlane.xlu0 %1403
        %v1405 = vmax.f32 %v1291, %v1293
        %1406 = vmax.xlane.f32.xlu0 %v1405
        %v1407 = vpop.xlane.xlu0 %1406
        %v1408 = vmax.f32 %v1295, %v1297
        %1409 = vmax.xlane.f32.xlu0 %v1408
        %v1410 = vpop.xlane.xlu0 %1409
        %v1411 = vmax.f32 %v1301, %v1303
        %1412 = vmax.xlane.f32.xlu0 %v1411
        %v1413 = vpop.xlane.xlu0 %1412
        %v1414 = vmax.f32 %v1305, %v1307
        %1415 = vmax.xlane.f32.xlu0 %v1414
        %v1416 = vpop.xlane.xlu0 %1415
        %v1417 = vmax.f32 %v1311, %v1313
        %1418 = vmax.xlane.f32.xlu0 %v1417
        %v1419 = vpop.xlane.xlu0 %1418
        %v1420 = vmax.f32 %v1315, %v1317
        %1421 = vmax.xlane.f32.xlu0 %v1420
        %v1422 = vpop.xlane.xlu0 %1421
        %v1423 = vmax.f32 %v1321, %v1323
        %1424 = vmax.xlane.f32.xlu0 %v1423
        %v1425 = vpop.xlane.xlu0 %1424
        %v1426 = vmax.f32 %v1325, %v1327
        %1427 = vmax.xlane.f32.xlu0 %v1426
        %v1428 = vpop.xlane.xlu0 %1427
        %v1429 = vmax.f32 %v1331, %v1333
        %1430 = vmax.xlane.f32.xlu0 %v1429
        %v1431 = vpop.xlane.xlu0 %1430
        %v1432 = vmax.f32 %v1335, %v1337
        %1433 = vmax.xlane.f32.xlu0 %v1432
        %v1434 = vpop.xlane.xlu0 %1433
        %v1435 = vsub.f32 -inf, %v1341
        %v1436 = vsub.f32 -inf, %v1344
        %v1437 = vsub.f32 -inf, %v1347
        %v1438 = vsub.f32 -inf, %v1350
        %v1439 = vsub.f32 -inf, %v1353
        %v1440 = vsub.f32 -inf, %v1356
        %v1441 = vsub.f32 -inf, %v1359
        %v1442 = vsub.f32 -inf, %v1362
        %v1443 = vsub.f32 -inf, %v1365
        %v1444 = vsub.f32 -inf, %v1368
        %v1445 = vsub.f32 -inf, %v1371
        %v1446 = vsub.f32 -inf, %v1374
        %v1447 = vsub.f32 -inf, %v1377
        %v1448 = vsub.f32 -inf, %v1380
        %v1449 = vsub.f32 -inf, %v1383
        %v1450 = vsub.f32 -inf, %v1386
        %v1451 = vsub.f32 -inf, %v1389
        %v1452 = vsub.f32 -inf, %v1392
        %v1453 = vsub.f32 -inf, %v1395
        %v1454 = vsub.f32 -inf, %v1398
        %v1455 = vsub.f32 -inf, %v1401
        %v1456 = vsub.f32 -inf, %v1404
        %v1457 = vsub.f32 -inf, %v1407
        %v1458 = vsub.f32 -inf, %v1410
        %v1459 = vsub.f32 -inf, %v1413
        %v1460 = vsub.f32 -inf, %v1416
        %v1461 = vsub.f32 -inf, %v1419
        %v1462 = vsub.f32 -inf, %v1422
        %v1463 = vsub.f32 -inf, %v1425
        %v1464 = vsub.f32 -inf, %v1428
        %v1465 = vsub.f32 -inf, %v1431
        %v1466 = vsub.f32 -inf, %v1434
        %v1467 = vmul.f32 %v1435, 1.442695
        %v1468 = vpow.pop %v1467
        %v1469 = vmul.f32 %v1436, 1.442695
        %v1470 = vpow.pop %v1469
        %v1471 = vmul.f32 %v1437, 1.442695
        %v1472 = vpow.pop %v1471
        %v1473 = vmul.f32 %v1438, 1.442695
        %v1474 = vpow.pop %v1473
        %v1475 = vmul.f32 %v1439, 1.442695
        %v1476 = vpow.pop %v1475
        %v1477 = vmul.f32 %v1440, 1.442695
        %v1478 = vpow.pop %v1477
        %v1479 = vmul.f32 %v1441, 1.442695
        %v1480 = vpow.pop %v1479
        %v1481 = vmul.f32 %v1442, 1.442695
        %v1482 = vpow.pop %v1481
        %v1483 = vmul.f32 %v1443, 1.442695
        %v1484 = vpow.pop %v1483
        %v1485 = vmul.f32 %v1444, 1.442695
        %v1486 = vpow.pop %v1485
        %v1487 = vmul.f32 %v1445, 1.442695
        %v1488 = vpow.pop %v1487
        %v1489 = vmul.f32 %v1446, 1.442695
        %v1490 = vpow.pop %v1489
        %v1491 = vmul.f32 %v1447, 1.442695
        %v1492 = vpow.pop %v1491
        %v1493 = vmul.f32 %v1448, 1.442695
        %v1494 = vpow.pop %v1493
        %v1495 = vmul.f32 %v1449, 1.442695
        %v1496 = vpow.pop %v1495
        %v1497 = vmul.f32 %v1450, 1.442695
        %v1498 = vpow.pop %v1497
        %v1499 = vmul.f32 %v1451, 1.442695
        %v1500 = vpow.pop %v1499
        %v1501 = vmul.f32 %v1452, 1.442695
        %v1502 = vpow.pop %v1501
        %v1503 = vmul.f32 %v1453, 1.442695
        %v1504 = vpow.pop %v1503
        %v1505 = vmul.f32 %v1454, 1.442695
        %v1506 = vpow.pop %v1505
        %v1507 = vmul.f32 %v1455, 1.442695
        %v1508 = vpow.pop %v1507
        %v1509 = vmul.f32 %v1456, 1.442695
        %v1510 = vpow.pop %v1509
        %v1511 = vmul.f32 %v1457, 1.442695
        %v1512 = vpow.pop %v1511
        %v1513 = vmul.f32 %v1458, 1.442695
        %v1514 = vpow.pop %v1513
        %v1515 = vmul.f32 %v1459, 1.442695
        %v1516 = vpow.pop %v1515
        %v1517 = vmul.f32 %v1460, 1.442695
        %v1518 = vpow.pop %v1517
        %v1519 = vmul.f32 %v1461, 1.442695
        %v1520 = vpow.pop %v1519
        %v1521 = vmul.f32 %v1462, 1.442695
        %v1522 = vpow.pop %v1521
        %v1523 = vmul.f32 %v1463, 1.442695
        %v1524 = vpow.pop %v1523
        %v1525 = vmul.f32 %v1464, 1.442695
        %v1526 = vpow.pop %v1525
        %v1527 = vmul.f32 %v1465, 1.442695
        %v1528 = vpow.pop %v1527
        %v1529 = vmul.f32 %v1466, 1.442695
        %v1530 = vpow.pop %v1529
        %v1531 = vsub.f32 %v1181, %v1341
        %v1532 = vsub.f32 %v1183, %v1341
        %v1533 = vsub.f32 %v1185, %v1344
        %v1534 = vsub.f32 %v1187, %v1344
        %v1535 = vsub.f32 %v1191, %v1347
        %v1536 = vsub.f32 %v1193, %v1347
        %v1537 = vsub.f32 %v1195, %v1350
        %v1538 = vsub.f32 %v1197, %v1350
        %v1539 = vsub.f32 %v1201, %v1353
        %v1540 = vsub.f32 %v1203, %v1353
        %v1541 = vsub.f32 %v1205, %v1356
        %v1542 = vsub.f32 %v1207, %v1356
        %v1543 = vsub.f32 %v1211, %v1359
        %v1544 = vsub.f32 %v1213, %v1359
        %v1545 = vsub.f32 %v1215, %v1362
        %v1546 = vsub.f32 %v1217, %v1362
        %v1547 = vsub.f32 %v1221, %v1365
        %v1548 = vsub.f32 %v1223, %v1365
        %v1549 = vsub.f32 %v1225, %v1368
        %v1550 = vsub.f32 %v1227, %v1368
        %v1551 = vsub.f32 %v1231, %v1371
        %v1552 = vsub.f32 %v1233, %v1371
        %v1553 = vsub.f32 %v1235, %v1374
        %v1554 = vsub.f32 %v1237, %v1374
        %v1555 = vsub.f32 %v1241, %v1377
        %v1556 = vsub.f32 %v1243, %v1377
        %v1557 = vsub.f32 %v1245, %v1380
        %v1558 = vsub.f32 %v1247, %v1380
        %v1559 = vsub.f32 %v1251, %v1383
        %v1560 = vsub.f32 %v1253, %v1383
        %v1561 = vsub.f32 %v1255, %v1386
        %v1562 = vsub.f32 %v1257, %v1386
        %v1563 = vsub.f32 %v1261, %v1389
        %v1564 = vsub.f32 %v1263, %v1389
        %v1565 = vsub.f32 %v1265, %v1392
        %v1566 = vsub.f32 %v1267, %v1392
        %v1567 = vsub.f32 %v1271, %v1395
        %v1568 = vsub.f32 %v1273, %v1395
        %v1569 = vsub.f32 %v1275, %v1398
        %v1570 = vsub.f32 %v1277, %v1398
        %v1571 = vsub.f32 %v1281, %v1401
        %v1572 = vsub.f32 %v1283, %v1401
        %v1573 = vsub.f32 %v1285, %v1404
        %v1574 = vsub.f32 %v1287, %v1404
        %v1575 = vsub.f32 %v1291, %v1407
        %v1576 = vsub.f32 %v1293, %v1407
        %v1577 = vsub.f32 %v1295, %v1410
        %v1578 = vsub.f32 %v1297, %v1410
        %v1579 = vsub.f32 %v1301, %v1413
        %v1580 = vsub.f32 %v1303, %v1413
        %v1581 = vsub.f32 %v1305, %v1416
        %v1582 = vsub.f32 %v1307, %v1416
        %v1583 = vsub.f32 %v1311, %v1419
        %v1584 = vsub.f32 %v1313, %v1419
        %v1585 = vsub.f32 %v1315, %v1422
        %v1586 = vsub.f32 %v1317, %v1422
        %v1587 = vsub.f32 %v1321, %v1425
        %v1588 = vsub.f32 %v1323, %v1425
        %v1589 = vsub.f32 %v1325, %v1428
        %v1590 = vsub.f32 %v1327, %v1428
        %v1591 = vsub.f32 %v1331, %v1431
        %v1592 = vsub.f32 %v1333, %v1431
        %v1593 = vsub.f32 %v1335, %v1434
        %v1594 = vsub.f32 %v1337, %v1434
        %v1595 = vmul.f32 %v1531, 1.442695
        %v1596 = vpow.pop %v1595
        %v1597 = vmul.f32 %v1532, 1.442695
        %v1598 = vpow.pop %v1597
        %v1599 = vmul.f32 %v1533, 1.442695
        %v1600 = vpow.pop %v1599
        %v1601 = vmul.f32 %v1534, 1.442695
        %v1602 = vpow.pop %v1601
        %v1603 = vmul.f32 %v1535, 1.442695
        %v1604 = vpow.pop %v1603
        %v1605 = vmul.f32 %v1536, 1.442695
        %v1606 = vpow.pop %v1605
        %v1607 = vmul.f32 %v1537, 1.442695
        %v1608 = vpow.pop %v1607
        %v1609 = vmul.f32 %v1538, 1.442695
        %v1610 = vpow.pop %v1609
        %v1611 = vmul.f32 %v1539, 1.442695
        %v1612 = vpow.pop %v1611
        %v1613 = vmul.f32 %v1540, 1.442695
        %v1614 = vpow.pop %v1613
        %v1615 = vmul.f32 %v1541, 1.442695
        %v1616 = vpow.pop %v1615
        %v1617 = vmul.f32 %v1542, 1.442695
        %v1618 = vpow.pop %v1617
        %v1619 = vmul.f32 %v1543, 1.442695
        %v1620 = vpow.pop %v1619
        %v1621 = vmul.f32 %v1544, 1.442695
        %v1622 = vpow.pop %v1621
        %v1623 = vmul.f32 %v1545, 1.442695
        %v1624 = vpow.pop %v1623
        %v1625 = vmul.f32 %v1546, 1.442695
        %v1626 = vpow.pop %v1625
        %v1627 = vmul.f32 %v1547, 1.442695
        %v1628 = vpow.pop %v1627
        %v1629 = vmul.f32 %v1548, 1.442695
        %v1630 = vpow.pop %v1629
        %v1631 = vmul.f32 %v1549, 1.442695
        %v1632 = vpow.pop %v1631
        %v1633 = vmul.f32 %v1550, 1.442695
        %v1634 = vpow.pop %v1633
        %v1635 = vmul.f32 %v1551, 1.442695
        %v1636 = vpow.pop %v1635
        %v1637 = vmul.f32 %v1552, 1.442695
        %v1638 = vpow.pop %v1637
        %v1639 = vmul.f32 %v1553, 1.442695
        %v1640 = vpow.pop %v1639
        %v1641 = vmul.f32 %v1554, 1.442695
        %v1642 = vpow.pop %v1641
        %v1643 = vmul.f32 %v1555, 1.442695
        %v1644 = vpow.pop %v1643
        %v1645 = vmul.f32 %v1556, 1.442695
        %v1646 = vpow.pop %v1645
        %v1647 = vmul.f32 %v1557, 1.442695
        %v1648 = vpow.pop %v1647
        %v1649 = vmul.f32 %v1558, 1.442695
        %v1650 = vpow.pop %v1649
        %v1651 = vmul.f32 %v1559, 1.442695
        %v1652 = vpow.pop %v1651
        %v1653 = vmul.f32 %v1560, 1.442695
        %v1654 = vpow.pop %v1653
        %v1655 = vmul.f32 %v1561, 1.442695
        %v1656 = vpow.pop %v1655
        %v1657 = vmul.f32 %v1562, 1.442695
        %v1658 = vpow.pop %v1657
        %v1659 = vmul.f32 %v1563, 1.442695
        %v1660 = vpow.pop %v1659
        %v1661 = vmul.f32 %v1564, 1.442695
        %v1662 = vpow.pop %v1661
        %v1663 = vmul.f32 %v1565, 1.442695
        %v1664 = vpow.pop %v1663
        %v1665 = vmul.f32 %v1566, 1.442695
        %v1666 = vpow.pop %v1665
        %v1667 = vmul.f32 %v1567, 1.442695
        %v1668 = vpow.pop %v1667
        %v1669 = vmul.f32 %v1568, 1.442695
        %v1670 = vpow.pop %v1669
        %v1671 = vmul.f32 %v1569, 1.442695
        %v1672 = vpow.pop %v1671
        %v1673 = vmul.f32 %v1570, 1.442695
        %v1674 = vpow.pop %v1673
        %v1675 = vmul.f32 %v1571, 1.442695
        %v1676 = vpow.pop %v1675
        %v1677 = vmul.f32 %v1572, 1.442695
        %v1678 = vpow.pop %v1677
        %v1679 = vmul.f32 %v1573, 1.442695
        %v1680 = vpow.pop %v1679
        %v1681 = vmul.f32 %v1574, 1.442695
        %v1682 = vpow.pop %v1681
        %v1683 = vmul.f32 %v1575, 1.442695
        %v1684 = vpow.pop %v1683
        %v1685 = vmul.f32 %v1576, 1.442695
        %v1686 = vpow.pop %v1685
        %v1687 = vmul.f32 %v1577, 1.442695
        %v1688 = vpow.pop %v1687
        %v1689 = vmul.f32 %v1578, 1.442695
        %v1690 = vpow.pop %v1689
        %v1691 = vmul.f32 %v1579, 1.442695
        %v1692 = vpow.pop %v1691
        %v1693 = vmul.f32 %v1580, 1.442695
        %v1694 = vpow.pop %v1693
        %v1695 = vmul.f32 %v1581, 1.442695
        %v1696 = vpow.pop %v1695
        %v1697 = vmul.f32 %v1582, 1.442695
        %v1698 = vpow.pop %v1697
        %v1699 = vmul.f32 %v1583, 1.442695
        %v1700 = vpow.pop %v1699
        %v1701 = vmul.f32 %v1584, 1.442695
        %v1702 = vpow.pop %v1701
        %v1703 = vmul.f32 %v1585, 1.442695
        %v1704 = vpow.pop %v1703
        %v1705 = vmul.f32 %v1586, 1.442695
        %v1706 = vpow.pop %v1705
        %v1707 = vmul.f32 %v1587, 1.442695
        %v1708 = vpow.pop %v1707
        %v1709 = vmul.f32 %v1588, 1.442695
        %v1710 = vpow.pop %v1709
        %v1711 = vmul.f32 %v1589, 1.442695
        %v1712 = vpow.pop %v1711
        %v1713 = vmul.f32 %v1590, 1.442695
        %v1714 = vpow.pop %v1713
        %v1715 = vmul.f32 %v1591, 1.442695
        %v1716 = vpow.pop %v1715
        %v1717 = vmul.f32 %v1592, 1.442695
        %v1718 = vpow.pop %v1717
        %v1719 = vmul.f32 %v1593, 1.442695
        %v1720 = vpow.pop %v1719
        %v1721 = vmul.f32 %v1594, 1.442695
        %v1722 = vpow.pop %v1721
        %v1723 = vmul.f32 %v1468, 0.0
        %v1724 = vmul.f32 %v1470, 0.0
        %v1725 = vmul.f32 %v1472, 0.0
        %v1726 = vmul.f32 %v1474, 0.0
        %v1727 = vmul.f32 %v1476, 0.0
        %v1728 = vmul.f32 %v1478, 0.0
        %v1729 = vmul.f32 %v1480, 0.0
        %v1730 = vmul.f32 %v1482, 0.0
        %v1731 = vmul.f32 %v1484, 0.0
        %v1732 = vmul.f32 %v1486, 0.0
        %v1733 = vmul.f32 %v1488, 0.0
        %v1734 = vmul.f32 %v1490, 0.0
        %v1735 = vmul.f32 %v1492, 0.0
        %v1736 = vmul.f32 %v1494, 0.0
        %v1737 = vmul.f32 %v1496, 0.0
        %v1738 = vmul.f32 %v1498, 0.0
        %v1739 = vmul.f32 %v1500, 0.0
        %v1740 = vmul.f32 %v1502, 0.0
        %v1741 = vmul.f32 %v1504, 0.0
        %v1742 = vmul.f32 %v1506, 0.0
        %v1743 = vmul.f32 %v1508, 0.0
        %v1744 = vmul.f32 %v1510, 0.0
        %v1745 = vmul.f32 %v1512, 0.0
        %v1746 = vmul.f32 %v1514, 0.0
        %v1747 = vmul.f32 %v1516, 0.0
        %v1748 = vmul.f32 %v1518, 0.0
        %v1749 = vmul.f32 %v1520, 0.0
        %v1750 = vmul.f32 %v1522, 0.0
        %v1751 = vmul.f32 %v1524, 0.0
        %v1752 = vmul.f32 %v1526, 0.0
        %v1753 = vmul.f32 %v1528, 0.0
        %v1754 = vmul.f32 %v1530, 0.0
        %v1755 = vadd.f32 %v1596, %v1598
        %1756 = vadd.xlane.f32.xlu0 %v1755
        %v1757 = vpop.xlane.xlu0 %1756
        %v1758 = vadd.f32 %v1600, %v1602
        %1759 = vadd.xlane.f32.xlu0 %v1758
        %v1760 = vpop.xlane.xlu0 %1759
        %v1761 = vadd.f32 %v1604, %v1606
        %1762 = vadd.xlane.f32.xlu0 %v1761
        %v1763 = vpop.xlane.xlu0 %1762
        %v1764 = vadd.f32 %v1608, %v1610
        %1765 = vadd.xlane.f32.xlu0 %v1764
        %v1766 = vpop.xlane.xlu0 %1765
        %v1767 = vadd.f32 %v1612, %v1614
        %1768 = vadd.xlane.f32.xlu0 %v1767
        %v1769 = vpop.xlane.xlu0 %1768
        %v1770 = vadd.f32 %v1616, %v1618
        %1771 = vadd.xlane.f32.xlu0 %v1770
        %v1772 = vpop.xlane.xlu0 %1771
        %v1773 = vadd.f32 %v1620, %v1622
        %1774 = vadd.xlane.f32.xlu0 %v1773
        %v1775 = vpop.xlane.xlu0 %1774
        %v1776 = vadd.f32 %v1624, %v1626
        %1777 = vadd.xlane.f32.xlu0 %v1776
        %v1778 = vpop.xlane.xlu0 %1777
        %v1779 = vadd.f32 %v1628, %v1630
        %1780 = vadd.xlane.f32.xlu0 %v1779
        %v1781 = vpop.xlane.xlu0 %1780
        %v1782 = vadd.f32 %v1632, %v1634
        %1783 = vadd.xlane.f32.xlu0 %v1782
        %v1784 = vpop.xlane.xlu0 %1783
        %v1785 = vadd.f32 %v1636, %v1638
        %1786 = vadd.xlane.f32.xlu0 %v1785
        %v1787 = vpop.xlane.xlu0 %1786
        %v1788 = vadd.f32 %v1640, %v1642
        %1789 = vadd.xlane.f32.xlu0 %v1788
        %v1790 = vpop.xlane.xlu0 %1789
        %v1791 = vadd.f32 %v1644, %v1646
        %1792 = vadd.xlane.f32.xlu0 %v1791
        %v1793 = vpop.xlane.xlu0 %1792
        %v1794 = vadd.f32 %v1648, %v1650
        %1795 = vadd.xlane.f32.xlu0 %v1794
        %v1796 = vpop.xlane.xlu0 %1795
        %v1797 = vadd.f32 %v1652, %v1654
        %1798 = vadd.xlane.f32.xlu0 %v1797
        %v1799 = vpop.xlane.xlu0 %1798
        %v1800 = vadd.f32 %v1656, %v1658
        %1801 = vadd.xlane.f32.xlu0 %v1800
        %v1802 = vpop.xlane.xlu0 %1801
        %v1803 = vadd.f32 %v1660, %v1662
        %1804 = vadd.xlane.f32.xlu0 %v1803
        %v1805 = vpop.xlane.xlu0 %1804
        %v1806 = vadd.f32 %v1664, %v1666
        %1807 = vadd.xlane.f32.xlu0 %v1806
        %v1808 = vpop.xlane.xlu0 %1807
        %v1809 = vadd.f32 %v1668, %v1670
        %1810 = vadd.xlane.f32.xlu0 %v1809
        %v1811 = vpop.xlane.xlu0 %1810
        %v1812 = vadd.f32 %v1672, %v1674
        %1813 = vadd.xlane.f32.xlu0 %v1812
        %v1814 = vpop.xlane.xlu0 %1813
        %v1815 = vadd.f32 %v1676, %v1678
        %1816 = vadd.xlane.f32.xlu0 %v1815
        %v1817 = vpop.xlane.xlu0 %1816
        %v1818 = vadd.f32 %v1680, %v1682
        %1819 = vadd.xlane.f32.xlu0 %v1818
        %v1820 = vpop.xlane.xlu0 %1819
        %v1821 = vadd.f32 %v1684, %v1686
        %1822 = vadd.xlane.f32.xlu0 %v1821
        %v1823 = vpop.xlane.xlu0 %1822
        %v1824 = vadd.f32 %v1688, %v1690
        %1825 = vadd.xlane.f32.xlu0 %v1824
        %v1826 = vpop.xlane.xlu0 %1825
        %v1827 = vadd.f32 %v1692, %v1694
        %1828 = vadd.xlane.f32.xlu0 %v1827
        %v1829 = vpop.xlane.xlu0 %1828
        %v1830 = vadd.f32 %v1696, %v1698
        %1831 = vadd.xlane.f32.xlu0 %v1830
        %v1832 = vpop.xlane.xlu0 %1831
        %v1833 = vadd.f32 %v1700, %v1702
        %1834 = vadd.xlane.f32.xlu0 %v1833
        %v1835 = vpop.xlane.xlu0 %1834
        %v1836 = vadd.f32 %v1704, %v1706
        %1837 = vadd.xlane.f32.xlu0 %v1836
        %v1838 = vpop.xlane.xlu0 %1837
        %v1839 = vadd.f32 %v1708, %v1710
        %1840 = vadd.xlane.f32.xlu0 %v1839
        %v1841 = vpop.xlane.xlu0 %1840
        %v1842 = vadd.f32 %v1712, %v1714
        %1843 = vadd.xlane.f32.xlu0 %v1842
        %v1844 = vpop.xlane.xlu0 %1843
        %v1845 = vadd.f32 %v1716, %v1718
        %1846 = vadd.xlane.f32.xlu0 %v1845
        %v1847 = vpop.xlane.xlu0 %1846
        %v1848 = vadd.f32 %v1720, %v1722
        %1849 = vadd.xlane.f32.xlu0 %v1848
        %v1850 = vpop.xlane.xlu0 %1849
        %v1851 = vadd.f32 %v1723, %v1757
        %v1852 = vadd.f32 %v1724, %v1760
        %v1853 = vadd.f32 %v1725, %v1763
        %v1854 = vadd.f32 %v1726, %v1766
        %v1855 = vadd.f32 %v1727, %v1769
        %v1856 = vadd.f32 %v1728, %v1772
        %v1857 = vadd.f32 %v1729, %v1775
        %v1858 = vadd.f32 %v1730, %v1778
        %v1859 = vadd.f32 %v1731, %v1781
        %v1860 = vadd.f32 %v1732, %v1784
        %v1861 = vadd.f32 %v1733, %v1787
        %v1862 = vadd.f32 %v1734, %v1790
        %v1863 = vadd.f32 %v1735, %v1793
        %v1864 = vadd.f32 %v1736, %v1796
        %v1865 = vadd.f32 %v1737, %v1799
        %v1866 = vadd.f32 %v1738, %v1802
        %v1867 = vadd.f32 %v1739, %v1805
        %v1868 = vadd.f32 %v1740, %v1808
        %v1869 = vadd.f32 %v1741, %v1811
        %v1870 = vadd.f32 %v1742, %v1814
        %v1871 = vadd.f32 %v1743, %v1817
        %v1872 = vadd.f32 %v1744, %v1820
        %v1873 = vadd.f32 %v1745, %v1823
        %v1874 = vadd.f32 %v1746, %v1826
        %v1875 = vadd.f32 %v1747, %v1829
        %v1876 = vadd.f32 %v1748, %v1832
        %v1877 = vadd.f32 %v1749, %v1835
        %v1878 = vadd.f32 %v1750, %v1838
        %v1879 = vadd.f32 %v1751, %v1841
        %v1880 = vadd.f32 %v1752, %v1844
        %v1881 = vadd.f32 %v1753, %v1847
        %v1882 = vadd.f32 %v1754, %v1850
        %v1883 = vpack.c.bf16 %v1600, %v1596
        %v1884 = vpack.c.bf16 %v1602, %v1598
        %v1885 = vpack.c.bf16 %v1608, %v1604
        %v1886 = vpack.c.bf16 %v1610, %v1606
        %v1887 = vpack.c.bf16 %v1616, %v1612
        %v1888 = vpack.c.bf16 %v1618, %v1614
        %v1889 = vpack.c.bf16 %v1624, %v1620
        %v1890 = vpack.c.bf16 %v1626, %v1622
        %v1891 = vpack.c.bf16 %v1632, %v1628
        %v1892 = vpack.c.bf16 %v1634, %v1630
        %v1893 = vpack.c.bf16 %v1640, %v1636
        %v1894 = vpack.c.bf16 %v1642, %v1638
        %v1895 = vpack.c.bf16 %v1648, %v1644
        %v1896 = vpack.c.bf16 %v1650, %v1646
        %v1897 = vpack.c.bf16 %v1656, %v1652
        %v1898 = vpack.c.bf16 %v1658, %v1654
        %v1899 = vpack.c.bf16 %v1664, %v1660
        %v1900 = vpack.c.bf16 %v1666, %v1662
        %v1901 = vpack.c.bf16 %v1672, %v1668
        %v1902 = vpack.c.bf16 %v1674, %v1670
        %v1903 = vpack.c.bf16 %v1680, %v1676
        %v1904 = vpack.c.bf16 %v1682, %v1678
        %v1905 = vpack.c.bf16 %v1688, %v1684
        %v1906 = vpack.c.bf16 %v1690, %v1686
        %v1907 = vpack.c.bf16 %v1696, %v1692
        %v1908 = vpack.c.bf16 %v1698, %v1694
        %v1909 = vpack.c.bf16 %v1704, %v1700
        %v1910 = vpack.c.bf16 %v1706, %v1702
        %v1911 = vpack.c.bf16 %v1712, %v1708
        %v1912 = vpack.c.bf16 %v1714, %v1710
        %v1913 = vpack.c.bf16 %v1720, %v1716
        %v1914 = vpack.c.bf16 %v1722, %v1718
        %v1947 = vunpack.c.l.b16 %v922
        %v1948 = vunpack.c.l.b16 %v923
        %v1949 = vunpack.c.l.b16 %v924
        %v1950 = vunpack.c.l.b16 %v925
        %v1951 = vunpack.c.l.b16 %v926
        %v1952 = vunpack.c.l.b16 %v927
        %v1953 = vunpack.c.l.b16 %v928
        %v1954 = vunpack.c.l.b16 %v929
        %v1955 = vunpack.c.l.b16 %v930
        %v1956 = vunpack.c.l.b16 %v931
        %v1957 = vunpack.c.l.b16 %v932
        %v1958 = vunpack.c.l.b16 %v933
        %v1959 = vunpack.c.l.b16 %v934
        %v1960 = vunpack.c.l.b16 %v935
        %v1961 = vunpack.c.l.b16 %v936
        %v1962 = vunpack.c.l.b16 %v937
        %v1963 = vunpack.c.l.b16 %v938
        %v1964 = vunpack.c.l.b16 %v939
        %v1965 = vunpack.c.l.b16 %v940
        %v1966 = vunpack.c.l.b16 %v941
        %v1967 = vunpack.c.l.b16 %v942
        %v1968 = vunpack.c.l.b16 %v943
        %v1969 = vunpack.c.l.b16 %v944
        %v1970 = vunpack.c.l.b16 %v945
        %v1971 = vunpack.c.l.b16 %v946
        %v1972 = vunpack.c.l.b16 %v947
        %v1973 = vunpack.c.l.b16 %v948
        %v1974 = vunpack.c.l.b16 %v949
        %v1975 = vunpack.c.l.b16 %v950
        %v1976 = vunpack.c.l.b16 %v951
        %v1977 = vunpack.c.l.b16 %v952
        %v1978 = vunpack.c.l.b16 %v953
        %v1979 = vpack.c.b16 %v1948, %v1947
        %v1980 = vpack.c.b16 %v1950, %v1949
        %v1981 = vpack.c.b16 %v1952, %v1951
        %v1982 = vpack.c.b16 %v1954, %v1953
        %v1983 = vpack.c.b16 %v1956, %v1955
        %v1984 = vpack.c.b16 %v1958, %v1957
        %v1985 = vpack.c.b16 %v1960, %v1959
        %v1986 = vpack.c.b16 %v1962, %v1961
        %v1987 = vpack.c.b16 %v1964, %v1963
        %v1988 = vpack.c.b16 %v1966, %v1965
        %v1989 = vpack.c.b16 %v1968, %v1967
        %v1990 = vpack.c.b16 %v1970, %v1969
        %v1991 = vpack.c.b16 %v1972, %v1971
        %v1992 = vpack.c.b16 %v1974, %v1973
        %v1993 = vpack.c.b16 %v1976, %v1975
        %v1994 = vpack.c.b16 %v1978, %v1977
        %2011 = vmatprep.subr.bf16.mxu0 0
        %2012 = vmatpush1.bf16.msra.mxu0 %v1979
        %2013 = vmatprep.subr.bf16.mxu0 0
        %2014 = vmatpush1.bf16.msra.mxu0 %v1980
        %2015 = vmatprep.subr.bf16.mxu0 0
        %2016 = vmatpush1.bf16.msra.mxu0 %v1981
        %2017 = vmatprep.subr.bf16.mxu0 0
        %2018 = vmatpush1.bf16.msra.mxu0 %v1982
        %2019 = vmatprep.subr.bf16.mxu0 0
        %2020 = vmatpush1.bf16.msra.mxu0 %v1983
        %2021 = vmatprep.subr.bf16.mxu0 0
        %2022 = vmatpush1.bf16.msra.mxu0 %v1984
        %2023 = vmatprep.subr.bf16.mxu0 0
        %2024 = vmatpush1.bf16.msra.mxu0 %v1985
        %2025 = vmatprep.subr.bf16.mxu0 0
        %2026 = vmatpush1.bf16.msra.mxu0 %v1986
        %2027 = vmatprep.subr.bf16.mxu0 0
        %2028 = vmatpush1.bf16.msra.mxu0 %v1987
        %2029 = vmatprep.subr.bf16.mxu0 0
        %2030 = vmatpush1.bf16.msra.mxu0 %v1988
        %2031 = vmatprep.subr.bf16.mxu0 0
        %2032 = vmatpush1.bf16.msra.mxu0 %v1989
        %2033 = vmatprep.subr.bf16.mxu0 0
        %2034 = vmatpush1.bf16.msra.mxu0 %v1990
        %2035 = vmatprep.subr.bf16.mxu0 0
        %2036 = vmatpush1.bf16.msra.mxu0 %v1991
        %2037 = vmatprep.subr.bf16.mxu0 0
        %2038 = vmatpush1.bf16.msra.mxu0 %v1992
        %2039 = vmatprep.subr.bf16.mxu0 0
        %2040 = vmatpush1.bf16.msra.mxu0 %v1993
        %2041 = vmatprep.subr.bf16.mxu0 0
        %2042 = vmatpush1.bf16.msra.mxu0 %v1994
        %2043 = vmatprep.mubr.bf16.mxu0 %v1884
        %2044 = vmatmul.mubr.bf16.gmra.mrb[0].mxu0 %v1883
        %v2045 = vpop.f32.mrb[0].mxu0
        %v2046 = vadd.f32 0.0, %v2045
        %v2047 = vpop.f32.mrb[0].mxu0
        %v2048 = vpop.f32.mrb[0].mxu0
        %v2049 = vadd.f32 0.0, %v2048
        %v2050 = vpop.f32.mrb[0].mxu0
        %2051 = vmatprep.mubr.bf16.mxu0 %v1886
        %2052 = vmatmul.mubr.bf16.gmra.mrb[0].mxu0 %v1885
        %v2053 = vpop.f32.mrb[0].mxu0
        %v2054 = vadd.f32 0.0, %v2053
        %v2055 = vpop.f32.mrb[0].mxu0
        %v2056 = vpop.f32.mrb[0].mxu0
        %v2057 = vadd.f32 0.0, %v2056
        %v2058 = vpop.f32.mrb[0].mxu0
        %2059 = vmatprep.mubr.bf16.mxu0 %v1888
        %2060 = vmatmul.mubr.bf16.gmra.mrb[0].mxu0 %v1887
        %v2061 = vpop.f32.mrb[0].mxu0
        %v2062 = vadd.f32 0.0, %v2061
        %v2063 = vpop.f32.mrb[0].mxu0
        %v2064 = vpop.f32.mrb[0].mxu0
        %v2065 = vadd.f32 0.0, %v2064
        %v2066 = vpop.f32.mrb[0].mxu0
        %2067 = vmatprep.mubr.bf16.mxu0 %v1890
        %2068 = vmatmul.mubr.bf16.gmra.mrb[0].mxu0 %v1889
        %v2069 = vpop.f32.mrb[0].mxu0
        %v2070 = vadd.f32 0.0, %v2069
        %v2071 = vpop.f32.mrb[0].mxu0
        %v2072 = vpop.f32.mrb[0].mxu0
        %v2073 = vadd.f32 0.0, %v2072
        %v2074 = vpop.f32.mrb[0].mxu0
        %2075 = vmatprep.mubr.bf16.mxu0 %v1892
        %2076 = vmatmul.mubr.bf16.gmra.mrb[0].mxu0 %v1891
        %v2077 = vpop.f32.mrb[0].mxu0
        %v2078 = vadd.f32 0.0, %v2077
        %v2079 = vpop.f32.mrb[0].mxu0
        %v2080 = vpop.f32.mrb[0].mxu0
        %v2081 = vadd.f32 0.0, %v2080
        %v2082 = vpop.f32.mrb[0].mxu0
        %2083 = vmatprep.mubr.bf16.mxu0 %v1894
        %2084 = vmatmul.mubr.bf16.gmra.mrb[0].mxu0 %v1893
        %v2085 = vpop.f32.mrb[0].mxu0
        %v2086 = vadd.f32 0.0, %v2085
        %v2087 = vpop.f32.mrb[0].mxu0
        %v2088 = vpop.f32.mrb[0].mxu0
        %v2089 = vadd.f32 0.0, %v2088
        %v2090 = vpop.f32.mrb[0].mxu0
        %2091 = vmatprep.mubr.bf16.mxu0 %v1896
        %2092 = vmatmul.mubr.bf16.gmra.mrb[0].mxu0 %v1895
        %v2093 = vpop.f32.mrb[0].mxu0
        %v2094 = vadd.f32 0.0, %v2093
        %v2095 = vpop.f32.mrb[0].mxu0
        %v2096 = vpop.f32.mrb[0].mxu0
        %v2097 = vadd.f32 0.0, %v2096
        %v2098 = vpop.f32.mrb[0].mxu0
        %2099 = vmatprep.mubr.bf16.mxu0 %v1898
        %2100 = vmatmul.mubr.bf16.gmra.mrb[0].mxu0 %v1897
        %v2101 = vpop.f32.mrb[0].mxu0
        %v2102 = vadd.f32 0.0, %v2101
        %v2103 = vpop.f32.mrb[0].mxu0
        %v2104 = vpop.f32.mrb[0].mxu0
        %v2105 = vadd.f32 0.0, %v2104
        %v2106 = vpop.f32.mrb[0].mxu0
        %2107 = vmatprep.mubr.bf16.mxu0 %v1900
        %2108 = vmatmul.mubr.bf16.gmra.mrb[0].mxu0 %v1899
        %v2109 = vpop.f32.mrb[0].mxu0
        %v2110 = vadd.f32 0.0, %v2109
        %v2111 = vpop.f32.mrb[0].mxu0
        %v2112 = vpop.f32.mrb[0].mxu0
        %v2113 = vadd.f32 0.0, %v2112
        %v2114 = vpop.f32.mrb[0].mxu0
        %2115 = vmatprep.mubr.bf16.mxu0 %v1902
        %2116 = vmatmul.mubr.bf16.gmra.mrb[0].mxu0 %v1901
        %v2117 = vpop.f32.mrb[0].mxu0
        %v2118 = vadd.f32 0.0, %v2117
        %v2119 = vpop.f32.mrb[0].mxu0
        %v2120 = vpop.f32.mrb[0].mxu0
        %v2121 = vadd.f32 0.0, %v2120
        %v2122 = vpop.f32.mrb[0].mxu0
        %2123 = vmatprep.mubr.bf16.mxu0 %v1904
        %2124 = vmatmul.mubr.bf16.gmra.mrb[0].mxu0 %v1903
        %v2125 = vpop.f32.mrb[0].mxu0
        %v2126 = vadd.f32 0.0, %v2125
        %v2127 = vpop.f32.mrb[0].mxu0
        %v2128 = vpop.f32.mrb[0].mxu0
        %v2129 = vadd.f32 0.0, %v2128
        %v2130 = vpop.f32.mrb[0].mxu0
        %2131 = vmatprep.mubr.bf16.mxu0 %v1906
        %2132 = vmatmul.mubr.bf16.gmra.mrb[0].mxu0 %v1905
        %v2133 = vpop.f32.mrb[0].mxu0
        %v2134 = vadd.f32 0.0, %v2133
        %v2135 = vpop.f32.mrb[0].mxu0
        %v2136 = vpop.f32.mrb[0].mxu0
        %v2137 = vadd.f32 0.0, %v2136
        %v2138 = vpop.f32.mrb[0].mxu0
        %2139 = vmatprep.mubr.bf16.mxu0 %v1908
        %2140 = vmatmul.mubr.bf16.gmra.mrb[0].mxu0 %v1907
        %v2141 = vpop.f32.mrb[0].mxu0
        %v2142 = vadd.f32 0.0, %v2141
        %v2143 = vpop.f32.mrb[0].mxu0
        %v2144 = vpop.f32.mrb[0].mxu0
        %v2145 = vadd.f32 0.0, %v2144
        %v2146 = vpop.f32.mrb[0].mxu0
        %2147 = vmatprep.mubr.bf16.mxu0 %v1910
        %2148 = vmatmul.mubr.bf16.gmra.mrb[0].mxu0 %v1909
        %v2149 = vpop.f32.mrb[0].mxu0
        %v2150 = vadd.f32 0.0, %v2149
        %v2151 = vpop.f32.mrb[0].mxu0
        %v2152 = vpop.f32.mrb[0].mxu0
        %v2153 = vadd.f32 0.0, %v2152
        %v2154 = vpop.f32.mrb[0].mxu0
        %2155 = vmatprep.mubr.bf16.mxu0 %v1912
        %2156 = vmatmul.mubr.bf16.gmra.mrb[0].mxu0 %v1911
        %v2157 = vpop.f32.mrb[0].mxu0
        %v2158 = vadd.f32 0.0, %v2157
        %v2159 = vpop.f32.mrb[0].mxu0
        %v2160 = vpop.f32.mrb[0].mxu0
        %v2161 = vadd.f32 0.0, %v2160
        %v2162 = vpop.f32.mrb[0].mxu0
        %2163 = vmatprep.mubr.bf16.mxu0 %v1914
        %2164 = vmatmul.mubr.bf16.gmra.mrb[0].mxu0 %v1913
        %v2165 = vpop.f32.mrb[0].mxu0
        %v2166 = vadd.f32 0.0, %v2165
        %v2167 = vpop.f32.mrb[0].mxu0
        %v2168 = vpop.f32.mrb[0].mxu0
        %v2169 = vadd.f32 0.0, %v2168
        %v2170 = vpop.f32.mrb[0].mxu0
        %2171 = vdwg.mxu0
        %v2172 = vadd.f32 %v1723, %v2046
        %v2173 = vadd.f32 %v1724, %v2049
        %v2174 = vadd.f32 %v1725, %v2054
        %v2175 = vadd.f32 %v1726, %v2057
        %v2176 = vadd.f32 %v1727, %v2062
        %v2177 = vadd.f32 %v1728, %v2065
        %v2178 = vadd.f32 %v1729, %v2070
        %v2179 = vadd.f32 %v1730, %v2073
        %v2180 = vadd.f32 %v1731, %v2078
        %v2181 = vadd.f32 %v1732, %v2081
        %v2182 = vadd.f32 %v1733, %v2086
        %v2183 = vadd.f32 %v1734, %v2089
        %v2184 = vadd.f32 %v1735, %v2094
        %v2185 = vadd.f32 %v1736, %v2097
        %v2186 = vadd.f32 %v1737, %v2102
        %v2187 = vadd.f32 %v1738, %v2105
        %v2188 = vadd.f32 %v1739, %v2110
        %v2189 = vadd.f32 %v1740, %v2113
        %v2190 = vadd.f32 %v1741, %v2118
        %v2191 = vadd.f32 %v1742, %v2121
        %v2192 = vadd.f32 %v1743, %v2126
        %v2193 = vadd.f32 %v1744, %v2129
        %v2194 = vadd.f32 %v1745, %v2134
        %v2195 = vadd.f32 %v1746, %v2137
        %v2196 = vadd.f32 %v1747, %v2142
        %v2197 = vadd.f32 %v1748, %v2145
        %v2198 = vadd.f32 %v1749, %v2150
        %v2199 = vadd.f32 %v1750, %v2153
        %v2200 = vadd.f32 %v1751, %v2158
        %v2201 = vadd.f32 %v1752, %v2161
        %v2202 = vadd.f32 %v1753, %v2166
        %v2203 = vadd.f32 %v1754, %v2169
        %v2204 = vrcp.pop %v1851
        %v2205 = vrcp.pop %v1852
        %v2206 = vrcp.pop %v1853
        %v2207 = vrcp.pop %v1854
        %v2208 = vrcp.pop %v1855
        %v2209 = vrcp.pop %v1856
        %v2210 = vrcp.pop %v1857
        %v2211 = vrcp.pop %v1858
        %v2212 = vrcp.pop %v1859
        %v2213 = vrcp.pop %v1860
        %v2214 = vrcp.pop %v1861
        %v2215 = vrcp.pop %v1862
        %v2216 = vrcp.pop %v1863
        %v2217 = vrcp.pop %v1864
        %v2218 = vrcp.pop %v1865
        %v2219 = vrcp.pop %v1866
        %v2220 = vrcp.pop %v1867
        %v2221 = vrcp.pop %v1868
        %v2222 = vrcp.pop %v1869
        %v2223 = vrcp.pop %v1870
        %v2224 = vrcp.pop %v1871
        %v2225 = vrcp.pop %v1872
        %v2226 = vrcp.pop %v1873
        %v2227 = vrcp.pop %v1874
        %v2228 = vrcp.pop %v1875
        %v2229 = vrcp.pop %v1876
        %v2230 = vrcp.pop %v1877
        %v2231 = vrcp.pop %v1878
        %v2232 = vrcp.pop %v1879
        %v2233 = vrcp.pop %v1880
        %v2234 = vrcp.pop %v1881
        %v2235 = vrcp.pop %v1882
        %v2236 = vmul.f32 %v2172, %v2204
        %v2237 = vmul.f32 %v2173, %v2205
        %v2238 = vmul.f32 %v2174, %v2206
        %v2239 = vmul.f32 %v2175, %v2207
        %v2240 = vmul.f32 %v2176, %v2208
        %v2241 = vmul.f32 %v2177, %v2209
        %v2242 = vmul.f32 %v2178, %v2210
        %v2243 = vmul.f32 %v2179, %v2211
        %v2244 = vmul.f32 %v2180, %v2212
        %v2245 = vmul.f32 %v2181, %v2213
        %v2246 = vmul.f32 %v2182, %v2214
        %v2247 = vmul.f32 %v2183, %v2215
        %v2248 = vmul.f32 %v2184, %v2216
        %v2249 = vmul.f32 %v2185, %v2217
        %v2250 = vmul.f32 %v2186, %v2218
        %v2251 = vmul.f32 %v2187, %v2219
        %v2252 = vmul.f32 %v2188, %v2220
        %v2253 = vmul.f32 %v2189, %v2221
        %v2254 = vmul.f32 %v2190, %v2222
        %v2255 = vmul.f32 %v2191, %v2223
        %v2256 = vmul.f32 %v2192, %v2224
        %v2257 = vmul.f32 %v2193, %v2225
        %v2258 = vmul.f32 %v2194, %v2226
        %v2259 = vmul.f32 %v2195, %v2227
        %v2260 = vmul.f32 %v2196, %v2228
        %v2261 = vmul.f32 %v2197, %v2229
        %v2262 = vmul.f32 %v2198, %v2230
        %v2263 = vmul.f32 %v2199, %v2231
        %v2264 = vmul.f32 %v2200, %v2232
        %v2265 = vmul.f32 %v2201, %v2233
        %v2266 = vmul.f32 %v2202, %v2234
        %v2267 = vmul.f32 %v2203, %v2235
        %v2268 = vld [vmem:[%s4] sm:$0xf]
        %v2269 = vld [vmem:[%s4 + $0x4] sm:$0xf]
        %v2270 = vld [vmem:[%s4 + $0x8] sm:$0xf]
        %v2271 = vld [vmem:[%s4 + $0xc] sm:$0xf]
        %v2272 = vld [vmem:[%s4 + $0x10] sm:$0xf]
        %v2273 = vld [vmem:[%s4 + $0x14] sm:$0xf]
        %v2274 = vld [vmem:[%s4 + $0x18] sm:$0xf]
        %v2275 = vld [vmem:[%s4 + $0x1c] sm:$0xf]
        %v2276 = vpack.c.bf16 %v2237, %v2236
        %v2277 = vpack.c.bf16 %v2239, %v2238
        %v2278 = vpack.c.bf16 %v2241, %v2240
        %v2279 = vpack.c.bf16 %v2243, %v2242
        %v2280 = vpack.c.bf16 %v2245, %v2244
        %v2281 = vpack.c.bf16 %v2247, %v2246
        %v2282 = vpack.c.bf16 %v2249, %v2248
        %v2283 = vpack.c.bf16 %v2251, %v2250
        %v2284 = vpack.c.bf16 %v2253, %v2252
        %v2285 = vpack.c.bf16 %v2255, %v2254
        %v2286 = vpack.c.bf16 %v2257, %v2256
        %v2287 = vpack.c.bf16 %v2259, %v2258
        %v2288 = vpack.c.bf16 %v2261, %v2260
        %v2289 = vpack.c.bf16 %v2263, %v2262
        %v2290 = vpack.c.bf16 %v2265, %v2264
        %v2291 = vpack.c.bf16 %v2267, %v2266
        %v2292 = vld [vmem:[%s5] sm:$0xff]
        %v2293 = vld [vmem:[%s5 + $0x8] sm:$0xff]
        %v2294 = vld [vmem:[%s5 + $0x10] sm:$0xff]
        %v2295 = vld [vmem:[%s5 + $0x18] sm:$0xff]
        %v2296 = vld [vmem:[%s5 + $0x20] sm:$0xff]
        %v2297 = vld [vmem:[%s5 + $0x28] sm:$0xff]
        %v2298 = vld [vmem:[%s5 + $0x30] sm:$0xff]
        %v2299 = vld [vmem:[%s5 + $0x38] sm:$0xff]
        %2301 = vset.pattern.permute.xlu0 0
        %2302 = vperm.xlu0 %2301, %v2292
        %v2303 = vpop.permute.xlu0 %2302
        %2306 = vset.pattern.permute.xlu0 0
        %2307 = vperm.xlu0 %2306, %v2293
        %v2308 = vpop.permute.xlu0 %2307
        %2311 = vset.pattern.permute.xlu0 0
        %2312 = vperm.xlu0 %2311, %v2294
        %v2313 = vpop.permute.xlu0 %2312
        %2316 = vset.pattern.permute.xlu0 0
        %2317 = vperm.xlu0 %2316, %v2295
        %v2318 = vpop.permute.xlu0 %2317
        %2321 = vset.pattern.permute.xlu0 0
        %2322 = vperm.xlu0 %2321, %v2296
        %v2323 = vpop.permute.xlu0 %2322
        %2326 = vset.pattern.permute.xlu0 0
        %2327 = vperm.xlu0 %2326, %v2297
        %v2328 = vpop.permute.xlu0 %2327
        %2331 = vset.pattern.permute.xlu0 0
        %2332 = vperm.xlu0 %2331, %v2298
        %v2333 = vpop.permute.xlu0 %2332
        %2336 = vset.pattern.permute.xlu0 0
        %2337 = vperm.xlu0 %2336, %v2299
        %v2338 = vpop.permute.xlu0 %2337
        %v2348 = vunpack.c.l.b16 %v2268
        %v2349 = vunpack.c.l.b16 %v2269
        %v2350 = vunpack.c.l.b16 %v2270
        %v2351 = vunpack.c.l.b16 %v2271
        %v2352 = vunpack.c.l.b16 %v2272
        %v2353 = vunpack.c.l.b16 %v2273
        %v2354 = vunpack.c.l.b16 %v2274
        %v2355 = vunpack.c.l.b16 %v2275
        %v2356 = vpack.c.b16 %v2349, %v2348
        %v2357 = vpack.c.b16 %v2351, %v2350
        %v2358 = vpack.c.b16 %v2353, %v2352
        %v2359 = vpack.c.b16 %v2355, %v2354
        %2364 = vmatprep.subr.bf16.mxu0 0
        %2365 = vmatpush1.bf16.xpose.msra.mxu0 %v2276
        %2366 = vmatprep.subr.bf16.mxu0 0
        %2367 = vmatpush1.bf16.xpose.msra.mxu0 %v2277
        %2368 = vmatprep.subr.bf16.mxu0 0
        %2369 = vmatpush1.bf16.xpose.msra.mxu0 %v2278
        %2370 = vmatprep.subr.bf16.mxu0 0
        %2371 = vmatpush1.bf16.xpose.msra.mxu0 %v2279
        %2372 = vmatprep.subr.bf16.mxu0 0
        %2373 = vmatpush1.bf16.xpose.msra.mxu0 %v2280
        %2374 = vmatprep.subr.bf16.mxu0 0
        %2375 = vmatpush1.bf16.xpose.msra.mxu0 %v2281
        %2376 = vmatprep.subr.bf16.mxu0 0
        %2377 = vmatpush1.bf16.xpose.msra.mxu0 %v2282
        %2378 = vmatprep.subr.bf16.mxu0 0
        %2379 = vmatpush1.bf16.xpose.msra.mxu0 %v2283
        %2380 = vmatprep.subr.bf16.mxu0 0
        %2381 = vmatpush1.bf16.xpose.msra.mxu0 %v2284
        %2382 = vmatprep.subr.bf16.mxu0 0
        %2383 = vmatpush1.bf16.xpose.msra.mxu0 %v2285
        %2384 = vmatprep.subr.bf16.mxu0 0
        %2385 = vmatpush1.bf16.xpose.msra.mxu0 %v2286
        %2386 = vmatprep.subr.bf16.mxu0 0
        %2387 = vmatpush1.bf16.xpose.msra.mxu0 %v2287
        %2388 = vmatprep.subr.bf16.mxu0 0
        %2389 = vmatpush1.bf16.xpose.msra.mxu0 %v2288
        %2390 = vmatprep.subr.bf16.mxu0 0
        %2391 = vmatpush1.bf16.xpose.msra.mxu0 %v2289
        %2392 = vmatprep.subr.bf16.mxu0 0
        %2393 = vmatpush1.bf16.xpose.msra.mxu0 %v2290
        %2394 = vmatprep.subr.bf16.mxu0 0
        %2395 = vmatpush1.bf16.xpose.msra.mxu0 %v2291
        %2396 = vmatprep.mubr.bf16.mxu0 0
        %2397 = vmatmul.mubr.bf16.gmra.mrb[0].mxu0 %v2356
        %v2398 = vpop.f32.mrb[0].mxu0
        %v2399 = vadd.f32 %v2303, %v2398
        %v2400 = vpop.f32.mrb[0].mxu0
        %v2401 = vadd.f32 %v2303, %v2400
        %v2402 = vpop.f32.mrb[0].mxu0
        %v2403 = vadd.f32 %v2308, %v2402
        %v2404 = vpop.f32.mrb[0].mxu0
        %v2405 = vadd.f32 %v2308, %v2404
        %2406 = vmatprep.mubr.bf16.mxu0 0
        %2407 = vmatmul.mubr.bf16.gmra.mrb[0].mxu0 %v2357
        %v2408 = vpop.f32.mrb[0].mxu0
        %v2409 = vadd.f32 %v2313, %v2408
        %v2410 = vpop.f32.mrb[0].mxu0
        %v2411 = vadd.f32 %v2313, %v2410
        %v2412 = vpop.f32.mrb[0].mxu0
        %v2413 = vadd.f32 %v2318, %v2412
        %v2414 = vpop.f32.mrb[0].mxu0
        %v2415 = vadd.f32 %v2318, %v2414
        %2416 = vmatprep.mubr.bf16.mxu0 0
        %2417 = vmatmul.mubr.bf16.gmra.mrb[0].mxu0 %v2358
        %v2418 = vpop.f32.mrb[0].mxu0
        %v2419 = vadd.f32 %v2323, %v2418
        %v2420 = vpop.f32.mrb[0].mxu0
        %v2421 = vadd.f32 %v2323, %v2420
        %v2422 = vpop.f32.mrb[0].mxu0
        %v2423 = vadd.f32 %v2328, %v2422
        %v2424 = vpop.f32.mrb[0].mxu0
        %v2425 = vadd.f32 %v2328, %v2424
        %2426 = vmatprep.mubr.bf16.mxu0 0
        %2427 = vmatmul.mubr.bf16.gmra.mrb[0].mxu0 %v2359
        %v2428 = vpop.f32.mrb[0].mxu0
        %v2429 = vadd.f32 %v2333, %v2428
        %v2430 = vpop.f32.mrb[0].mxu0
        %v2431 = vadd.f32 %v2333, %v2430
        %v2432 = vpop.f32.mrb[0].mxu0
        %v2433 = vadd.f32 %v2338, %v2432
        %v2434 = vpop.f32.mrb[0].mxu0
        %v2435 = vadd.f32 %v2338, %v2434
        %2436 = vdwg.mxu0
        %v2437 = vld [vmem:[%s845] sm:$0xff]
        %v2438 = vld [vmem:[%s845 + $0x8] sm:$0xff]
        %v2439 = vld [vmem:[%s845 + $0x10] sm:$0xff]
        %v2440 = vld [vmem:[%s845 + $0x18] sm:$0xff]
        %v2441 = vld [vmem:[%s845 + $0x20] sm:$0xff]
        %v2442 = vld [vmem:[%s845 + $0x28] sm:$0xff]
        %v2443 = vld [vmem:[%s845 + $0x30] sm:$0xff]
        %v2444 = vld [vmem:[%s845 + $0x38] sm:$0xff]
        %v2445 = vld [vmem:[%s845 + $0x40] sm:$0xff]
        %v2446 = vld [vmem:[%s845 + $0x48] sm:$0xff]
        %v2447 = vld [vmem:[%s845 + $0x50] sm:$0xff]
        %v2448 = vld [vmem:[%s845 + $0x58] sm:$0xff]
        %v2449 = vld [vmem:[%s845 + $0x60] sm:$0xff]
        %v2450 = vld [vmem:[%s845 + $0x68] sm:$0xff]
        %v2451 = vld [vmem:[%s845 + $0x70] sm:$0xff]
        %v2452 = vld [vmem:[%s845 + $0x78] sm:$0xff]
        %v2453 = vadd.f32 %v2399, %v2437
        %v2454 = vadd.f32 %v2401, %v2438
        %v2455 = vadd.f32 %v2403, %v2439
        %v2456 = vadd.f32 %v2405, %v2440
        %v2457 = vadd.f32 %v2409, %v2441
        %v2458 = vadd.f32 %v2411, %v2442
        %v2459 = vadd.f32 %v2413, %v2443
        %v2460 = vadd.f32 %v2415, %v2444
        %v2461 = vadd.f32 %v2419, %v2445
        %v2462 = vadd.f32 %v2421, %v2446
        %v2463 = vadd.f32 %v2423, %v2447
        %v2464 = vadd.f32 %v2425, %v2448
        %v2465 = vadd.f32 %v2429, %v2449
        %v2466 = vadd.f32 %v2431, %v2450
        %v2467 = vadd.f32 %v2433, %v2451
        %v2468 = vadd.f32 %v2435, %v2452
        %2469 = vst [vmem:[%s855] sm:$0xff] %v2453
        %2470 = vst [vmem:[%s855 + $0x8] sm:$0xff] %v2454
        %2471 = vst [vmem:[%s855 + $0x10] sm:$0xff] %v2455
        %2472 = vst [vmem:[%s855 + $0x18] sm:$0xff] %v2456
        %2473 = vst [vmem:[%s855 + $0x20] sm:$0xff] %v2457
        %2474 = vst [vmem:[%s855 + $0x28] sm:$0xff] %v2458
        %2475 = vst [vmem:[%s855 + $0x30] sm:$0xff] %v2459
        %2476 = vst [vmem:[%s855 + $0x38] sm:$0xff] %v2460
        %2477 = vst [vmem:[%s855 + $0x40] sm:$0xff] %v2461
        %2478 = vst [vmem:[%s855 + $0x48] sm:$0xff] %v2462
        %2479 = vst [vmem:[%s855 + $0x50] sm:$0xff] %v2463
        %2480 = vst [vmem:[%s855 + $0x58] sm:$0xff] %v2464
        %2481 = vst [vmem:[%s855 + $0x60] sm:$0xff] %v2465
        %2482 = vst [vmem:[%s855 + $0x68] sm:$0xff] %v2466
        %2483 = vst [vmem:[%s855 + $0x70] sm:$0xff] %v2467
        %2484 = vst [vmem:[%s855 + $0x78] sm:$0xff] %v2468
        %s2485 = smul.u32 2, %s22
        %p2486 = scmp.lt.s32.totalorder %s21, 1
        %s2487 = scalar_select %p2486, %s21, 1
        %p2488 = scmp.lt.s32.totalorder %s2485, 1
        %s2489 = scalar_select %p2488, %s2485, 1
        %s2490 = smul.addr %s2487, 16
        %s2491 = sadd.s32 %s2489, %s2490
        %s2492 = smul.addr %s2491, 8
        %s2493 = scalar_lea.vmem %s6, %s2492
        // Predicated region
        $region168: #{vae_attention.3} parent=154 // pred_check
          %p2494 = pneg %p199
        $region169: #{vae_attention.3} parent=154 // pred_check_branch
          %2496 = sbr.rel (%p2494) target = $region171
        $region170: #{vae_attention.3} parent=154 // pred_region
          %s2497 = smul.u32 2, %s22
        $region171: #{vae_attention.3} parent=154 // pred_fallthru
          _
      $region155: #{vae_attention.3} parent=5 // pred_fallthru
        _
      %p2498 = scmp.le.s32.totalorder 2, %s12
      // Predicated region
      $region172: #{vae_attention.3} parent=5 // pred_check
        %p2499 = pneg %p2498
      $region173: #{vae_attention.3} parent=5 // pred_check_branch
        %2501 = sbr.rel (%p2499) target = $region175
      $region174: #{vae_attention.3} parent=5 // pred_region
        %s2502 = ssub.s32 %s12, 2
        // Predicated region
        $region176: #{vae_attention.3} parent=174 // pred_check
          %p2503 = pneg %p205
        $region177: #{vae_attention.3} parent=174 // pred_check_branch
          %2505 = sbr.rel (%p2503) target = $region179
        $region178: #{vae_attention.3} parent=174 // pred_region
          %s2506 = smul.u32 2, %s24
          %p2507 = scmp.lt.s32.totalorder %s23, 1
          %s2508 = scalar_select %p2507, %s23, 1
          %p2509 = scmp.lt.s32.totalorder %s2506, 1
          %s2510 = scalar_select %p2509, %s2506, 1
          %s2511 = smul.addr %s2508, 16
          %s2512 = sadd.s32 %s2510, %s2511
          %s2513 = smul.addr %s2512, 8
          %s2514 = scalar_lea.vmem %s6, %s2513
        $region179: #{vae_attention.3} parent=174 // pred_fallthru
          _
      $region175: #{vae_attention.3} parent=5 // pred_fallthru
        _
    $region6: #{vae_attention.3} parent=1 // loop_footer
      %s16 = sadd.s32 1, %s12
    $region7: #{vae_attention.3} parent=1 // loop_footer_branch
      %11 = sbr.rel target = $region3
    $region8: #{vae_attention.3} parent=1 // loop_exit
      _

// kernel: vae_attention.2
$region0: #{vae_attention.2}
  #allocation0 [shape = 'u32[]', space=smem, size = 0x4, offset = 0x4, fixed_abs, tag = 'smem constant byte address 0x4 - core index']
  #allocation1 [shape = 'u32[144,128]{1,0:T(1,128)}', space=vmem, size = 0x12000, scoped, tag = 'internal scratch']
  %s0 = inlined_call_operand.vmem [shape: f32[2,64,256], index: 0, kind: input, shape index: {}]
  %s1 = inlined_call_operand.vmem [shape: f32[2,64,1], index: 1, kind: input, shape index: {}]
  %s2 = inlined_call_operand.vmem [shape: f32[2,64,1], index: 2, kind: input, shape index: {}]
  %s3 = inlined_call_operand.vmem [shape: bf16[64,384], index: 3, kind: input, shape index: {}]
  %s4 = inlined_call_operand.vmem [shape: f32[1,384], index: 4, kind: input, shape index: {}]
  %s5 = inlined_call_operand.vmem [shape: bf16[2,256,384], index: 5, kind: output, shape index: {}]
  %s6 = sld [smem:[#allocation0]]
  $region53: #{vae_attention.2} parent=0
    _
  %s8 = ssub.s32 1, %s6
  %s9 = scalar_select 0, %s8, %s6
  loop: start=0, step=1, limit=4
  $region2: #{vae_attention.2} parent=0 // loop_pre_header
    _
  $region3: #{vae_attention.2} parent=0 // loop_header
    %s11 = sphi 0, %s15
    %p12 = scmp.ge.s32.totalorder %s11, 4
    %s18 = sphi 0, %s30
    %s19 = sphi 0, %s26
    %s20 = sphi 0, %s18
    %s21 = sphi 0, %s19
    %s22 = sphi 0, %s20
    %s23 = sphi 0, %s21
    %s35 = sphi 0, %s37
    %s38 = sphi 0, %s35
    %s39 = sphi 0, %s38
    %s55 = sphi 0, %s39
    %s61 = sphi 0, %s63
    %s64 = sphi 0, %s61
    %s65 = sphi 0, %s64
    %s81 = sphi 0, %s65
    %s87 = sphi 0, %s89
    %s90 = sphi 0, %s87
    %s91 = sphi 0, %s90
    %s107 = sphi 0, %s91
    %s111 = sphi 0, %s111
    %s113 = sphi 0, %s111
    %s114 = sphi 0, %s113
    %s128 = sphi 0, %s114
    %s132 = sphi 0, %s132
    %s134 = sphi 0, %s132
    %s135 = sphi 0, %s134
    %s149 = sphi 0, %s135
    %s157 = sphi 0, %s159
    %s160 = sphi 0, %s157
    %s161 = sphi 0, %s160
    %s177 = sphi 0, %s161
  $region4: #{vae_attention.2} parent=0 // loop_header_branch
    %14 = sbr.rel (%p12) target = $region8
  $region5: #{vae_attention.2} parent=0 // loop_body
    %s16 = ssub.s32 %s11, 1
    %s17 = ssub.s32 %s11, 2
    %s24 = sadd.s32 1, %s19
    %p25 = scmp.ge.s32.totalorder %s24, 1
    %s26 = scalar_select %p25, 0, %s24
    %s27 = sadd.s32 1, %s18
    %s28 = scalar_select %p25, %s27, %s18
    %p29 = scmp.ge.s32.totalorder %s28, 2
    %s30 = scalar_select %p29, 0, %s28
    %s31 = ssub.s32 %s18, %s30
    %s32 = ssub.s32 %s19, %s26
    %s33 = sor.u32 %s31, %s32
    %p34 = scmp.eq.s32.totalorder %s33, 0
    %s36 = sadd.s32 %s35, 1
    %s37 = scalar_select %p34, %s35, %s36
    %p40 = pneg %p34
    %p41 = scmp.eq.s32.totalorder %s11, 1
    %p42 = por %p40, %p41
    %p43 = scmp.ne.s32.totalorder %s35, %s38
    %p44 = scmp.eq.s32.totalorder %s11, 0
    %p45 = por %p43, %p44
    %p46 = scmp.ne.s32.totalorder %s35, %s38
    %p47 = scmp.eq.s32.totalorder %s16, 1
    %p48 = por %p46, %p47
    %p49 = scmp.ne.s32.totalorder %s38, %s39
    %p50 = scmp.eq.s32.totalorder %s16, 0
    %p51 = por %p49, %p50
    %p52 = scmp.ne.s32.totalorder %s38, %s39
    %p53 = scmp.eq.s32.totalorder %s17, 1
    %p54 = por %p52, %p53
    %p56 = scmp.ne.s32.totalorder %s39, %s55
    %p57 = scmp.eq.s32.totalorder %s17, 0
    %p58 = por %p56, %p57
    %s59 = ssub.s32 %s18, %s30
    %p60 = scmp.eq.s32.totalorder %s59, 0
    %s62 = sadd.s32 %s61, 1
    %s63 = scalar_select %p60, %s61, %s62
    %p66 = pneg %p60
    %p67 = scmp.eq.s32.totalorder %s11, 1
    %p68 = por %p66, %p67
    %p69 = scmp.ne.s32.totalorder %s61, %s64
    %p70 = scmp.eq.s32.totalorder %s11, 0
    %p71 = por %p69, %p70
    %p72 = scmp.ne.s32.totalorder %s61, %s64
    %p73 = scmp.eq.s32.totalorder %s16, 1
    %p74 = por %p72, %p73
    %p75 = scmp.ne.s32.totalorder %s64, %s65
    %p76 = scmp.eq.s32.totalorder %s16, 0
    %p77 = por %p75, %p76
    %p78 = scmp.ne.s32.totalorder %s64, %s65
    %p79 = scmp.eq.s32.totalorder %s17, 1
    %p80 = por %p78, %p79
    %p82 = scmp.ne.s32.totalorder %s65, %s81
    %p83 = scmp.eq.s32.totalorder %s17, 0
    %p84 = por %p82, %p83
    %s85 = ssub.s32 %s18, %s30
    %p86 = scmp.eq.s32.totalorder %s85, 0
    %s88 = sadd.s32 %s87, 1
    %s89 = scalar_select %p86, %s87, %s88
    %p92 = pneg %p86
    %p93 = scmp.eq.s32.totalorder %s11, 1
    %p94 = por %p92, %p93
    %p95 = scmp.ne.s32.totalorder %s87, %s90
    %p96 = scmp.eq.s32.totalorder %s11, 0
    %p97 = por %p95, %p96
    %p98 = scmp.ne.s32.totalorder %s87, %s90
    %p99 = scmp.eq.s32.totalorder %s16, 1
    %p100 = por %p98, %p99
    %p101 = scmp.ne.s32.totalorder %s90, %s91
    %p102 = scmp.eq.s32.totalorder %s16, 0
    %p103 = por %p101, %p102
    %p104 = scmp.ne.s32.totalorder %s90, %s91
    %p105 = scmp.eq.s32.totalorder %s17, 1
    %p106 = por %p104, %p105
    %p108 = scmp.ne.s32.totalorder %s91, %s107
    %p109 = scmp.eq.s32.totalorder %s17, 0
    %p110 = por %p108, %p109
    %s112 = sadd.s32 %s111, 1
    %p115 = scmp.eq.s32.totalorder %s11, 1
    %p116 = scmp.ne.s32.totalorder %s111, %s113
    %p117 = scmp.eq.s32.totalorder %s11, 0
    %p118 = por %p116, %p117
    %p119 = scmp.ne.s32.totalorder %s111, %s113
    %p120 = scmp.eq.s32.totalorder %s16, 1
    %p121 = por %p119, %p120
    %p122 = scmp.ne.s32.totalorder %s113, %s114
    %p123 = scmp.eq.s32.totalorder %s16, 0
    %p124 = por %p122, %p123
    %p125 = scmp.ne.s32.totalorder %s113, %s114
    %p126 = scmp.eq.s32.totalorder %s17, 1
    %p127 = por %p125, %p126
    %p129 = scmp.ne.s32.totalorder %s114, %s128
    %p130 = scmp.eq.s32.totalorder %s17, 0
    %p131 = por %p129, %p130
    %s133 = sadd.s32 %s132, 1
    %p136 = scmp.eq.s32.totalorder %s11, 1
    %p137 = scmp.ne.s32.totalorder %s132, %s134
    %p138 = scmp.eq.s32.totalorder %s11, 0
    %p139 = por %p137, %p138
    %p140 = scmp.ne.s32.totalorder %s132, %s134
    %p141 = scmp.eq.s32.totalorder %s16, 1
    %p142 = por %p140, %p141
    %p143 = scmp.ne.s32.totalorder %s134, %s135
    %p144 = scmp.eq.s32.totalorder %s16, 0
    %p145 = por %p143, %p144
    %p146 = scmp.ne.s32.totalorder %s134, %s135
    %p147 = scmp.eq.s32.totalorder %s17, 1
    %p148 = por %p146, %p147
    %p150 = scmp.ne.s32.totalorder %s135, %s149
    %p151 = scmp.eq.s32.totalorder %s17, 0
    %p152 = por %p150, %p151
    %s153 = ssub.s32 %s18, %s30
    %s154 = ssub.s32 %s19, %s26
    %s155 = sor.u32 %s153, %s154
    %p156 = scmp.eq.s32.totalorder %s155, 0
    %s158 = sadd.s32 %s157, 1
    %s159 = scalar_select %p156, %s157, %s158
    %p162 = pneg %p156
    %p163 = scmp.eq.s32.totalorder %s11, 1
    %p164 = por %p162, %p163
    %p165 = scmp.ne.s32.totalorder %s157, %s160
    %p166 = scmp.eq.s32.totalorder %s11, 0
    %p167 = por %p165, %p166
    %p168 = scmp.ne.s32.totalorder %s157, %s160
    %p169 = scmp.eq.s32.totalorder %s16, 1
    %p170 = por %p168, %p169
    %p171 = scmp.ne.s32.totalorder %s160, %s161
    %p172 = scmp.eq.s32.totalorder %s16, 0
    %p173 = por %p171, %p172
    %p174 = scmp.ne.s32.totalorder %s160, %s161
    %p175 = scmp.eq.s32.totalorder %s17, 1
    %p176 = por %p174, %p175
    %p178 = scmp.ne.s32.totalorder %s161, %s177
    %p179 = scmp.eq.s32.totalorder %s17, 0
    %p180 = por %p178, %p179
    %p181 = scmp.le.s32.totalorder 1, %s11
    %p182 = scmp.lt.s32.totalorder %s11, 3
    %p183 = pnand %p181, %p182
    %p184 = pneg %p183
    // Predicated region
    $region9: #{vae_attention.2} parent=5 // pred_check
      _
    $region10: #{vae_attention.2} parent=5 // pred_check_branch
      %186 = sbr.rel (%p183) target = $region12
    $region11: #{vae_attention.2} parent=5 // pred_region
      %s187 = ssub.s32 %s11, 1
      // Predicated region
      $region13: #{vae_attention.2} parent=11 // pred_check
        %p188 = pneg %p124
      $region14: #{vae_attention.2} parent=11 // pred_check_branch
        %190 = sbr.rel (%p188) target = $region16
      $region15: #{vae_attention.2} parent=11 // pred_region
        _
      $region16: #{vae_attention.2} parent=11 // pred_fallthru
        _
      // Predicated region
      $region17: #{vae_attention.2} parent=11 // pred_check
        %p191 = pneg %p145
      $region18: #{vae_attention.2} parent=11 // pred_check_branch
        %193 = sbr.rel (%p191) target = $region20
      $region19: #{vae_attention.2} parent=11 // pred_region
        _
      $region20: #{vae_attention.2} parent=11 // pred_fallthru
        _
    $region12: #{vae_attention.2} parent=5 // pred_fallthru
      _
    %p194 = scmp.lt.s32.totalorder %s11, 2
    // Predicated region
    $region21: #{vae_attention.2} parent=5 // pred_check
      %p195 = pneg %p194
    $region22: #{vae_attention.2} parent=5 // pred_check_branch
      %197 = sbr.rel (%p195) target = $region24
    $region23: #{vae_attention.2} parent=5 // pred_region
      // Predicated region
      $region25: #{vae_attention.2} parent=23 // pred_check
        %p198 = pneg %p45
      $region26: #{vae_attention.2} parent=23 // pred_check_branch
        %200 = sbr.rel (%p198) target = $region28
      $region27: #{vae_attention.2} parent=23 // pred_region
        %s201 = smul.u32 2, %s19
        %p202 = scmp.lt.s32.totalorder %s18, 1
        %s203 = scalar_select %p202, %s18, 1
        %p204 = scmp.lt.s32.totalorder %s201, 1
        %s205 = scalar_select %p204, %s201, 1
        %s206 = smul.addr %s203, 16
        %s207 = sadd.s32 %s205, %s206
        %s208 = smul.addr %s207, 8
        %s209 = scalar_lea.vmem %s0, %s208
        %s210 = smul.u32 2, %s19
      $region28: #{vae_attention.2} parent=23 // pred_fallthru
        _
      // Predicated region
      $region29: #{vae_attention.2} parent=23 // pred_check
        %p211 = pneg %p71
      $region30: #{vae_attention.2} parent=23 // pred_check_branch
        %213 = sbr.rel (%p211) target = $region32
      $region31: #{vae_attention.2} parent=23 // pred_region
        %p214 = scmp.lt.s32.totalorder %s18, 1
        %s215 = scalar_select %p214, %s18, 1
        %s216 = smul.addr %s215, 8
        %s217 = smul.addr %s216, 8
        %s218 = scalar_lea.vmem %s1, %s217
      $region32: #{vae_attention.2} parent=23 // pred_fallthru
        _
      // Predicated region
      $region33: #{vae_attention.2} parent=23 // pred_check
        %p219 = pneg %p97
      $region34: #{vae_attention.2} parent=23 // pred_check_branch
        %221 = sbr.rel (%p219) target = $region36
      $region35: #{vae_attention.2} parent=23 // pred_region
        %p222 = scmp.lt.s32.totalorder %s18, 1
        %s223 = scalar_select %p222, %s18, 1
        %s224 = smul.addr %s223, 8
        %s225 = smul.addr %s224, 8
        %s226 = scalar_lea.vmem %s2, %s225
      $region36: #{vae_attention.2} parent=23 // pred_fallthru
        _
    $region24: #{vae_attention.2} parent=5 // pred_fallthru
      _
    %p227 = scmp.le.s32.totalorder 1, %s11
    %p228 = scmp.lt.s32.totalorder %s11, 3
    %p229 = pnand %p227, %p228
    %p230 = pneg %p229
    // Predicated region
    $region37: #{vae_attention.2} parent=5 // pred_check
      _
    $region38: #{vae_attention.2} parent=5 // pred_check_branch
      %232 = sbr.rel (%p229) target = $region40
    $region39: #{vae_attention.2} parent=5 // pred_region
      %s233 = ssub.s32 %s11, 1
      %s234 = smul.u32 2, %s21
      %p235 = scmp.lt.s32.totalorder %s20, 1
      %s236 = scalar_select %p235, %s20, 1
      %p237 = scmp.lt.s32.totalorder %s234, 1
      %s238 = scalar_select %p237, %s234, 1
      %s239 = smul.addr %s236, 16
      %s240 = sadd.s32 %s238, %s239
      %s241 = smul.addr %s240, 8
      %s242 = scalar_lea.vmem %s0, %s241
      %p243 = pneg %p51
      %p244 = pneg %p48
      %p245 = scmp.lt.s32.totalorder %s20, 1
      %s246 = scalar_select %p245, %s20, 1
      %s247 = smul.addr %s246, 8
      %s248 = smul.addr %s247, 8
      %s249 = scalar_lea.vmem %s1, %s248
      %p250 = pneg %p77
      %p251 = pneg %p74
      %p252 = scmp.lt.s32.totalorder %s20, 1
      %s253 = scalar_select %p252, %s20, 1
      %s254 = smul.addr %s253, 8
      %s255 = smul.addr %s254, 8
      %s256 = scalar_lea.vmem %s2, %s255
      %p257 = pneg %p103
      %p258 = pneg %p100
      %p259 = pneg %p124
      %p260 = pneg %p121
      %p261 = pneg %p145
      %p262 = pneg %p142
      %p263 = pneg %p173
      %p264 = pneg %p170
      %s265 = smul.u32 32, %s21
      %p266 = scmp.lt.s32.totalorder %s20, 1
      %s267 = scalar_select %p266, %s20, 1
      %p268 = scmp.lt.s32.totalorder %s265, 31
      %s269 = scalar_select %p268, %s265, 31
      %s270 = smul.addr %s269, 3
      %s271 = smul.addr %s267, 96
      %s272 = sadd.s32 %s270, %s271
      %s273 = smul.addr %s272, 4
      %s274 = scalar_lea.vmem %s5, %s273
      %s275 = smul.u32 2, %s21
      %p276 = scmp.lt.s32.totalorder %s20, 1
      %s277 = scalar_select %p276, %s20, 1
      %p278 = scmp.lt.s32.totalorder %s275, 1
      %s279 = scalar_select %p278, %s275, 1
      %s280 = smul.addr %s277, 16
      %s281 = sadd.s32 %s279, %s280
      %s282 = smul.addr %s281, 8
      %s283 = scalar_lea.vmem %s0, %s282
      %s284 = smul.u32 2, %s21
      %p285 = scmp.lt.s32.totalorder %s20, 1
      %s286 = scalar_select %p285, %s20, 1
      %s287 = smul.addr %s286, 8
      %s288 = smul.addr %s287, 8
      %s289 = scalar_lea.vmem %s1, %s288
      %p290 = scmp.lt.s32.totalorder %s20, 1
      %s291 = scalar_select %p290, %s20, 1
      %s292 = smul.addr %s291, 8
      %s293 = smul.addr %s292, 8
      %s294 = scalar_lea.vmem %s2, %s293
      %s295 = smul.u32 32, %s21
      %p296 = scmp.lt.s32.totalorder %s20, 1
      %s297 = scalar_select %p296, %s20, 1
      %p298 = scmp.lt.s32.totalorder %s295, 31
      %s299 = scalar_select %p298, %s295, 31
      %s300 = smul.addr %s299, 3
      %s301 = smul.addr %s297, 96
      %s302 = sadd.s32 %s300, %s301
      %s303 = smul.addr %s302, 4
      %s304 = scalar_lea.vmem %s5, %s303
      %s305 = smul.u32 32, %s21
      %v307 = vld [vmem:[%s283] sm:$0xff]
      %v308 = vld [vmem:[%s283 + $0x8] sm:$0xff]
      %v309 = vld [vmem:[%s283 + $0x10] sm:$0xff]
      %v310 = vld [vmem:[%s283 + $0x18] sm:$0xff]
      %v311 = vld [vmem:[%s283 + $0x20] sm:$0xff]
      %v312 = vld [vmem:[%s283 + $0x28] sm:$0xff]
      %v313 = vld [vmem:[%s283 + $0x30] sm:$0xff]
      %v314 = vld [vmem:[%s283 + $0x38] sm:$0xff]
      %v315 = vld [vmem:[%s283 + $0x40] sm:$0xff]
      %v316 = vld [vmem:[%s283 + $0x48] sm:$0xff]
      %v317 = vld [vmem:[%s283 + $0x50] sm:$0xff]
      %v318 = vld [vmem:[%s283 + $0x58] sm:$0xff]
      %v319 = vld [vmem:[%s283 + $0x60] sm:$0xff]
      %v320 = vld [vmem:[%s283 + $0x68] sm:$0xff]
      %v321 = vld [vmem:[%s283 + $0x70] sm:$0xff]
      %v322 = vld [vmem:[%s283 + $0x78] sm:$0xff]
      %v323 = vld [vmem:[%s289] sm:$0xff]
      %v324 = vld [vmem:[%s289 + $0x8] sm:$0xff]
      %v325 = vld [vmem:[%s289 + $0x10] sm:$0xff]
      %v326 = vld [vmem:[%s289 + $0x18] sm:$0xff]
      %v327 = vld [vmem:[%s289 + $0x20] sm:$0xff]
      %v328 = vld [vmem:[%s289 + $0x28] sm:$0xff]
      %v329 = vld [vmem:[%s289 + $0x30] sm:$0xff]
      %v330 = vld [vmem:[%s289 + $0x38] sm:$0xff]
      %332 = vset.pattern.permute.xlu0 0
      %333 = vperm.xlu0 %332, %v323
      %v334 = vpop.permute.xlu0 %333
      %337 = vset.pattern.permute.xlu0 0
      %338 = vperm.xlu0 %337, %v324
      %v339 = vpop.permute.xlu0 %338
      %342 = vset.pattern.permute.xlu0 0
      %343 = vperm.xlu0 %342, %v325
      %v344 = vpop.permute.xlu0 %343
      %347 = vset.pattern.permute.xlu0 0
      %348 = vperm.xlu0 %347, %v326
      %v349 = vpop.permute.xlu0 %348
      %352 = vset.pattern.permute.xlu0 0
      %353 = vperm.xlu0 %352, %v327
      %v354 = vpop.permute.xlu0 %353
      %357 = vset.pattern.permute.xlu0 0
      %358 = vperm.xlu0 %357, %v328
      %v359 = vpop.permute.xlu0 %358
      %362 = vset.pattern.permute.xlu0 0
      %363 = vperm.xlu0 %362, %v329
      %v364 = vpop.permute.xlu0 %363
      %367 = vset.pattern.permute.xlu0 0
      %368 = vperm.xlu0 %367, %v330
      %v369 = vpop.permute.xlu0 %368
      %v371 = vmul.f32 %v307, %v334
      %v372 = vmul.f32 %v308, %v334
      %v373 = vmul.f32 %v309, %v339
      %v374 = vmul.f32 %v310, %v339
      %v375 = vmul.f32 %v311, %v344
      %v376 = vmul.f32 %v312, %v344
      %v377 = vmul.f32 %v313, %v349
      %v378 = vmul.f32 %v314, %v349
      %v379 = vmul.f32 %v315, %v354
      %v380 = vmul.f32 %v316, %v354
      %v381 = vmul.f32 %v317, %v359
      %v382 = vmul.f32 %v318, %v359
      %v383 = vmul.f32 %v319, %v364
      %v384 = vmul.f32 %v320, %v364
      %v385 = vmul.f32 %v321, %v369
      %v386 = vmul.f32 %v322, %v369
      %v387 = vld [vmem:[%s294] sm:$0xff]
      %v388 = vld [vmem:[%s294 + $0x8] sm:$0xff]
      %v389 = vld [vmem:[%s294 + $0x10] sm:$0xff]
      %v390 = vld [vmem:[%s294 + $0x18] sm:$0xff]
      %v391 = vld [vmem:[%s294 + $0x20] sm:$0xff]
      %v392 = vld [vmem:[%s294 + $0x28] sm:$0xff]
      %v393 = vld [vmem:[%s294 + $0x30] sm:$0xff]
      %v394 = vld [vmem:[%s294 + $0x38] sm:$0xff]
      %396 = vset.pattern.permute.xlu0 0
      %397 = vperm.xlu0 %396, %v387
      %v398 = vpop.permute.xlu0 %397
      %401 = vset.pattern.permute.xlu0 0
      %402 = vperm.xlu0 %401, %v388
      %v403 = vpop.permute.xlu0 %402
      %406 = vset.pattern.permute.xlu0 0
      %407 = vperm.xlu0 %406, %v389
      %v408 = vpop.permute.xlu0 %407
      %411 = vset.pattern.permute.xlu0 0
      %412 = vperm.xlu0 %411, %v390
      %v413 = vpop.permute.xlu0 %412
      %416 = vset.pattern.permute.xlu0 0
      %417 = vperm.xlu0 %416, %v391
      %v418 = vpop.permute.xlu0 %417
      %421 = vset.pattern.permute.xlu0 0
      %422 = vperm.xlu0 %421, %v392
      %v423 = vpop.permute.xlu0 %422
      %426 = vset.pattern.permute.xlu0 0
      %427 = vperm.xlu0 %426, %v393
      %v428 = vpop.permute.xlu0 %427
      %431 = vset.pattern.permute.xlu0 0
      %432 = vperm.xlu0 %431, %v394
      %v433 = vpop.permute.xlu0 %432
      %v435 = vadd.f32 %v371, %v398
      %v436 = vadd.f32 %v372, %v398
      %v437 = vadd.f32 %v373, %v403
      %v438 = vadd.f32 %v374, %v403
      %v439 = vadd.f32 %v375, %v408
      %v440 = vadd.f32 %v376, %v408
      %v441 = vadd.f32 %v377, %v413
      %v442 = vadd.f32 %v378, %v413
      %v443 = vadd.f32 %v379, %v418
      %v444 = vadd.f32 %v380, %v418
      %v445 = vadd.f32 %v381, %v423
      %v446 = vadd.f32 %v382, %v423
      %v447 = vadd.f32 %v383, %v428
      %v448 = vadd.f32 %v384, %v428
      %v449 = vadd.f32 %v385, %v433
      %v450 = vadd.f32 %v386, %v433
      %v451 = vpack.c.bf16 %v437, %v435
      %v452 = vpack.c.bf16 %v438, %v436
      %v453 = vpack.c.bf16 %v441, %v439
      %v454 = vpack.c.bf16 %v442, %v440
      %v455 = vpack.c.bf16 %v445, %v443
      %v456 = vpack.c.bf16 %v446, %v444
      %v457 = vpack.c.bf16 %v449, %v447
      %v458 = vpack.c.bf16 %v450, %v448
      %v459 = vld [vmem:[%s3] sm:$0xff]
      %v460 = vld [vmem:[%s3 + $0x8] sm:$0xf]
      %v461 = vld [vmem:[%s3 + $0xc] sm:$0xff]
      %v462 = vld [vmem:[%s3 + $0x14] sm:$0xf]
      %v463 = vld [vmem:[%s3 + $0x18] sm:$0xff]
      %v464 = vld [vmem:[%s3 + $0x20] sm:$0xf]
      %v465 = vld [vmem:[%s3 + $0x24] sm:$0xff]
      %v466 = vld [vmem:[%s3 + $0x2c] sm:$0xf]
      %v467 = vld [vmem:[%s3 + $0x30] sm:$0xff]
      %v468 = vld [vmem:[%s3 + $0x38] sm:$0xf]
      %v469 = vld [vmem:[%s3 + $0x3c] sm:$0xff]
      %v470 = vld [vmem:[%s3 + $0x44] sm:$0xf]
      %v471 = vld [vmem:[%s3 + $0x48] sm:$0xff]
      %v472 = vld [vmem:[%s3 + $0x50] sm:$0xf]
      %v473 = vld [vmem:[%s3 + $0x54] sm:$0xff]
      %v474 = vld [vmem:[%s3 + $0x5c] sm:$0xf]
      %v475 = vld [vmem:[%s4] sm:$0x7]
      %v477 = vlaneseq
      %v478 = vshrl.u32 %v477, 7
      %v479 = vsub.s32 0, %v478
      %v480 = vrot.slane %v475, %v479
      %v481 = vlaneseq
      %v482 = vshrl.u32 %v481, 7
      %v483 = vsub.s32 1, %v482
      %v484 = vrot.slane %v475, %v483
      %v485 = vlaneseq
      %v486 = vshrl.u32 %v485, 7
      %v487 = vsub.s32 2, %v486
      %v488 = vrot.slane %v475, %v487
      %492 = vxpose.xlu0.c.b16.start [1/8] %v451, 128
      %493 = vxpose.xlu0.c.b16.cont [2/8] %v453, 128
      %494 = vxpose.xlu0.c.b16.cont [3/8] %v455, 128
      %495 = vxpose.xlu0.c.b16.cont [4/8] %v457, 128
      %496 = vxpose.xlu0.c.b16.cont [5/8] 0, 128
      %497 = vxpose.xlu0.c.b16.cont [6/8] 0, 128
      %498 = vxpose.xlu0.c.b16.cont [7/8] 0, 128
      %499 = vxpose.xlu0.c.b16.end [8/8] 0, 128
      %v500 = vpop.trf.xlu0
      %v501 = vpop.trf.xlu0
      %v502 = vpop.trf.xlu0
      %v503 = vpop.trf.xlu0
      %v504 = vpop.trf.xlu0
      %v505 = vpop.trf.xlu0
      %v506 = vpop.trf.xlu0
      %v507 = vpop.trf.xlu0
      %508 = vxpose.xlu0.c.b16.start [1/8] %v452, 128
      %509 = vxpose.xlu0.c.b16.cont [2/8] %v454, 128
      %510 = vxpose.xlu0.c.b16.cont [3/8] %v456, 128
      %511 = vxpose.xlu0.c.b16.cont [4/8] %v458, 128
      %512 = vxpose.xlu0.c.b16.cont [5/8] 0, 128
      %513 = vxpose.xlu0.c.b16.cont [6/8] 0, 128
      %514 = vxpose.xlu0.c.b16.cont [7/8] 0, 128
      %515 = vxpose.xlu0.c.b16.end [8/8] 0, 128
      %v516 = vpop.trf.xlu0
      %v517 = vpop.trf.xlu0
      %v518 = vpop.trf.xlu0
      %v519 = vpop.trf.xlu0
      %v520 = vpop.trf.xlu0
      %v521 = vpop.trf.xlu0
      %v522 = vpop.trf.xlu0
      %v523 = vpop.trf.xlu0
      %v540 = vunpack.c.l.b16 %v459
      %v541 = vunpack.c.h.b16 %v459
      %v542 = vunpack.c.l.b16 %v460
      %v543 = vunpack.c.l.b16 %v461
      %v544 = vunpack.c.h.b16 %v461
      %v545 = vunpack.c.l.b16 %v462
      %v546 = vunpack.c.l.b16 %v463
      %v547 = vunpack.c.h.b16 %v463
      %v548 = vunpack.c.l.b16 %v464
      %v549 = vunpack.c.l.b16 %v465
      %v550 = vunpack.c.h.b16 %v465
      %v551 = vunpack.c.l.b16 %v466
      %v552 = vunpack.c.l.b16 %v467
      %v553 = vunpack.c.h.b16 %v467
      %v554 = vunpack.c.l.b16 %v468
      %v555 = vunpack.c.l.b16 %v469
      %v556 = vunpack.c.h.b16 %v469
      %v557 = vunpack.c.l.b16 %v470
      %v558 = vunpack.c.l.b16 %v471
      %v559 = vunpack.c.h.b16 %v471
      %v560 = vunpack.c.l.b16 %v472
      %v561 = vunpack.c.l.b16 %v473
      %v562 = vunpack.c.h.b16 %v473
      %v563 = vunpack.c.l.b16 %v474
      %v564 = vpack.c.b16 %v543, %v540
      %v565 = vpack.c.b16 %v544, %v541
      %v566 = vpack.c.b16 %v545, %v542
      %v567 = vpack.c.b16 %v549, %v546
      %v568 = vpack.c.b16 %v550, %v547
      %v569 = vpack.c.b16 %v551, %v548
      %v570 = vpack.c.b16 %v555, %v552
      %v571 = vpack.c.b16 %v556, %v553
      %v572 = vpack.c.b16 %v557, %v554
      %v573 = vpack.c.b16 %v561, %v558
      %v574 = vpack.c.b16 %v562, %v559
      %v575 = vpack.c.b16 %v563, %v560
      %vm588 = vcmask 523264
      %v590 = vsel %vm588, %v500, 0
      %v593 = vsel %vm588, %v501, 0
      %v596 = vsel %vm588, %v502, 0
      %v599 = vsel %vm588, %v503, 0
      %v602 = vsel %vm588, %v504, 0
      %v605 = vsel %vm588, %v505, 0
      %v608 = vsel %vm588, %v506, 0
      %v611 = vsel %vm588, %v507, 0
      %v614 = vsel %vm588, %v516, 0
      %v617 = vsel %vm588, %v517, 0
      %v620 = vsel %vm588, %v518, 0
      %v623 = vsel %vm588, %v519, 0
      %v626 = vsel %vm588, %v520, 0
      %v629 = vsel %vm588, %v521, 0
      %v632 = vsel %vm588, %v522, 0
      %v635 = vsel %vm588, %v523, 0
      %637 = vmatprep.subr.bf16.mxu0 %v565
      %638 = vmatpush1.bf16.msra.mxu0 %v564
      %639 = vmatprep.subr.bf16.mxu0 %v568
      %640 = vmatpush1.bf16.msra.mxu0 %v567
      %641 = vmatprep.subr.bf16.mxu0 %v571
      %642 = vmatpush1.bf16.msra.mxu0 %v570
      %643 = vmatprep.subr.bf16.mxu0 %v574
      %644 = vmatpush1.bf16.msra.mxu0 %v573
      %645 = vmatprep.subr.bf16.mxu0 0
      %646 = vmatpush1.bf16.msra.mxu0 0
      %647 = vmatprep.subr.bf16.mxu0 0
      %648 = vmatpush1.bf16.msra.mxu0 0
      %649 = vmatprep.subr.bf16.mxu0 0
      %650 = vmatpush1.bf16.msra.mxu0 0
      %651 = vmatprep.subr.bf16.mxu0 0
      %652 = vmatpush1.bf16.msra.mxu0 0
      %653 = vmatprep.subr.bf16.mxu0 0
      %654 = vmatpush1.bf16.msra.mxu0 0
      %655 = vmatprep.subr.bf16.mxu0 0
      %656 = vmatpush1.bf16.msra.mxu0 0
      %657 = vmatprep.subr.bf16.mxu0 0
      %658 = vmatpush1.bf16.msra.mxu0 0
      %659 = vmatprep.subr.bf16.mxu0 0
      %660 = vmatpush1.bf16.msra.mxu0 0
      %661 = vmatprep.subr.bf16.mxu0 0
      %662 = vmatpush1.bf16.msra.mxu0 0
      %663 = vmatprep.subr.bf16.mxu0 0
      %664 = vmatpush1.bf16.msra.mxu0 0
      %665 = vmatprep.subr.bf16.mxu0 0
      %666 = vmatpush1.bf16.msra.mxu0 0
      %667 = vmatprep.subr.bf16.mxu0 0
      %668 = vmatpush1.bf16.msra.mxu0 0
      %669 = vmatprep.mubr.bf16.mxu0 0
      %670 = vmatmul.mubr.bf16.gmra.mrb[0].mxu0 %v590
      %v671 = vpop.f32.mrb[0].mxu0
      %v672 = vadd.f32 %v480, %v671
      %v673 = vpop.f32.mrb[0].mxu0
      %v674 = vadd.f32 %v484, %v673
      %v675 = vpop.f32.mrb[0].mxu0
      %v676 = vadd.f32 %v480, %v675
      %v677 = vpop.f32.mrb[0].mxu0
      %v678 = vadd.f32 %v484, %v677
      %679 = vmatprep.mubr.bf16.mxu0 0
      %680 = vmatmul.mubr.bf16.gmra.mrb[0].mxu0 %v593
      %v681 = vpop.f32.mrb[0].mxu0
      %v682 = vadd.f32 %v480, %v681
      %v683 = vpop.f32.mrb[0].mxu0
      %v684 = vadd.f32 %v484, %v683
      %v685 = vpop.f32.mrb[0].mxu0
      %v686 = vadd.f32 %v480, %v685
      %v687 = vpop.f32.mrb[0].mxu0
      %v688 = vadd.f32 %v484, %v687
      %689 = vmatprep.mubr.bf16.mxu0 0
      %690 = vmatmul.mubr.bf16.gmra.mrb[0].mxu0 %v596
      %v691 = vpop.f32.mrb[0].mxu0
      %v692 = vadd.f32 %v480, %v691
      %v693 = vpop.f32.mrb[0].mxu0
      %v694 = vadd.f32 %v484, %v693
      %v695 = vpop.f32.mrb[0].mxu0
      %v696 = vadd.f32 %v480, %v695
      %v697 = vpop.f32.mrb[0].mxu0
      %v698 = vadd.f32 %v484, %v697
      %699 = vmatprep.mubr.bf16.mxu0 0
      %700 = vmatmul.mubr.bf16.gmra.mrb[0].mxu0 %v599
      %v701 = vpop.f32.mrb[0].mxu0
      %v702 = vadd.f32 %v480, %v701
      %v703 = vpop.f32.mrb[0].mxu0
      %v704 = vadd.f32 %v484, %v703
      %v705 = vpop.f32.mrb[0].mxu0
      %v706 = vadd.f32 %v480, %v705
      %v707 = vpop.f32.mrb[0].mxu0
      %v708 = vadd.f32 %v484, %v707
      %709 = vmatprep.mubr.bf16.mxu0 0
      %710 = vmatmul.mubr.bf16.gmra.mrb[0].mxu0 %v602
      %v711 = vpop.f32.mrb[0].mxu0
      %v712 = vadd.f32 %v480, %v711
      %v713 = vpop.f32.mrb[0].mxu0
      %v714 = vadd.f32 %v484, %v713
      %v715 = vpop.f32.mrb[0].mxu0
      %v716 = vadd.f32 %v480, %v715
      %v717 = vpop.f32.mrb[0].mxu0
      %v718 = vadd.f32 %v484, %v717
      %719 = vmatprep.mubr.bf16.mxu0 0
      %720 = vmatmul.mubr.bf16.gmra.mrb[0].mxu0 %v605
      %v721 = vpop.f32.mrb[0].mxu0
      %v722 = vadd.f32 %v480, %v721
      %v723 = vpop.f32.mrb[0].mxu0
      %v724 = vadd.f32 %v484, %v723
      %v725 = vpop.f32.mrb[0].mxu0
      %v726 = vadd.f32 %v480, %v725
      %v727 = vpop.f32.mrb[0].mxu0
      %v728 = vadd.f32 %v484, %v727
      %729 = vmatprep.mubr.bf16.mxu0 0
      %730 = vmatmul.mubr.bf16.gmra.mrb[0].mxu0 %v608
      %v731 = vpop.f32.mrb[0].mxu0
      %v732 = vadd.f32 %v480, %v731
      %v733 = vpop.f32.mrb[0].mxu0
      %v734 = vadd.f32 %v484, %v733
      %v735 = vpop.f32.mrb[0].mxu0
      %v736 = vadd.f32 %v480, %v735
      %v737 = vpop.f32.mrb[0].mxu0
      %v738 = vadd.f32 %v484, %v737
      %739 = vmatprep.mubr.bf16.mxu0 0
      %740 = vmatmul.mubr.bf16.gmra.mrb[0].mxu0 %v611
      %v741 = vpop.f32.mrb[0].mxu0
      %v742 = vadd.f32 %v480, %v741
      %v743 = vpop.f32.mrb[0].mxu0
      %v744 = vadd.f32 %v484, %v743
      %v745 = vpop.f32.mrb[0].mxu0
      %v746 = vadd.f32 %v480, %v745
      %v747 = vpop.f32.mrb[0].mxu0
      %v748 = vadd.f32 %v484, %v747
      %749 = vmatprep.mubr.bf16.mxu0 0
      %750 = vmatmul.mubr.bf16.gmra.mrb[0].mxu0 %v614
      %v751 = vpop.f32.mrb[0].mxu0
      %v752 = vadd.f32 %v480, %v751
      %v753 = vpop.f32.mrb[0].mxu0
      %v754 = vadd.f32 %v484, %v753
      %v755 = vpop.f32.mrb[0].mxu0
      %v756 = vadd.f32 %v480, %v755
      %v757 = vpop.f32.mrb[0].mxu0
      %v758 = vadd.f32 %v484, %v757
      %759 = vmatprep.mubr.bf16.mxu0 0
      %760 = vmatmul.mubr.bf16.gmra.mrb[0].mxu0 %v617
      %v761 = vpop.f32.mrb[0].mxu0
      %v762 = vadd.f32 %v480, %v761
      %v763 = vpop.f32.mrb[0].mxu0
      %v764 = vadd.f32 %v484, %v763
      %v765 = vpop.f32.mrb[0].mxu0
      %v766 = vadd.f32 %v480, %v765
      %v767 = vpop.f32.mrb[0].mxu0
      %v768 = vadd.f32 %v484, %v767
      %769 = vmatprep.mubr.bf16.mxu0 0
      %770 = vmatmul.mubr.bf16.gmra.mrb[0].mxu0 %v620
      %v771 = vpop.f32.mrb[0].mxu0
      %v772 = vadd.f32 %v480, %v771
      %v773 = vpop.f32.mrb[0].mxu0
      %v774 = vadd.f32 %v484, %v773
      %v775 = vpop.f32.mrb[0].mxu0
      %v776 = vadd.f32 %v480, %v775
      %v777 = vpop.f32.mrb[0].mxu0
      %v778 = vadd.f32 %v484, %v777
      %779 = vmatprep.mubr.bf16.mxu0 0
      %780 = vmatmul.mubr.bf16.gmra.mrb[0].mxu0 %v623
      %v781 = vpop.f32.mrb[0].mxu0
      %v782 = vadd.f32 %v480, %v781
      %v783 = vpop.f32.mrb[0].mxu0
      %v784 = vadd.f32 %v484, %v783
      %v785 = vpop.f32.mrb[0].mxu0
      %v786 = vadd.f32 %v480, %v785
      %v787 = vpop.f32.mrb[0].mxu0
      %v788 = vadd.f32 %v484, %v787
      %789 = vmatprep.mubr.bf16.mxu0 0
      %790 = vmatmul.mubr.bf16.gmra.mrb[0].mxu0 %v626
      %v791 = vpop.f32.mrb[0].mxu0
      %v792 = vadd.f32 %v480, %v791
      %v793 = vpop.f32.mrb[0].mxu0
      %v794 = vadd.f32 %v484, %v793
      %v795 = vpop.f32.mrb[0].mxu0
      %v796 = vadd.f32 %v480, %v795
      %v797 = vpop.f32.mrb[0].mxu0
      %v798 = vadd.f32 %v484, %v797
      %799 = vmatprep.mubr.bf16.mxu0 0
      %800 = vmatmul.mubr.bf16.gmra.mrb[0].mxu0 %v629
      %v801 = vpop.f32.mrb[0].mxu0
      %v802 = vadd.f32 %v480, %v801
      %v803 = vpop.f32.mrb[0].mxu0
      %v804 = vadd.f32 %v484, %v803
      %v805 = vpop.f32.mrb[0].mxu0
      %v806 = vadd.f32 %v480, %v805
      %v807 = vpop.f32.mrb[0].mxu0
      %v808 = vadd.f32 %v484, %v807
      %809 = vmatprep.mubr.bf16.mxu0 0
      %810 = vmatmul.mubr.bf16.gmra.mrb[0].mxu0 %v632
      %v811 = vpop.f32.mrb[0].mxu0
      %v812 = vadd.f32 %v480, %v811
      %v813 = vpop.f32.mrb[0].mxu0
      %v814 = vadd.f32 %v484, %v813
      %v815 = vpop.f32.mrb[0].mxu0
      %v816 = vadd.f32 %v480, %v815
      %v817 = vpop.f32.mrb[0].mxu0
      %v818 = vadd.f32 %v484, %v817
      %819 = vmatprep.mubr.bf16.mxu0 0
      %820 = vmatmul.mubr.bf16.gmra.mrb[0].mxu0 %v635
      %v821 = vpop.f32.mrb[0].mxu0
      %v822 = vadd.f32 %v480, %v821
      %v823 = vpop.f32.mrb[0].mxu0
      %v824 = vadd.f32 %v484, %v823
      %v825 = vpop.f32.mrb[0].mxu0
      %v826 = vadd.f32 %v480, %v825
      %v827 = vpop.f32.mrb[0].mxu0
      %v828 = vadd.f32 %v484, %v827
      %829 = vdwg.mxu0
      %830 = vmatprep.subr.bf16.mxu0 0
      %831 = vmatpush1.bf16.msra.mxu0 %v566
      %832 = vmatprep.subr.bf16.mxu0 0
      %833 = vmatpush1.bf16.msra.mxu0 %v569
      %834 = vmatprep.subr.bf16.mxu0 0
      %835 = vmatpush1.bf16.msra.mxu0 %v572
      %836 = vmatprep.subr.bf16.mxu0 0
      %837 = vmatpush1.bf16.msra.mxu0 %v575
      %838 = vmatprep.subr.bf16.mxu0 0
      %839 = vmatpush1.bf16.msra.mxu0 0
      %840 = vmatprep.subr.bf16.mxu0 0
      %841 = vmatpush1.bf16.msra.mxu0 0
      %842 = vmatprep.subr.bf16.mxu0 0
      %843 = vmatpush1.bf16.msra.mxu0 0
      %844 = vmatprep.subr.bf16.mxu0 0
      %845 = vmatpush1.bf16.msra.mxu0 0
      %846 = vmatprep.subr.bf16.mxu0 0
      %847 = vmatpush1.bf16.msra.mxu0 0
      %848 = vmatprep.subr.bf16.mxu0 0
      %849 = vmatpush1.bf16.msra.mxu0 0
      %850 = vmatprep.subr.bf16.mxu0 0
      %851 = vmatpush1.bf16.msra.mxu0 0
      %852 = vmatprep.subr.bf16.mxu0 0
      %853 = vmatpush1.bf16.msra.mxu0 0
      %854 = vmatprep.subr.bf16.mxu0 0
      %855 = vmatpush1.bf16.msra.mxu0 0
      %856 = vmatprep.subr.bf16.mxu0 0
      %857 = vmatpush1.bf16.msra.mxu0 0
      %858 = vmatprep.subr.bf16.mxu0 0
      %859 = vmatpush1.bf16.msra.mxu0 0
      %860 = vmatprep.subr.bf16.mxu0 0
      %861 = vmatpush1.bf16.msra.mxu0 0
      %862 = vmatprep.mubr.bf16.mxu0 0
      %863 = vmatmul.mubr.bf16.gmra.mrb[0].mxu0 %v590
      %v864 = vpop.f32.mrb[0].mxu0
      %v865 = vadd.f32 %v488, %v864
      %v866 = vpop.f32.mrb[0].mxu0
      %v867 = vpop.f32.mrb[0].mxu0
      %v868 = vadd.f32 %v488, %v867
      %v869 = vpop.f32.mrb[0].mxu0
      %870 = vmatprep.mubr.bf16.mxu0 0
      %871 = vmatmul.mubr.bf16.gmra.mrb[0].mxu0 %v593
      %v872 = vpop.f32.mrb[0].mxu0
      %v873 = vadd.f32 %v488, %v872
      %v874 = vpop.f32.mrb[0].mxu0
      %v875 = vpop.f32.mrb[0].mxu0
      %v876 = vadd.f32 %v488, %v875
      %v877 = vpop.f32.mrb[0].mxu0
      %878 = vmatprep.mubr.bf16.mxu0 0
      %879 = vmatmul.mubr.bf16.gmra.mrb[0].mxu0 %v596
      %v880 = vpop.f32.mrb[0].mxu0
      %v881 = vadd.f32 %v488, %v880
      %v882 = vpop.f32.mrb[0].mxu0
      %v883 = vpop.f32.mrb[0].mxu0
      %v884 = vadd.f32 %v488, %v883
      %v885 = vpop.f32.mrb[0].mxu0
      %886 = vmatprep.mubr.bf16.mxu0 0
      %887 = vmatmul.mubr.bf16.gmra.mrb[0].mxu0 %v599
      %v888 = vpop.f32.mrb[0].mxu0
      %v889 = vadd.f32 %v488, %v888
      %v890 = vpop.f32.mrb[0].mxu0
      %v891 = vpop.f32.mrb[0].mxu0
      %v892 = vadd.f32 %v488, %v891
      %v893 = vpop.f32.mrb[0].mxu0
      %894 = vmatprep.mubr.bf16.mxu0 0
      %895 = vmatmul.mubr.bf16.gmra.mrb[0].mxu0 %v602
      %v896 = vpop.f32.mrb[0].mxu0
      %v897 = vadd.f32 %v488, %v896
      %v898 = vpop.f32.mrb[0].mxu0
      %v899 = vpop.f32.mrb[0].mxu0
      %v900 = vadd.f32 %v488, %v899
      %v901 = vpop.f32.mrb[0].mxu0
      %902 = vmatprep.mubr.bf16.mxu0 0
      %903 = vmatmul.mubr.bf16.gmra.mrb[0].mxu0 %v605
      %v904 = vpop.f32.mrb[0].mxu0
      %v905 = vadd.f32 %v488, %v904
      %v906 = vpop.f32.mrb[0].mxu0
      %v907 = vpop.f32.mrb[0].mxu0
      %v908 = vadd.f32 %v488, %v907
      %v909 = vpop.f32.mrb[0].mxu0
      %910 = vmatprep.mubr.bf16.mxu0 0
      %911 = vmatmul.mubr.bf16.gmra.mrb[0].mxu0 %v608
      %v912 = vpop.f32.mrb[0].mxu0
      %v913 = vadd.f32 %v488, %v912
      %v914 = vpop.f32.mrb[0].mxu0
      %v915 = vpop.f32.mrb[0].mxu0
      %v916 = vadd.f32 %v488, %v915
      %v917 = vpop.f32.mrb[0].mxu0
      %918 = vmatprep.mubr.bf16.mxu0 0
      %919 = vmatmul.mubr.bf16.gmra.mrb[0].mxu0 %v611
      %v920 = vpop.f32.mrb[0].mxu0
      %v921 = vadd.f32 %v488, %v920
      %v922 = vpop.f32.mrb[0].mxu0
      %v923 = vpop.f32.mrb[0].mxu0
      %v924 = vadd.f32 %v488, %v923
      %v925 = vpop.f32.mrb[0].mxu0
      %926 = vmatprep.mubr.bf16.mxu0 0
      %927 = vmatmul.mubr.bf16.gmra.mrb[0].mxu0 %v614
      %v928 = vpop.f32.mrb[0].mxu0
      %v929 = vadd.f32 %v488, %v928
      %v930 = vpop.f32.mrb[0].mxu0
      %v931 = vpop.f32.mrb[0].mxu0
      %v932 = vadd.f32 %v488, %v931
      %v933 = vpop.f32.mrb[0].mxu0
      %934 = vmatprep.mubr.bf16.mxu0 0
      %935 = vmatmul.mubr.bf16.gmra.mrb[0].mxu0 %v617
      %v936 = vpop.f32.mrb[0].mxu0
      %v937 = vadd.f32 %v488, %v936
      %v938 = vpop.f32.mrb[0].mxu0
      %v939 = vpop.f32.mrb[0].mxu0
      %v940 = vadd.f32 %v488, %v939
      %v941 = vpop.f32.mrb[0].mxu0
      %942 = vmatprep.mubr.bf16.mxu0 0
      %943 = vmatmul.mubr.bf16.gmra.mrb[0].mxu0 %v620
      %v944 = vpop.f32.mrb[0].mxu0
      %v945 = vadd.f32 %v488, %v944
      %v946 = vpop.f32.mrb[0].mxu0
      %v947 = vpop.f32.mrb[0].mxu0
      %v948 = vadd.f32 %v488, %v947
      %v949 = vpop.f32.mrb[0].mxu0
      %950 = vmatprep.mubr.bf16.mxu0 0
      %951 = vmatmul.mubr.bf16.gmra.mrb[0].mxu0 %v623
      %v952 = vpop.f32.mrb[0].mxu0
      %v953 = vadd.f32 %v488, %v952
      %v954 = vpop.f32.mrb[0].mxu0
      %v955 = vpop.f32.mrb[0].mxu0
      %v956 = vadd.f32 %v488, %v955
      %v957 = vpop.f32.mrb[0].mxu0
      %958 = vmatprep.mubr.bf16.mxu0 0
      %959 = vmatmul.mubr.bf16.gmra.mrb[0].mxu0 %v626
      %v960 = vpop.f32.mrb[0].mxu0
      %v961 = vadd.f32 %v488, %v960
      %v962 = vpop.f32.mrb[0].mxu0
      %v963 = vpop.f32.mrb[0].mxu0
      %v964 = vadd.f32 %v488, %v963
      %v965 = vpop.f32.mrb[0].mxu0
      %966 = vmatprep.mubr.bf16.mxu0 0
      %967 = vmatmul.mubr.bf16.gmra.mrb[0].mxu0 %v629
      %v968 = vpop.f32.mrb[0].mxu0
      %v969 = vadd.f32 %v488, %v968
      %v970 = vpop.f32.mrb[0].mxu0
      %v971 = vpop.f32.mrb[0].mxu0
      %v972 = vadd.f32 %v488, %v971
      %v973 = vpop.f32.mrb[0].mxu0
      %974 = vmatprep.mubr.bf16.mxu0 0
      %975 = vmatmul.mubr.bf16.gmra.mrb[0].mxu0 %v632
      %v976 = vpop.f32.mrb[0].mxu0
      %v977 = vadd.f32 %v488, %v976
      %v978 = vpop.f32.mrb[0].mxu0
      %v979 = vpop.f32.mrb[0].mxu0
      %v980 = vadd.f32 %v488, %v979
      %v981 = vpop.f32.mrb[0].mxu0
      %982 = vmatprep.mubr.bf16.mxu0 0
      %983 = vmatmul.mubr.bf16.gmra.mrb[0].mxu0 %v635
      %v984 = vpop.f32.mrb[0].mxu0
      %v985 = vadd.f32 %v488, %v984
      %v986 = vpop.f32.mrb[0].mxu0
      %v987 = vpop.f32.mrb[0].mxu0
      %v988 = vadd.f32 %v488, %v987
      %v989 = vpop.f32.mrb[0].mxu0
      %990 = vdwg.mxu0
      %v991 = vpack.c.bf16 %v676, %v672
      %v992 = vpack.c.bf16 %v678, %v674
      %v993 = vpack.c.bf16 %v868, %v865
      %v994 = vpack.c.bf16 %v686, %v682
      %v995 = vpack.c.bf16 %v688, %v684
      %v996 = vpack.c.bf16 %v876, %v873
      %v997 = vpack.c.bf16 %v696, %v692
      %v998 = vpack.c.bf16 %v698, %v694
      %v999 = vpack.c.bf16 %v884, %v881
      %v1000 = vpack.c.bf16 %v706, %v702
      %v1001 = vpack.c.bf16 %v708, %v704
      %v1002 = vpack.c.bf16 %v892, %v889
      %v1003 = vpack.c.bf16 %v716, %v712
      %v1004 = vpack.c.bf16 %v718, %v714
      %v1005 = vpack.c.bf16 %v900, %v897
      %v1006 = vpack.c.bf16 %v726, %v722
      %v1007 = vpack.c.bf16 %v728, %v724
      %v1008 = vpack.c.bf16 %v908, %v905
      %v1009 = vpack.c.bf16 %v736, %v732
      %v1010 = vpack.c.bf16 %v738, %v734
      %v1011 = vpack.c.bf16 %v916, %v913
      %v1012 = vpack.c.bf16 %v746, %v742
      %v1013 = vpack.c.bf16 %v748, %v744
      %v1014 = vpack.c.bf16 %v924, %v921
      %v1015 = vpack.c.bf16 %v756, %v752
      %v1016 = vpack.c.bf16 %v758, %v754
      %v1017 = vpack.c.bf16 %v932, %v929
      %v1018 = vpack.c.bf16 %v766, %v762
      %v1019 = vpack.c.bf16 %v768, %v764
      %v1020 = vpack.c.bf16 %v940, %v937
      %v1021 = vpack.c.bf16 %v776, %v772
      %v1022 = vpack.c.bf16 %v778, %v774
      %v1023 = vpack.c.bf16 %v948, %v945
      %v1024 = vpack.c.bf16 %v786, %v782
      %v1025 = vpack.c.bf16 %v788, %v784
      %v1026 = vpack.c.bf16 %v956, %v953
      %v1027 = vpack.c.bf16 %v796, %v792
      %v1028 = vpack.c.bf16 %v798, %v794
      %v1029 = vpack.c.bf16 %v964, %v961
      %v1030 = vpack.c.bf16 %v806, %v802
      %v1031 = vpack.c.bf16 %v808, %v804
      %v1032 = vpack.c.bf16 %v972, %v969
      %v1033 = vpack.c.bf16 %v816, %v812
      %v1034 = vpack.c.bf16 %v818, %v814
      %v1035 = vpack.c.bf16 %v980, %v977
      %v1036 = vpack.c.bf16 %v826, %v822
      %v1037 = vpack.c.bf16 %v828, %v824
      %v1038 = vpack.c.bf16 %v988, %v985
      %v1087 = vunpack.c.l.b16 %v991
      %v1088 = vunpack.c.l.b16 %v992
      %v1089 = vunpack.c.l.b16 %v993
      %v1090 = vunpack.c.h.b16 %v991
      %v1091 = vunpack.c.h.b16 %v992
      %v1092 = vunpack.c.h.b16 %v993
      %v1093 = vunpack.c.l.b16 %v994
      %v1094 = vunpack.c.l.b16 %v995
      %v1095 = vunpack.c.l.b16 %v996
      %v1096 = vunpack.c.h.b16 %v994
      %v1097 = vunpack.c.h.b16 %v995
      %v1098 = vunpack.c.h.b16 %v996
      %v1099 = vunpack.c.l.b16 %v997
      %v1100 = vunpack.c.l.b16 %v998
      %v1101 = vunpack.c.l.b16 %v999
      %v1102 = vunpack.c.h.b16 %v997
      %v1103 = vunpack.c.h.b16 %v998
      %v1104 = vunpack.c.h.b16 %v999
      %v1105 = vunpack.c.l.b16 %v1000
      %v1106 = vunpack.c.l.b16 %v1001
      %v1107 = vunpack.c.l.b16 %v1002
      %v1108 = vunpack.c.h.b16 %v1000
      %v1109 = vunpack.c.h.b16 %v1001
      %v1110 = vunpack.c.h.b16 %v1002
      %v1111 = vunpack.c.l.b16 %v1003
      %v1112 = vunpack.c.l.b16 %v1004
      %v1113 = vunpack.c.l.b16 %v1005
      %v1114 = vunpack.c.h.b16 %v1003
      %v1115 = vunpack.c.h.b16 %v1004
      %v1116 = vunpack.c.h.b16 %v1005
      %v1117 = vunpack.c.l.b16 %v1006
      %v1118 = vunpack.c.l.b16 %v1007
      %v1119 = vunpack.c.l.b16 %v1008
      %v1120 = vunpack.c.h.b16 %v1006
      %v1121 = vunpack.c.h.b16 %v1007
      %v1122 = vunpack.c.h.b16 %v1008
      %v1123 = vunpack.c.l.b16 %v1009
      %v1124 = vunpack.c.l.b16 %v1010
      %v1125 = vunpack.c.l.b16 %v1011
      %v1126 = vunpack.c.h.b16 %v1009
      %v1127 = vunpack.c.h.b16 %v1010
      %v1128 = vunpack.c.h.b16 %v1011
      %v1129 = vunpack.c.l.b16 %v1012
      %v1130 = vunpack.c.l.b16 %v1013
      %v1131 = vunpack.c.l.b16 %v1014
      %v1132 = vunpack.c.h.b16 %v1012
      %v1133 = vunpack.c.h.b16 %v1013
      %v1134 = vunpack.c.h.b16 %v1014
      %v1135 = vunpack.c.l.b16 %v1015
      %v1136 = vunpack.c.l.b16 %v1016
      %v1137 = vunpack.c.l.b16 %v1017
      %v1138 = vunpack.c.h.b16 %v1015
      %v1139 = vunpack.c.h.b16 %v1016
      %v1140 = vunpack.c.h.b16 %v1017
      %v1141 = vunpack.c.l.b16 %v1018
      %v1142 = vunpack.c.l.b16 %v1019
      %v1143 = vunpack.c.l.b16 %v1020
      %v1144 = vunpack.c.h.b16 %v1018
      %v1145 = vunpack.c.h.b16 %v1019
      %v1146 = vunpack.c.h.b16 %v1020
      %v1147 = vunpack.c.l.b16 %v1021
      %v1148 = vunpack.c.l.b16 %v1022
      %v1149 = vunpack.c.l.b16 %v1023
      %v1150 = vunpack.c.h.b16 %v1021
      %v1151 = vunpack.c.h.b16 %v1022
      %v1152 = vunpack.c.h.b16 %v1023
      %v1153 = vunpack.c.l.b16 %v1024
      %v1154 = vunpack.c.l.b16 %v1025
      %v1155 = vunpack.c.l.b16 %v1026
      %v1156 = vunpack.c.h.b16 %v1024
      %v1157 = vunpack.c.h.b16 %v1025
      %v1158 = vunpack.c.h.b16 %v1026
      %v1159 = vunpack.c.l.b16 %v1027
      %v1160 = vunpack.c.l.b16 %v1028
      %v1161 = vunpack.c.l.b16 %v1029
      %v1162 = vunpack.c.h.b16 %v1027
      %v1163 = vunpack.c.h.b16 %v1028
      %v1164 = vunpack.c.h.b16 %v1029
      %v1165 = vunpack.c.l.b16 %v1030
      %v1166 = vunpack.c.l.b16 %v1031
      %v1167 = vunpack.c.l.b16 %v1032
      %v1168 = vunpack.c.h.b16 %v1030
      %v1169 = vunpack.c.h.b16 %v1031
      %v1170 = vunpack.c.h.b16 %v1032
      %v1171 = vunpack.c.l.b16 %v1033
      %v1172 = vunpack.c.l.b16 %v1034
      %v1173 = vunpack.c.l.b16 %v1035
      %v1174 = vunpack.c.h.b16 %v1033
      %v1175 = vunpack.c.h.b16 %v1034
      %v1176 = vunpack.c.h.b16 %v1035
      %v1177 = vunpack.c.l.b16 %v1036
      %v1178 = vunpack.c.l.b16 %v1037
      %v1179 = vunpack.c.l.b16 %v1038
      %v1180 = vunpack.c.h.b16 %v1036
      %v1181 = vunpack.c.h.b16 %v1037
      %v1182 = vunpack.c.h.b16 %v1038
      %v1183 = vpack.c.b16 %v1088, %v1087
      %v1184 = vpack.c.b16 %v1089, %v1089
      %v1185 = vpack.c.b16 %v1091, %v1090
      %v1186 = vpack.c.b16 %v1092, %v1092
      %v1187 = vpack.c.b16 %v1094, %v1093
      %v1188 = vpack.c.b16 %v1095, %v1095
      %v1189 = vpack.c.b16 %v1097, %v1096
      %v1190 = vpack.c.b16 %v1098, %v1098
      %v1191 = vpack.c.b16 %v1100, %v1099
      %v1192 = vpack.c.b16 %v1101, %v1101
      %v1193 = vpack.c.b16 %v1103, %v1102
      %v1194 = vpack.c.b16 %v1104, %v1104
      %v1195 = vpack.c.b16 %v1106, %v1105
      %v1196 = vpack.c.b16 %v1107, %v1107
      %v1197 = vpack.c.b16 %v1109, %v1108
      %v1198 = vpack.c.b16 %v1110, %v1110
      %v1199 = vpack.c.b16 %v1112, %v1111
      %v1200 = vpack.c.b16 %v1113, %v1113
      %v1201 = vpack.c.b16 %v1115, %v1114
      %v1202 = vpack.c.b16 %v1116, %v1116
      %v1203 = vpack.c.b16 %v1118, %v1117
      %v1204 = vpack.c.b16 %v1119, %v1119
      %v1205 = vpack.c.b16 %v1121, %v1120
      %v1206 = vpack.c.b16 %v1122, %v1122
      %v1207 = vpack.c.b16 %v1124, %v1123
      %v1208 = vpack.c.b16 %v1125, %v1125
      %v1209 = vpack.c.b16 %v1127, %v1126
      %v1210 = vpack.c.b16 %v1128, %v1128
      %v1211 = vpack.c.b16 %v1130, %v1129
      %v1212 = vpack.c.b16 %v1131, %v1131
      %v1213 = vpack.c.b16 %v1133, %v1132
      %v1214 = vpack.c.b16 %v1134, %v1134
      %v1215 = vpack.c.b16 %v1136, %v1135
      %v1216 = vpack.c.b16 %v1137, %v1137
      %v1217 = vpack.c.b16 %v1139, %v1138
      %v1218 = vpack.c.b16 %v1140, %v1140
      %v1219 = vpack.c.b16 %v1142, %v1141
      %v1220 = vpack.c.b16 %v1143, %v1143
      %v1221 = vpack.c.b16 %v1145, %v1144
      %v1222 = vpack.c.b16 %v1146, %v1146
      %v1223 = vpack.c.b16 %v1148, %v1147
      %v1224 = vpack.c.b16 %v1149, %v1149
      %v1225 = vpack.c.b16 %v1151, %v1150
      %v1226 = vpack.c.b16 %v1152, %v1152
      %v1227 = vpack.c.b16 %v1154, %v1153
      %v1228 = vpack.c.b16 %v1155, %v1155
      %v1229 = vpack.c.b16 %v1157, %v1156
      %v1230 = vpack.c.b16 %v1158, %v1158
      %v1231 = vpack.c.b16 %v1160, %v1159
      %v1232 = vpack.c.b16 %v1161, %v1161
      %v1233 = vpack.c.b16 %v1163, %v1162
      %v1234 = vpack.c.b16 %v1164, %v1164
      %v1235 = vpack.c.b16 %v1166, %v1165
      %v1236 = vpack.c.b16 %v1167, %v1167
      %v1237 = vpack.c.b16 %v1169, %v1168
      %v1238 = vpack.c.b16 %v1170, %v1170
      %v1239 = vpack.c.b16 %v1172, %v1171
      %v1240 = vpack.c.b16 %v1173, %v1173
      %v1241 = vpack.c.b16 %v1175, %v1174
      %v1242 = vpack.c.b16 %v1176, %v1176
      %v1243 = vpack.c.b16 %v1178, %v1177
      %v1244 = vpack.c.b16 %v1179, %v1179
      %v1245 = vpack.c.b16 %v1181, %v1180
      %v1246 = vpack.c.b16 %v1182, %v1182
      %1311 = vst [vmem:[%s304] sm:$0xff] %v1183
      %1312 = vst [vmem:[%s304 + $0x8] sm:$0xf] %v1184
      %1313 = vst [vmem:[%s304 + $0xc] sm:$0xff] %v1185
      %1314 = vst [vmem:[%s304 + $0x14] sm:$0xf] %v1186
      %1315 = vst [vmem:[%s304 + $0x18] sm:$0xff] %v1187
      %1316 = vst [vmem:[%s304 + $0x20] sm:$0xf] %v1188
      %1317 = vst [vmem:[%s304 + $0x24] sm:$0xff] %v1189
      %1318 = vst [vmem:[%s304 + $0x2c] sm:$0xf] %v1190
      %1319 = vst [vmem:[%s304 + $0x30] sm:$0xff] %v1191
      %1320 = vst [vmem:[%s304 + $0x38] sm:$0xf] %v1192
      %1321 = vst [vmem:[%s304 + $0x3c] sm:$0xff] %v1193
      %1322 = vst [vmem:[%s304 + $0x44] sm:$0xf] %v1194
      %1323 = vst [vmem:[%s304 + $0x48] sm:$0xff] %v1195
      %1324 = vst [vmem:[%s304 + $0x50] sm:$0xf] %v1196
      %1325 = vst [vmem:[%s304 + $0x54] sm:$0xff] %v1197
      %1326 = vst [vmem:[%s304 + $0x5c] sm:$0xf] %v1198
      %1327 = vst [vmem:[%s304 + $0x60] sm:$0xff] %v1199
      %1328 = vst [vmem:[%s304 + $0x68] sm:$0xf] %v1200
      %1329 = vst [vmem:[%s304 + $0x6c] sm:$0xff] %v1201
      %1330 = vst [vmem:[%s304 + $0x74] sm:$0xf] %v1202
      %1331 = vst [vmem:[%s304 + $0x78] sm:$0xff] %v1203
      %1332 = vst [vmem:[%s304 + $0x80] sm:$0xf] %v1204
      %1333 = vst [vmem:[%s304 + $0x84] sm:$0xff] %v1205
      %1334 = vst [vmem:[%s304 + $0x8c] sm:$0xf] %v1206
      %1335 = vst [vmem:[%s304 + $0x90] sm:$0xff] %v1207
      %1336 = vst [vmem:[%s304 + $0x98] sm:$0xf] %v1208
      %1337 = vst [vmem:[%s304 + $0x9c] sm:$0xff] %v1209
      %1338 = vst [vmem:[%s304 + $0xa4] sm:$0xf] %v1210
      %1339 = vst [vmem:[%s304 + $0xa8] sm:$0xff] %v1211
      %1340 = vst [vmem:[%s304 + $0xb0] sm:$0xf] %v1212
      %1341 = vst [vmem:[%s304 + $0xb4] sm:$0xff] %v1213
      %1342 = vst [vmem:[%s304 + $0xbc] sm:$0xf] %v1214
      %1343 = vst [vmem:[%s304 + $0xc0] sm:$0xff] %v1215
      %1344 = vst [vmem:[%s304 + $0xc8] sm:$0xf] %v1216
      %1345 = vst [vmem:[%s304 + $0xcc] sm:$0xff] %v1217
      %1346 = vst [vmem:[%s304 + $0xd4] sm:$0xf] %v1218
      %1347 = vst [vmem:[%s304 + $0xd8] sm:$0xff] %v1219
      %1348 = vst [vmem:[%s304 + $0xe0] sm:$0xf] %v1220
      %1349 = vst [vmem:[%s304 + $0xe4] sm:$0xff] %v1221
      %1350 = vst [vmem:[%s304 + $0xec] sm:$0xf] %v1222
      %1351 = vst [vmem:[%s304 + $0xf0] sm:$0xff] %v1223
      %1352 = vst [vmem:[%s304 + $0xf8] sm:$0xf] %v1224
      %1353 = vst [vmem:[%s304 + $0xfc] sm:$0xff] %v1225
      %1354 = vst [vmem:[%s304 + $0x104] sm:$0xf] %v1226
      %1355 = vst [vmem:[%s304 + $0x108] sm:$0xff] %v1227
      %1356 = vst [vmem:[%s304 + $0x110] sm:$0xf] %v1228
      %1357 = vst [vmem:[%s304 + $0x114] sm:$0xff] %v1229
      %1358 = vst [vmem:[%s304 + $0x11c] sm:$0xf] %v1230
      %1359 = vst [vmem:[%s304 + $0x120] sm:$0xff] %v1231
      %1360 = vst [vmem:[%s304 + $0x128] sm:$0xf] %v1232
      %1361 = vst [vmem:[%s304 + $0x12c] sm:$0xff] %v1233
      %1362 = vst [vmem:[%s304 + $0x134] sm:$0xf] %v1234
      %1363 = vst [vmem:[%s304 + $0x138] sm:$0xff] %v1235
      %1364 = vst [vmem:[%s304 + $0x140] sm:$0xf] %v1236
      %1365 = vst [vmem:[%s304 + $0x144] sm:$0xff] %v1237
      %1366 = vst [vmem:[%s304 + $0x14c] sm:$0xf] %v1238
      %1367 = vst [vmem:[%s304 + $0x150] sm:$0xff] %v1239
      %1368 = vst [vmem:[%s304 + $0x158] sm:$0xf] %v1240
      %1369 = vst [vmem:[%s304 + $0x15c] sm:$0xff] %v1241
      %1370 = vst [vmem:[%s304 + $0x164] sm:$0xf] %v1242
      %1371 = vst [vmem:[%s304 + $0x168] sm:$0xff] %v1243
      %1372 = vst [vmem:[%s304 + $0x170] sm:$0xf] %v1244
      %1373 = vst [vmem:[%s304 + $0x174] sm:$0xff] %v1245
      %1374 = vst [vmem:[%s304 + $0x17c] sm:$0xf] %v1246
      %s1375 = smul.u32 32, %s21
      %p1376 = scmp.lt.s32.totalorder %s20, 1
      %s1377 = scalar_select %p1376, %s20, 1
      %p1378 = scmp.lt.s32.totalorder %s1375, 31
      %s1379 = scalar_select %p1378, %s1375, 31
      %s1380 = smul.addr %s1379, 3
      %s1381 = smul.addr %s1377, 96
      %s1382 = sadd.s32 %s1380, %s1381
      %s1383 = smul.addr %s1382, 4
      %s1384 = scalar_lea.vmem %s5, %s1383
      // Predicated region
      $region41: #{vae_attention.2} parent=39 // pred_check
        %p1385 = pneg %p170
      $region42: #{vae_attention.2} parent=39 // pred_check_branch
        %1387 = sbr.rel (%p1385) target = $region44
      $region43: #{vae_attention.2} parent=39 // pred_region
        %s1388 = smul.u32 32, %s21
      $region44: #{vae_attention.2} parent=39 // pred_fallthru
        _
    $region40: #{vae_attention.2} parent=5 // pred_fallthru
      _
    %p1389 = scmp.le.s32.totalorder 2, %s11
    // Predicated region
    $region45: #{vae_attention.2} parent=5 // pred_check
      %p1390 = pneg %p1389
    $region46: #{vae_attention.2} parent=5 // pred_check_branch
      %1392 = sbr.rel (%p1390) target = $region48
    $region47: #{vae_attention.2} parent=5 // pred_region
      %s1393 = ssub.s32 %s11, 2
      // Predicated region
      $region49: #{vae_attention.2} parent=47 // pred_check
        %p1394 = pneg %p176
      $region50: #{vae_attention.2} parent=47 // pred_check_branch
        %1396 = sbr.rel (%p1394) target = $region52
      $region51: #{vae_attention.2} parent=47 // pred_region
        %s1397 = smul.u32 32, %s23
        %p1398 = scmp.lt.s32.totalorder %s22, 1
        %s1399 = scalar_select %p1398, %s22, 1
        %p1400 = scmp.lt.s32.totalorder %s1397, 31
        %s1401 = scalar_select %p1400, %s1397, 31
        %s1402 = smul.addr %s1401, 3
        %s1403 = smul.addr %s1399, 96
        %s1404 = sadd.s32 %s1402, %s1403
        %s1405 = smul.addr %s1404, 4
        %s1406 = scalar_lea.vmem %s5, %s1405
      $region52: #{vae_attention.2} parent=47 // pred_fallthru
        _
    $region48: #{vae_attention.2} parent=5 // pred_fallthru
      _
  $region6: #{vae_attention.2} parent=0 // loop_footer
    %s15 = sadd.s32 1, %s11
  $region7: #{vae_attention.2} parent=0 // loop_footer_branch
    %10 = sbr.rel target = $region3
  $region8: #{vae_attention.2} parent=0 // loop_exit
    _

</llo_original>
